<compile_context>
chip_gen: v6e
topology: v6e:2x2x1
jax: 0.10.0
libtpu: 0.0.40
codegen_flags: <defaults>
</compile_context>

<pallas_src>
import functools

import jax
import jax.numpy as jnp
from jax.experimental import pallas as pl
from jax.experimental.pallas import tpu as pltpu


def actor_kernel(x_ref, w1_ref, b1_ref, w2_ref, b2_ref, w3_ref, b3_ref, o_ref,
                 *, scale):
    x = x_ref[...]                      # (TB, S)
    tb = x.shape[0]
    s = w1_ref.shape[0]
    hp = jax.lax.Precision.HIGHEST

    # ---- Layer 1: (TB, S) x (S, 512) + b1 -> relu -------------------------
    # K = state_dim is tiny (e.g. 8); an MXU pass would be mostly padding, so
    # do K broadcast-multiply-accumulates on the VPU instead (exact f32).
    if s <= 32:
        h1 = jnp.broadcast_to(b1_ref[...], (tb, w1_ref.shape[1]))
        for k in range(s):                              # static unroll
            h1 = h1 + x[:, k:k + 1] * w1_ref[k:k + 1, :]
    else:
        h1 = jnp.dot(x, w1_ref[...], preferred_element_type=jnp.float32,
                     precision=hp) + b1_ref[...]
    h1 = jnp.maximum(h1, 0.0)

    # ---- Layer 2: (TB, 512) x (512, 384) + b2 -> relu (MXU) ----------------
    h2 = jnp.dot(h1, w2_ref[...], preferred_element_type=jnp.float32,
                 precision=hp) + b2_ref[...]
    h2 = jnp.maximum(h2, 0.0)

    # ---- Layer 3: (TB, 384) x (384, 128) + b3 -> scale * tanh (MXU + EUP) --
    h3 = jnp.dot(h2, w3_ref[...], preferred_element_type=jnp.float32,
                 precision=hp) + b3_ref[...]
    o_ref[...] = scale * jnp.tanh(h3)


def _round_up(n, m):
    return ((n + m - 1) // m) * m


def actor_forward(x, params, scale=2.0):
    """Fused Actor forward. x: (B, state_dim) float32 -> (B, action_dim)."""
    w1, b1, w2, b2, w3, b3 = params
    B, S = x.shape
    A = w3.shape[1]
    H1, H2 = w1.shape[1], w2.shape[1]

    # Pad feature widths to 128-lane multiples.
    H1p, H2p, Ap = _round_up(H1, 128), _round_up(H2, 128), _round_up(A, 128)

    # Batch tile: big tiles fill MXU rows; small batches get a single snug tile.
    if B >= 512:
        TB = 256
    elif B >= 128:
        TB = 128
    else:
        TB = _round_up(B, 8)
    Bp = _round_up(B, TB)

    pad2 = lambda a, r, c: jnp.pad(a, ((0, r - a.shape[0]), (0, c - a.shape[1])))
    xp = pad2(x, Bp, S)
    w1p, b1p = pad2(w1, S, H1p), pad2(b1, 1, H1p)
    w2p, b2p = pad2(w2, H1p, H2p), pad2(b2, 1, H2p)
    w3p, b3p = pad2(w3, H2p, Ap), pad2(b3, 1, Ap)

    # Weights/biases: same block every grid step -> stay resident in VMEM.
    resident = lambda shape: pl.BlockSpec(shape, lambda i: (0, 0))

    flops = 2 * Bp * (S * H1p + H1p * H2p + H2p * Ap)
    bytes_accessed = 4 * (xp.size + w1p.size + b1p.size + w2p.size + b2p.size
                          + w3p.size + b3p.size + Bp * Ap)

    out = pl.pallas_call(
        functools.partial(actor_kernel, scale=float(scale)),
        out_shape=jax.ShapeDtypeStruct((Bp, Ap), jnp.float32),
        grid=(Bp // TB,),
        in_specs=[
            pl.BlockSpec((TB, S), lambda i: (i, 0)),      # x streamed over batch
            resident((S, H1p)), resident((1, H1p)),
            resident((H1p, H2p)), resident((1, H2p)),
            resident((H2p, Ap)), resident((1, Ap)),
        ],
        out_specs=pl.BlockSpec((TB, Ap), lambda i: (i, 0)),  # lane-dense store
        compiler_params=pltpu.CompilerParams(
            dimension_semantics=("parallel",),   # v7x: split batch across 2 TCs
            vmem_limit_bytes=8 << 20,            # ~2.5 MiB working set
        ),
        cost_estimate=pl.CostEstimate(
            flops=flops, transcendentals=Bp * Ap, bytes_accessed=bytes_accessed),
    )(xp, w1p, b1p, w2p, b2p, w3p, b3p)

    return out[:B, :A]


def init_actor_params(key, state_dim, action_dim):
    """PyTorch nn.Linear-style init: U[-1/sqrt(fan_in), 1/sqrt(fan_in)]."""
    def linear(k, fan_in, fan_out):
        kw, kb = jax.random.split(k)
        bound = 1.0 / jnp.sqrt(jnp.float32(fan_in))
        w = jax.random.uniform(kw, (fan_in, fan_out), jnp.float32, -bound, bound)
        b = jax.random.uniform(kb, (1, fan_out), jnp.float32, -bound, bound)
        return w, b

    k1, k2, k3 = jax.random.split(key, 3)
    w1, b1 = linear(k1, state_dim, 400)
    w2, b2 = linear(k2, 400, 300)
    w3, b3 = linear(k3, 300, action_dim)
    return (w1, b1, w2, b2, w3, b3)


def reference_forward(x, params):
    w1, b1, w2, b2, w3, b3 = params
    hp = jax.lax.Precision.HIGHEST
    h = jnp.maximum(jnp.dot(x, w1, precision=hp) + b1, 0.0)
    h = jnp.maximum(jnp.dot(h, w2, precision=hp) + b2, 0.0)
    return 2.0 * jnp.tanh(jnp.dot(h, w3, precision=hp) + b3)


if __name__ == "__main__":
    key = jax.random.PRNGKey(0)
    k_params, k_x1, k_x2 = jax.random.split(key, 3)

    state_dim = 8      # 2D manipulator joint angles/velocities + target
    action_dim = 4     # joint torques
    params = init_actor_params(k_params, state_dim, action_dim)

    # Small batch (single tile, grid=(1,)).
    x_small = jax.random.normal(k_x1, (8, state_dim), jnp.float32)
    out_small = jax.block_until_ready(actor_forward(x_small, params))
    ref_small = reference_forward(x_small, params)
    assert out_small.shape == (8, action_dim)
    assert jnp.allclose(out_small, ref_small, atol=1e-4, rtol=1e-4), \
        "small-batch mismatch vs JAX reference"

    # Larger batch: exercises batch padding + multi-step grid with resident weights.
    x_big = jax.random.normal(k_x2, (300, state_dim), jnp.float32)
    out_big = jax.block_until_ready(actor_forward(x_big, params))
    ref_big = reference_forward(x_big, params)
    assert out_big.shape == (300, action_dim)
    assert jnp.allclose(out_big, ref_big, atol=1e-4, rtol=1e-4), \
        "large-batch mismatch vs JAX reference"

    print("KERNEL_OK")
</pallas_src>

<mosaic_0001>
module attributes {stable_mosaic.version = 11 : i64} {
  func.func @actor_kernel(%arg0: i32, %arg1: memref<8x8xf32, #tpu.memory_space<vmem>>, %arg2: memref<8x512xf32, #tpu.memory_space<vmem>>, %arg3: memref<1x512xf32, #tpu.memory_space<vmem>>, %arg4: memref<512x384xf32, #tpu.memory_space<vmem>>, %arg5: memref<1x384xf32, #tpu.memory_space<vmem>>, %arg6: memref<384x128xf32, #tpu.memory_space<vmem>>, %arg7: memref<1x128xf32, #tpu.memory_space<vmem>>, %arg8: memref<8x128xf32, #tpu.memory_space<vmem>>) attributes {dimension_semantics = [#tpu.dimension_semantics<parallel>], iteration_bounds = array<i64: 1>, scalar_prefetch = 0 : i64, scratch_operands = 0 : i64, tpu.core_type = #tpu.core_type<tc>, window_params = [{transform_indices = @transform_0, window_bounds = array<i64: 8, 8>}, {pipeline_mode = #tpu.pipeline_mode<synchronous>, transform_indices = @transform_1, window_bounds = array<i64: 8, 512>}, {pipeline_mode = #tpu.pipeline_mode<synchronous>, transform_indices = @transform_2, window_bounds = array<i64: 1, 512>}, {pipeline_mode = #tpu.pipeline_mode<synchronous>, transform_indices = @transform_3, window_bounds = array<i64: 512, 384>}, {pipeline_mode = #tpu.pipeline_mode<synchronous>, transform_indices = @transform_4, window_bounds = array<i64: 1, 384>}, {pipeline_mode = #tpu.pipeline_mode<synchronous>, transform_indices = @transform_5, window_bounds = array<i64: 384, 128>}, {pipeline_mode = #tpu.pipeline_mode<synchronous>, transform_indices = @transform_6, window_bounds = array<i64: 1, 128>}, {transform_indices = @transform_7, window_bounds = array<i64: 8, 128>}]} {
    %c0 = arith.constant 0 : index
    %c0_0 = arith.constant 0 : index
    %0 = vector.load %arg1[%c0, %c0_0] : memref<8x8xf32, #tpu.memory_space<vmem>>, vector<8x8xf32>
    %c0_1 = arith.constant 0 : index
    %c0_2 = arith.constant 0 : index
    %1 = vector.load %arg3[%c0_1, %c0_2] : memref<1x512xf32, #tpu.memory_space<vmem>>, vector<1x512xf32>
    %2 = vector.shape_cast %1 : vector<1x512xf32> to vector<1x512xf32>
    %3 = vector.broadcast %2 : vector<1x512xf32> to vector<8x512xf32>
    %4 = vector.extract_strided_slice %0 {offsets = [0, 0], sizes = [8, 1], strides = [1, 1]} : vector<8x8xf32> to vector<8x1xf32>
    %c0_3 = arith.constant 0 : index
    %c0_4 = arith.constant 0 : index
    %5 = vector.load %arg2[%c0_3, %c0_4] : memref<8x512xf32, #tpu.memory_space<vmem>>, vector<1x512xf32>
    %6 = vector.broadcast %4 : vector<8x1xf32> to vector<8x512xf32>
    %7 = vector.broadcast %5 : vector<1x512xf32> to vector<8x512xf32>
    %8 = arith.mulf %6, %7 : vector<8x512xf32>
    %9 = arith.addf %3, %8 : vector<8x512xf32>
    %10 = vector.extract_strided_slice %0 {offsets = [0, 1], sizes = [8, 1], strides = [1, 1]} : vector<8x8xf32> to vector<8x1xf32>
    %c1 = arith.constant 1 : index
    %c0_5 = arith.constant 0 : index
    %11 = vector.load %arg2[%c1, %c0_5] : memref<8x512xf32, #tpu.memory_space<vmem>>, vector<1x512xf32>
    %12 = vector.broadcast %10 : vector<8x1xf32> to vector<8x512xf32>
    %13 = vector.broadcast %11 : vector<1x512xf32> to vector<8x512xf32>
    %14 = arith.mulf %12, %13 : vector<8x512xf32>
    %15 = arith.addf %9, %14 : vector<8x512xf32>
    %16 = vector.extract_strided_slice %0 {offsets = [0, 2], sizes = [8, 1], strides = [1, 1]} : vector<8x8xf32> to vector<8x1xf32>
    %c2 = arith.constant 2 : index
    %c0_6 = arith.constant 0 : index
    %17 = vector.load %arg2[%c2, %c0_6] : memref<8x512xf32, #tpu.memory_space<vmem>>, vector<1x512xf32>
    %18 = vector.broadcast %16 : vector<8x1xf32> to vector<8x512xf32>
    %19 = vector.broadcast %17 : vector<1x512xf32> to vector<8x512xf32>
    %20 = arith.mulf %18, %19 : vector<8x512xf32>
    %21 = arith.addf %15, %20 : vector<8x512xf32>
    %22 = vector.extract_strided_slice %0 {offsets = [0, 3], sizes = [8, 1], strides = [1, 1]} : vector<8x8xf32> to vector<8x1xf32>
    %c3 = arith.constant 3 : index
    %c0_7 = arith.constant 0 : index
    %23 = vector.load %arg2[%c3, %c0_7] : memref<8x512xf32, #tpu.memory_space<vmem>>, vector<1x512xf32>
    %24 = vector.broadcast %22 : vector<8x1xf32> to vector<8x512xf32>
    %25 = vector.broadcast %23 : vector<1x512xf32> to vector<8x512xf32>
    %26 = arith.mulf %24, %25 : vector<8x512xf32>
    %27 = arith.addf %21, %26 : vector<8x512xf32>
    %28 = vector.extract_strided_slice %0 {offsets = [0, 4], sizes = [8, 1], strides = [1, 1]} : vector<8x8xf32> to vector<8x1xf32>
    %c4 = arith.constant 4 : index
    %c0_8 = arith.constant 0 : index
    %29 = vector.load %arg2[%c4, %c0_8] : memref<8x512xf32, #tpu.memory_space<vmem>>, vector<1x512xf32>
    %30 = vector.broadcast %28 : vector<8x1xf32> to vector<8x512xf32>
    %31 = vector.broadcast %29 : vector<1x512xf32> to vector<8x512xf32>
    %32 = arith.mulf %30, %31 : vector<8x512xf32>
    %33 = arith.addf %27, %32 : vector<8x512xf32>
    %34 = vector.extract_strided_slice %0 {offsets = [0, 5], sizes = [8, 1], strides = [1, 1]} : vector<8x8xf32> to vector<8x1xf32>
    %c5 = arith.constant 5 : index
    %c0_9 = arith.constant 0 : index
    %35 = vector.load %arg2[%c5, %c0_9] : memref<8x512xf32, #tpu.memory_space<vmem>>, vector<1x512xf32>
    %36 = vector.broadcast %34 : vector<8x1xf32> to vector<8x512xf32>
    %37 = vector.broadcast %35 : vector<1x512xf32> to vector<8x512xf32>
    %38 = arith.mulf %36, %37 : vector<8x512xf32>
    %39 = arith.addf %33, %38 : vector<8x512xf32>
    %40 = vector.extract_strided_slice %0 {offsets = [0, 6], sizes = [8, 1], strides = [1, 1]} : vector<8x8xf32> to vector<8x1xf32>
    %c6 = arith.constant 6 : index
    %c0_10 = arith.constant 0 : index
    %41 = vector.load %arg2[%c6, %c0_10] : memref<8x512xf32, #tpu.memory_space<vmem>>, vector<1x512xf32>
    %42 = vector.broadcast %40 : vector<8x1xf32> to vector<8x512xf32>
    %43 = vector.broadcast %41 : vector<1x512xf32> to vector<8x512xf32>
    %44 = arith.mulf %42, %43 : vector<8x512xf32>
    %45 = arith.addf %39, %44 : vector<8x512xf32>
    %46 = vector.extract_strided_slice %0 {offsets = [0, 7], sizes = [8, 1], strides = [1, 1]} : vector<8x8xf32> to vector<8x1xf32>
    %c7 = arith.constant 7 : index
    %c0_11 = arith.constant 0 : index
    %47 = vector.load %arg2[%c7, %c0_11] : memref<8x512xf32, #tpu.memory_space<vmem>>, vector<1x512xf32>
    %48 = vector.broadcast %46 : vector<8x1xf32> to vector<8x512xf32>
    %49 = vector.broadcast %47 : vector<1x512xf32> to vector<8x512xf32>
    %50 = arith.mulf %48, %49 : vector<8x512xf32>
    %51 = arith.addf %45, %50 : vector<8x512xf32>
    %cst = arith.constant 0.000000e+00 : f32
    %52 = vector.broadcast %cst : f32 to vector<8x512xf32>
    %53 = arith.maximumf %51, %52 : vector<8x512xf32>
    %c0_12 = arith.constant 0 : index
    %c0_13 = arith.constant 0 : index
    %54 = vector.load %arg4[%c0_12, %c0_13] : memref<512x384xf32, #tpu.memory_space<vmem>>, vector<512x384xf32>
    %cst_14 = arith.constant dense<0.000000e+00> : vector<8x384xf32>
    %55 = tpu.matmul %53, %54, %cst_14 {dimension_numbers = #tpu.dot_dimension_numbers<[1], [0], [0], [1], [0, 0, 1, 1], [], []>, precision = #tpu.contract_precision<fp32>} : vector<8x512xf32>, vector<512x384xf32>, vector<8x384xf32> -> vector<8x384xf32>
    %c0_15 = arith.constant 0 : index
    %c0_16 = arith.constant 0 : index
    %56 = vector.load %arg5[%c0_15, %c0_16] : memref<1x384xf32, #tpu.memory_space<vmem>>, vector<1x384xf32>
    %57 = vector.broadcast %56 : vector<1x384xf32> to vector<8x384xf32>
    %58 = arith.addf %55, %57 : vector<8x384xf32>
    %cst_17 = arith.constant 0.000000e+00 : f32
    %59 = vector.broadcast %cst_17 : f32 to vector<8x384xf32>
    %60 = arith.maximumf %58, %59 : vector<8x384xf32>
    %c0_18 = arith.constant 0 : index
    %c0_19 = arith.constant 0 : index
    %61 = vector.load %arg6[%c0_18, %c0_19] : memref<384x128xf32, #tpu.memory_space<vmem>>, vector<384x128xf32>
    %cst_20 = arith.constant dense<0.000000e+00> : vector<8x128xf32>
    %62 = tpu.matmul %60, %61, %cst_20 {dimension_numbers = #tpu.dot_dimension_numbers<[1], [0], [0], [1], [0, 0, 1, 1], [], []>, precision = #tpu.contract_precision<fp32>} : vector<8x384xf32>, vector<384x128xf32>, vector<8x128xf32> -> vector<8x128xf32>
    %c0_21 = arith.constant 0 : index
    %c0_22 = arith.constant 0 : index
    %63 = vector.load %arg7[%c0_21, %c0_22] : memref<1x128xf32, #tpu.memory_space<vmem>>, vector<1x128xf32>
    %64 = vector.broadcast %63 : vector<1x128xf32> to vector<8x128xf32>
    %65 = arith.addf %62, %64 : vector<8x128xf32>
    %66 = math.tanh %65 : vector<8x128xf32>
    %cst_23 = arith.constant 2.000000e+00 : f32
    %67 = vector.broadcast %cst_23 : f32 to vector<8x128xf32>
    %68 = arith.mulf %67, %66 : vector<8x128xf32>
    %c0_24 = arith.constant 0 : index
    %c0_25 = arith.constant 0 : index
    %69 = vector.load %arg8[%c0_24, %c0_25] : memref<8x128xf32, #tpu.memory_space<vmem>>, vector<8x128xf32>
    tpu.vector_store %arg8[%c0_24, %c0_25], %68 {strides = array<i32>} : memref<8x128xf32, #tpu.memory_space<vmem>>, vector<8x128xf32>,
    return
  }
  func.func @transform_0(%arg0: i32) -> (i32, i32) {
    %c0_i32 = arith.constant 0 : i32
    %c0_i32_0 = arith.constant 0 : i32
    return %arg0, %c0_i32 : i32, i32
  }
  func.func @transform_1(%arg0: i32) -> (i32, i32) {
    %c0_i32 = arith.constant 0 : i32
    %c0_i32_0 = arith.constant 0 : i32
    %c0_i32_1 = arith.constant 0 : i32
    return %c0_i32, %c0_i32_0 : i32, i32
  }
  func.func @transform_2(%arg0: i32) -> (i32, i32) {
    %c0_i32 = arith.constant 0 : i32
    %c0_i32_0 = arith.constant 0 : i32
    %c0_i32_1 = arith.constant 0 : i32
    return %c0_i32, %c0_i32_0 : i32, i32
  }
  func.func @transform_3(%arg0: i32) -> (i32, i32) {
    %c0_i32 = arith.constant 0 : i32
    %c0_i32_0 = arith.constant 0 : i32
    %c0_i32_1 = arith.constant 0 : i32
    return %c0_i32, %c0_i32_0 : i32, i32
  }
  func.func @transform_4(%arg0: i32) -> (i32, i32) {
    %c0_i32 = arith.constant 0 : i32
    %c0_i32_0 = arith.constant 0 : i32
    %c0_i32_1 = arith.constant 0 : i32
    return %c0_i32, %c0_i32_0 : i32, i32
  }
  func.func @transform_5(%arg0: i32) -> (i32, i32) {
    %c0_i32 = arith.constant 0 : i32
    %c0_i32_0 = arith.constant 0 : i32
    %c0_i32_1 = arith.constant 0 : i32
    return %c0_i32, %c0_i32_0 : i32, i32
  }
  func.func @transform_6(%arg0: i32) -> (i32, i32) {
    %c0_i32 = arith.constant 0 : i32
    %c0_i32_0 = arith.constant 0 : i32
    %c0_i32_1 = arith.constant 0 : i32
    return %c0_i32, %c0_i32_0 : i32, i32
  }
  func.func @transform_7(%arg0: i32) -> (i32, i32) {
    %c0_i32 = arith.constant 0 : i32
    %c0_i32_0 = arith.constant 0 : i32
    return %arg0, %c0_i32 : i32, i32
  }
}

</mosaic_0001>

<llo_original>
// kernel: tpu_custom_call.1
$region0: #{tpu_custom_call.1}
  #allocation0 [shape = 'u32[]', space=smem, size = 0x4, offset = 0x4, fixed_abs, tag = 'smem constant byte address 0x4 - core index']
  #allocation1 [shape = 'u32[144,128]{1,0:T(1,128)}', space=vmem, size = 0x12000, scoped, tag = 'internal scratch']
  %s0 = inlined_call_operand.hbm [shape: f32[8,8], index: 0, kind: input, shape index: {}]
  %s1 = inlined_call_operand.hbm [shape: f32[8,512], index: 1, kind: input, shape index: {}]
  %s2 = inlined_call_operand.hbm [shape: f32[1,512], index: 2, kind: input, shape index: {}]
  %s3 = inlined_call_operand.hbm [shape: f32[512,384], index: 3, kind: input, shape index: {}]
  %s4 = inlined_call_operand.vmem [shape: f32[1,384], index: 4, kind: input, shape index: {}]
  %s5 = inlined_call_operand.hbm [shape: f32[384,128], index: 5, kind: input, shape index: {}]
  %s6 = inlined_call_operand.vmem [shape: f32[1,128], index: 6, kind: input, shape index: {}]
  %s7 = inlined_call_operand.hbm [shape: f32[8,128], index: 7, kind: output, shape index: {}]
  %s8 = sld [smem:[#allocation0]]
  $region58: #{tpu_custom_call.1} parent=0
    _
  %s10 = ssub.s32 1, %s8
  %s11 = scalar_select 0, %s10, %s8
  $region1: #{tpu_custom_call.1} parent=0
    #allocation2 [shape = 'u8[4096]{0}', space=vmem, size = 0x1000, scoped, tag = 'input window, operand 0, single buffered']
    #allocation3 [shape = 's32[1]{0}', space=sflag, size = 0x4, scoped, tag = 'scoped memory for tpu_custom_call.1']
    #allocation4 [shape = 's32[1]{0}', space=sflag, size = 0x4, scoped, tag = 'scoped memory for tpu_custom_call.1']
    #allocation5 [shape = 'u8[16384]{0}', space=vmem, size = 0x4000, scoped, tag = 'input window, operand 1, single buffered']
    #allocation6 [shape = 's32[1]{0}', space=sflag, size = 0x4, scoped, tag = 'scoped memory for tpu_custom_call.1']
    #allocation7 [shape = 'u8[2048]{0}', space=vmem, size = 0x800, scoped, tag = 'input window, operand 2, single buffered']
    #allocation8 [shape = 'u8[786432]{0}', space=vmem, size = 0xc0000, scoped, tag = 'input window, operand 3, single buffered']
    #allocation9 [shape = 's32[1]{0}', space=sflag, size = 0x4, scoped, tag = 'scoped memory for tpu_custom_call.1']
    #allocation10 [shape = 'u8[196608]{0}', space=vmem, size = 0x30000, scoped, tag = 'input window, operand 5, single buffered']
    #allocation11 [shape = 'u8[4096]{0}', space=vmem, size = 0x1000, scoped, tag = 'output window, operand 0, single buffered']
    %12 = vsyncpa [#allocation3], 0
    %13 = vsyncpa [#allocation6], 0
    %14 = vsyncpa [#allocation9], 0
    %15 = vsyncpa [#allocation4], 0
    // Predicated region
    $region2: #{tpu_custom_call.1} parent=1 // pred_check
      _
    $region3: #{tpu_custom_call.1} parent=1 // pred_check_branch
      %17 = sbr.rel (0) target = $region5
    $region4: #{tpu_custom_call.1} parent=1 // pred_region
      %s19 = ssub.s32 128, 128
      %20 = vsyncadd [#allocation3], %s19
      %s22 = sshll.u32 [#allocation2], 4
      %s23 = int_to_ptr.vmem [resolvable:$true] %s22
      %25 = dma.hbm_to_vmem [thread:$0]  %s0, 128, %s23, [#allocation3]
    $region5: #{tpu_custom_call.1} parent=1 // pred_fallthru
      _
    // Predicated region
    $region6: #{tpu_custom_call.1} parent=1 // pred_check
      _
    $region7: #{tpu_custom_call.1} parent=1 // pred_check_branch
      %27 = sbr.rel (0) target = $region9
    $region8: #{tpu_custom_call.1} parent=1 // pred_region
      %s29 = ssub.s32 512, 512
      %30 = vsyncadd [#allocation6], %s29
      %s32 = sshll.u32 [#allocation5], 4
      %s33 = int_to_ptr.vmem [resolvable:$true] %s32
      %35 = dma.hbm_to_vmem [thread:$0]  %s1, 512, %s33, [#allocation6]
    $region9: #{tpu_custom_call.1} parent=1 // pred_fallthru
      _
    // Predicated region
    $region10: #{tpu_custom_call.1} parent=1 // pred_check
      _
    $region11: #{tpu_custom_call.1} parent=1 // pred_check_branch
      %37 = sbr.rel (0) target = $region13
    $region12: #{tpu_custom_call.1} parent=1 // pred_region
      %s39 = ssub.s32 64, 64
      %40 = vsyncadd [#allocation6], %s39
      %s42 = sshll.u32 [#allocation7], 4
      %s43 = int_to_ptr.vmem [resolvable:$true] %s42
      %45 = dma.hbm_to_vmem [thread:$0]  %s2, 64, %s43, [#allocation6]
    $region13: #{tpu_custom_call.1} parent=1 // pred_fallthru
      _
    // Predicated region
    $region14: #{tpu_custom_call.1} parent=1 // pred_check
      _
    $region15: #{tpu_custom_call.1} parent=1 // pred_check_branch
      %47 = sbr.rel (0) target = $region17
    $region16: #{tpu_custom_call.1} parent=1 // pred_region
      %s49 = ssub.s32 24576, 24576
      %50 = vsyncadd [#allocation9], %s49
      %s51 = sshll.u32 [#allocation8], 4
      %s52 = int_to_ptr.vmem [resolvable:$true] %s51
      %57 = dma.hbm_to_vmem [thread:$0]  %s3, 24576, %s52, [#allocation9], 384, 384, 24
    $region17: #{tpu_custom_call.1} parent=1 // pred_fallthru
      _
    // Predicated region
    $region18: #{tpu_custom_call.1} parent=1 // pred_check
      _
    $region19: #{tpu_custom_call.1} parent=1 // pred_check_branch
      %59 = sbr.rel (0) target = $region21
    $region20: #{tpu_custom_call.1} parent=1 // pred_region
      _
    $region21: #{tpu_custom_call.1} parent=1 // pred_fallthru
      _
    // Predicated region
    $region22: #{tpu_custom_call.1} parent=1 // pred_check
      _
    $region23: #{tpu_custom_call.1} parent=1 // pred_check_branch
      %61 = sbr.rel (0) target = $region25
    $region24: #{tpu_custom_call.1} parent=1 // pred_region
      %s63 = ssub.s32 6144, 6144
      %64 = vsyncadd [#allocation9], %s63
      %s65 = sshll.u32 [#allocation10], 4
      %s66 = int_to_ptr.vmem [resolvable:$true] %s65
      %71 = dma.hbm_to_vmem [thread:$0]  %s5, 6144, %s66, [#allocation9], 128, 128, 8
    $region25: #{tpu_custom_call.1} parent=1 // pred_fallthru
      _
    // Predicated region
    $region26: #{tpu_custom_call.1} parent=1 // pred_check
      _
    $region27: #{tpu_custom_call.1} parent=1 // pred_check_branch
      %73 = sbr.rel (0) target = $region29
    $region28: #{tpu_custom_call.1} parent=1 // pred_region
      _
    $region29: #{tpu_custom_call.1} parent=1 // pred_fallthru
      _
    // Predicated region
    $region30: #{tpu_custom_call.1} parent=1 // pred_check
      _
    $region31: #{tpu_custom_call.1} parent=1 // pred_check_branch
      %75 = sbr.rel (0) target = $region33
    $region32: #{tpu_custom_call.1} parent=1 // pred_region
      %76 = dma.done [#allocation3], 128
    $region33: #{tpu_custom_call.1} parent=1 // pred_fallthru
      _
    // Predicated region
    $region34: #{tpu_custom_call.1} parent=1 // pred_check
      _
    $region35: #{tpu_custom_call.1} parent=1 // pred_check_branch
      %78 = sbr.rel (0) target = $region37
    $region36: #{tpu_custom_call.1} parent=1 // pred_region
      %79 = dma.done [#allocation6], 512
    $region37: #{tpu_custom_call.1} parent=1 // pred_fallthru
      _
    // Predicated region
    $region38: #{tpu_custom_call.1} parent=1 // pred_check
      _
    $region39: #{tpu_custom_call.1} parent=1 // pred_check_branch
      %81 = sbr.rel (0) target = $region41
    $region40: #{tpu_custom_call.1} parent=1 // pred_region
      %82 = dma.done [#allocation6], 64
    $region41: #{tpu_custom_call.1} parent=1 // pred_fallthru
      _
    // Predicated region
    $region42: #{tpu_custom_call.1} parent=1 // pred_check
      _
    $region43: #{tpu_custom_call.1} parent=1 // pred_check_branch
      %84 = sbr.rel (0) target = $region45
    $region44: #{tpu_custom_call.1} parent=1 // pred_region
      %85 = dma.done [#allocation9], 24576
    $region45: #{tpu_custom_call.1} parent=1 // pred_fallthru
      _
    // Predicated region
    $region46: #{tpu_custom_call.1} parent=1 // pred_check
      _
    $region47: #{tpu_custom_call.1} parent=1 // pred_check_branch
      %87 = sbr.rel (0) target = $region49
    $region48: #{tpu_custom_call.1} parent=1 // pred_region
      %88 = dma.done [#allocation9], 6144
    $region49: #{tpu_custom_call.1} parent=1 // pred_fallthru
      _
    %v89 = vld [vmem:[#allocation2] sm:$0xff]
    %v90 = vld [vmem:[#allocation7] sm:$0xf]
    %v92 = vlaneseq
    %v93 = vshrl.u32 %v92, 7
    %v94 = vsub.s32 0, %v93
    %v95 = vrot.slane %v90, %v94
    %v96 = vlaneseq
    %v97 = vshrl.u32 %v96, 7
    %v98 = vsub.s32 1, %v97
    %v99 = vrot.slane %v90, %v98
    %v100 = vlaneseq
    %v101 = vshrl.u32 %v100, 7
    %v102 = vsub.s32 2, %v101
    %v103 = vrot.slane %v90, %v102
    %v104 = vlaneseq
    %v105 = vshrl.u32 %v104, 7
    %v106 = vsub.s32 3, %v105
    %v107 = vrot.slane %v90, %v106
    %v112 = vld [vmem:[#allocation5] ss:$8 sm:$0xf]
    %114 = vset.pattern.permute.xlu0 0
    %115 = vperm.xlu0 %114, %v89
    %v116 = vpop.permute.xlu0 %115
    %v119 = vlaneseq
    %v120 = vshrl.u32 %v119, 7
    %v121 = vsub.s32 0, %v120
    %v122 = vrot.slane %v112, %v121
    %v123 = vlaneseq
    %v124 = vshrl.u32 %v123, 7
    %v125 = vsub.s32 1, %v124
    %v126 = vrot.slane %v112, %v125
    %v127 = vlaneseq
    %v128 = vshrl.u32 %v127, 7
    %v129 = vsub.s32 2, %v128
    %v130 = vrot.slane %v112, %v129
    %v131 = vlaneseq
    %v132 = vshrl.u32 %v131, 7
    %v133 = vsub.s32 3, %v132
    %v134 = vrot.slane %v112, %v133
    %v139 = vmul.f32 %v116, %v122
    %v140 = vmul.f32 %v116, %v126
    %v141 = vmul.f32 %v116, %v130
    %v142 = vmul.f32 %v116, %v134
    %v143 = vadd.f32 %v95, %v139
    %v144 = vadd.f32 %v99, %v140
    %v145 = vadd.f32 %v103, %v141
    %v146 = vadd.f32 %v107, %v142
    %s147 = scalar_lea.vmem [#allocation5], 1
    %v148 = vld [vmem:[%s147] ss:$8 sm:$0xf]
    %149 = vset.pattern.permute.xlu0 1
    %150 = vperm.xlu0 %149, %v89
    %v151 = vpop.permute.xlu0 %150
    %v154 = vlaneseq
    %v155 = vshrl.u32 %v154, 7
    %v156 = vsub.s32 0, %v155
    %v157 = vrot.slane %v148, %v156
    %v158 = vlaneseq
    %v159 = vshrl.u32 %v158, 7
    %v160 = vsub.s32 1, %v159
    %v161 = vrot.slane %v148, %v160
    %v162 = vlaneseq
    %v163 = vshrl.u32 %v162, 7
    %v164 = vsub.s32 2, %v163
    %v165 = vrot.slane %v148, %v164
    %v166 = vlaneseq
    %v167 = vshrl.u32 %v166, 7
    %v168 = vsub.s32 3, %v167
    %v169 = vrot.slane %v148, %v168
    %v174 = vmul.f32 %v151, %v157
    %v175 = vmul.f32 %v151, %v161
    %v176 = vmul.f32 %v151, %v165
    %v177 = vmul.f32 %v151, %v169
    %v178 = vadd.f32 %v143, %v174
    %v179 = vadd.f32 %v144, %v175
    %v180 = vadd.f32 %v145, %v176
    %v181 = vadd.f32 %v146, %v177
    %s182 = scalar_lea.vmem [#allocation5], 2
    %v183 = vld [vmem:[%s182] ss:$8 sm:$0xf]
    %184 = vset.pattern.permute.xlu0 2
    %185 = vperm.xlu0 %184, %v89
    %v186 = vpop.permute.xlu0 %185
    %v189 = vlaneseq
    %v190 = vshrl.u32 %v189, 7
    %v191 = vsub.s32 0, %v190
    %v192 = vrot.slane %v183, %v191
    %v193 = vlaneseq
    %v194 = vshrl.u32 %v193, 7
    %v195 = vsub.s32 1, %v194
    %v196 = vrot.slane %v183, %v195
    %v197 = vlaneseq
    %v198 = vshrl.u32 %v197, 7
    %v199 = vsub.s32 2, %v198
    %v200 = vrot.slane %v183, %v199
    %v201 = vlaneseq
    %v202 = vshrl.u32 %v201, 7
    %v203 = vsub.s32 3, %v202
    %v204 = vrot.slane %v183, %v203
    %v209 = vmul.f32 %v186, %v192
    %v210 = vmul.f32 %v186, %v196
    %v211 = vmul.f32 %v186, %v200
    %v212 = vmul.f32 %v186, %v204
    %v213 = vadd.f32 %v178, %v209
    %v214 = vadd.f32 %v179, %v210
    %v215 = vadd.f32 %v180, %v211
    %v216 = vadd.f32 %v181, %v212
    %s217 = scalar_lea.vmem [#allocation5], 3
    %v218 = vld [vmem:[%s217] ss:$8 sm:$0xf]
    %219 = vset.pattern.permute.xlu0 3
    %220 = vperm.xlu0 %219, %v89
    %v221 = vpop.permute.xlu0 %220
    %v224 = vlaneseq
    %v225 = vshrl.u32 %v224, 7
    %v226 = vsub.s32 0, %v225
    %v227 = vrot.slane %v218, %v226
    %v228 = vlaneseq
    %v229 = vshrl.u32 %v228, 7
    %v230 = vsub.s32 1, %v229
    %v231 = vrot.slane %v218, %v230
    %v232 = vlaneseq
    %v233 = vshrl.u32 %v232, 7
    %v234 = vsub.s32 2, %v233
    %v235 = vrot.slane %v218, %v234
    %v236 = vlaneseq
    %v237 = vshrl.u32 %v236, 7
    %v238 = vsub.s32 3, %v237
    %v239 = vrot.slane %v218, %v238
    %v244 = vmul.f32 %v221, %v227
    %v245 = vmul.f32 %v221, %v231
    %v246 = vmul.f32 %v221, %v235
    %v247 = vmul.f32 %v221, %v239
    %v248 = vadd.f32 %v213, %v244
    %v249 = vadd.f32 %v214, %v245
    %v250 = vadd.f32 %v215, %v246
    %v251 = vadd.f32 %v216, %v247
    %s252 = scalar_lea.vmem [#allocation5], 4
    %v253 = vld [vmem:[%s252] ss:$8 sm:$0xf]
    %254 = vset.pattern.permute.xlu0 4
    %255 = vperm.xlu0 %254, %v89
    %v256 = vpop.permute.xlu0 %255
    %v259 = vlaneseq
    %v260 = vshrl.u32 %v259, 7
    %v261 = vsub.s32 0, %v260
    %v262 = vrot.slane %v253, %v261
    %v263 = vlaneseq
    %v264 = vshrl.u32 %v263, 7
    %v265 = vsub.s32 1, %v264
    %v266 = vrot.slane %v253, %v265
    %v267 = vlaneseq
    %v268 = vshrl.u32 %v267, 7
    %v269 = vsub.s32 2, %v268
    %v270 = vrot.slane %v253, %v269
    %v271 = vlaneseq
    %v272 = vshrl.u32 %v271, 7
    %v273 = vsub.s32 3, %v272
    %v274 = vrot.slane %v253, %v273
    %v279 = vmul.f32 %v256, %v262
    %v280 = vmul.f32 %v256, %v266
    %v281 = vmul.f32 %v256, %v270
    %v282 = vmul.f32 %v256, %v274
    %v283 = vadd.f32 %v248, %v279
    %v284 = vadd.f32 %v249, %v280
    %v285 = vadd.f32 %v250, %v281
    %v286 = vadd.f32 %v251, %v282
    %s287 = scalar_lea.vmem [#allocation5], 5
    %v288 = vld [vmem:[%s287] ss:$8 sm:$0xf]
    %289 = vset.pattern.permute.xlu0 5
    %290 = vperm.xlu0 %289, %v89
    %v291 = vpop.permute.xlu0 %290
    %v294 = vlaneseq
    %v295 = vshrl.u32 %v294, 7
    %v296 = vsub.s32 0, %v295
    %v297 = vrot.slane %v288, %v296
    %v298 = vlaneseq
    %v299 = vshrl.u32 %v298, 7
    %v300 = vsub.s32 1, %v299
    %v301 = vrot.slane %v288, %v300
    %v302 = vlaneseq
    %v303 = vshrl.u32 %v302, 7
    %v304 = vsub.s32 2, %v303
    %v305 = vrot.slane %v288, %v304
    %v306 = vlaneseq
    %v307 = vshrl.u32 %v306, 7
    %v308 = vsub.s32 3, %v307
    %v309 = vrot.slane %v288, %v308
    %v314 = vmul.f32 %v291, %v297
    %v315 = vmul.f32 %v291, %v301
    %v316 = vmul.f32 %v291, %v305
    %v317 = vmul.f32 %v291, %v309
    %v318 = vadd.f32 %v283, %v314
    %v319 = vadd.f32 %v284, %v315
    %v320 = vadd.f32 %v285, %v316
    %v321 = vadd.f32 %v286, %v317
    %s322 = scalar_lea.vmem [#allocation5], 6
    %v323 = vld [vmem:[%s322] ss:$8 sm:$0xf]
    %324 = vset.pattern.permute.xlu0 6
    %325 = vperm.xlu0 %324, %v89
    %v326 = vpop.permute.xlu0 %325
    %v329 = vlaneseq
    %v330 = vshrl.u32 %v329, 7
    %v331 = vsub.s32 0, %v330
    %v332 = vrot.slane %v323, %v331
    %v333 = vlaneseq
    %v334 = vshrl.u32 %v333, 7
    %v335 = vsub.s32 1, %v334
    %v336 = vrot.slane %v323, %v335
    %v337 = vlaneseq
    %v338 = vshrl.u32 %v337, 7
    %v339 = vsub.s32 2, %v338
    %v340 = vrot.slane %v323, %v339
    %v341 = vlaneseq
    %v342 = vshrl.u32 %v341, 7
    %v343 = vsub.s32 3, %v342
    %v344 = vrot.slane %v323, %v343
    %v349 = vmul.f32 %v326, %v332
    %v350 = vmul.f32 %v326, %v336
    %v351 = vmul.f32 %v326, %v340
    %v352 = vmul.f32 %v326, %v344
    %v353 = vadd.f32 %v318, %v349
    %v354 = vadd.f32 %v319, %v350
    %v355 = vadd.f32 %v320, %v351
    %v356 = vadd.f32 %v321, %v352
    %s357 = scalar_lea.vmem [#allocation5], 7
    %v358 = vld [vmem:[%s357] ss:$8 sm:$0xf]
    %359 = vset.pattern.permute.xlu0 7
    %360 = vperm.xlu0 %359, %v89
    %v361 = vpop.permute.xlu0 %360
    %v364 = vlaneseq
    %v365 = vshrl.u32 %v364, 7
    %v366 = vsub.s32 0, %v365
    %v367 = vrot.slane %v358, %v366
    %v368 = vlaneseq
    %v369 = vshrl.u32 %v368, 7
    %v370 = vsub.s32 1, %v369
    %v371 = vrot.slane %v358, %v370
    %v372 = vlaneseq
    %v373 = vshrl.u32 %v372, 7
    %v374 = vsub.s32 2, %v373
    %v375 = vrot.slane %v358, %v374
    %v376 = vlaneseq
    %v377 = vshrl.u32 %v376, 7
    %v378 = vsub.s32 3, %v377
    %v379 = vrot.slane %v358, %v378
    %v384 = vmul.f32 %v361, %v367
    %v385 = vmul.f32 %v361, %v371
    %v386 = vmul.f32 %v361, %v375
    %v387 = vmul.f32 %v361, %v379
    %v388 = vadd.f32 %v353, %v384
    %v389 = vadd.f32 %v354, %v385
    %v390 = vadd.f32 %v355, %v386
    %v391 = vadd.f32 %v356, %v387
    %v392 = vmax.f32 %v388, 0.0
    %v393 = vmax.f32 %v389, 0.0
    %v394 = vmax.f32 %v390, 0.0
    %v395 = vmax.f32 %v391, 0.0
    %v396 = vld [vmem:[#allocation8] sm:$0xff]
    %v397 = vld [vmem:[#allocation8 + $0x8] sm:$0xff]
    %v398 = vld [vmem:[#allocation8 + $0x10] sm:$0xff]
    %v399 = vld [vmem:[#allocation8 + $0x18] sm:$0xff]
    %v400 = vld [vmem:[#allocation8 + $0x20] sm:$0xff]
    %v401 = vld [vmem:[#allocation8 + $0x28] sm:$0xff]
    %v402 = vld [vmem:[#allocation8 + $0x30] sm:$0xff]
    %v403 = vld [vmem:[#allocation8 + $0x38] sm:$0xff]
    %v404 = vld [vmem:[#allocation8 + $0x40] sm:$0xff]
    %v405 = vld [vmem:[#allocation8 + $0x48] sm:$0xff]
    %v406 = vld [vmem:[#allocation8 + $0x50] sm:$0xff]
    %v407 = vld [vmem:[#allocation8 + $0x58] sm:$0xff]
    %v408 = vld [vmem:[#allocation8 + $0x60] sm:$0xff]
    %v409 = vld [vmem:[#allocation8 + $0x68] sm:$0xff]
    %v410 = vld [vmem:[#allocation8 + $0x70] sm:$0xff]
    %v411 = vld [vmem:[#allocation8 + $0x78] sm:$0xff]
    %v412 = vld [vmem:[#allocation8 + $0x80] sm:$0xff]
    %v413 = vld [vmem:[#allocation8 + $0x88] sm:$0xff]
    %v414 = vld [vmem:[#allocation8 + $0x90] sm:$0xff]
    %v415 = vld [vmem:[#allocation8 + $0x98] sm:$0xff]
    %v416 = vld [vmem:[#allocation8 + $0xa0] sm:$0xff]
    %v417 = vld [vmem:[#allocation8 + $0xa8] sm:$0xff]
    %v418 = vld [vmem:[#allocation8 + $0xb0] sm:$0xff]
    %v419 = vld [vmem:[#allocation8 + $0xb8] sm:$0xff]
    %v420 = vld [vmem:[#allocation8 + $0xc0] sm:$0xff]
    %v421 = vld [vmem:[#allocation8 + $0xc8] sm:$0xff]
    %v422 = vld [vmem:[#allocation8 + $0xd0] sm:$0xff]
    %v423 = vld [vmem:[#allocation8 + $0xd8] sm:$0xff]
    %v424 = vld [vmem:[#allocation8 + $0xe0] sm:$0xff]
    %v425 = vld [vmem:[#allocation8 + $0xe8] sm:$0xff]
    %v426 = vld [vmem:[#allocation8 + $0xf0] sm:$0xff]
    %v427 = vld [vmem:[#allocation8 + $0xf8] sm:$0xff]
    %v428 = vld [vmem:[#allocation8 + $0x100] sm:$0xff]
    %v429 = vld [vmem:[#allocation8 + $0x108] sm:$0xff]
    %v430 = vld [vmem:[#allocation8 + $0x110] sm:$0xff]
    %v431 = vld [vmem:[#allocation8 + $0x118] sm:$0xff]
    %v432 = vld [vmem:[#allocation8 + $0x120] sm:$0xff]
    %v433 = vld [vmem:[#allocation8 + $0x128] sm:$0xff]
    %v434 = vld [vmem:[#allocation8 + $0x130] sm:$0xff]
    %v435 = vld [vmem:[#allocation8 + $0x138] sm:$0xff]
    %v436 = vld [vmem:[#allocation8 + $0x140] sm:$0xff]
    %v437 = vld [vmem:[#allocation8 + $0x148] sm:$0xff]
    %v438 = vld [vmem:[#allocation8 + $0x150] sm:$0xff]
    %v439 = vld [vmem:[#allocation8 + $0x158] sm:$0xff]
    %v440 = vld [vmem:[#allocation8 + $0x160] sm:$0xff]
    %v441 = vld [vmem:[#allocation8 + $0x168] sm:$0xff]
    %v442 = vld [vmem:[#allocation8 + $0x170] sm:$0xff]
    %v443 = vld [vmem:[#allocation8 + $0x178] sm:$0xff]
    %v444 = vld [vmem:[#allocation8 + $0x180] sm:$0xff]
    %v445 = vld [vmem:[#allocation8 + $0x188] sm:$0xff]
    %v446 = vld [vmem:[#allocation8 + $0x190] sm:$0xff]
    %v447 = vld [vmem:[#allocation8 + $0x198] sm:$0xff]
    %v448 = vld [vmem:[#allocation8 + $0x1a0] sm:$0xff]
    %v449 = vld [vmem:[#allocation8 + $0x1a8] sm:$0xff]
    %v450 = vld [vmem:[#allocation8 + $0x1b0] sm:$0xff]
    %v451 = vld [vmem:[#allocation8 + $0x1b8] sm:$0xff]
    %v452 = vld [vmem:[#allocation8 + $0x1c0] sm:$0xff]
    %v453 = vld [vmem:[#allocation8 + $0x1c8] sm:$0xff]
    %v454 = vld [vmem:[#allocation8 + $0x1d0] sm:$0xff]
    %v455 = vld [vmem:[#allocation8 + $0x1d8] sm:$0xff]
    %v456 = vld [vmem:[#allocation8 + $0x1e0] sm:$0xff]
    %v457 = vld [vmem:[#allocation8 + $0x1e8] sm:$0xff]
    %v458 = vld [vmem:[#allocation8 + $0x1f0] sm:$0xff]
    %v459 = vld [vmem:[#allocation8 + $0x1f8] sm:$0xff]
    %v460 = vld [vmem:[#allocation8 + $0x200] sm:$0xff]
    %v461 = vld [vmem:[#allocation8 + $0x208] sm:$0xff]
    %v462 = vld [vmem:[#allocation8 + $0x210] sm:$0xff]
    %v463 = vld [vmem:[#allocation8 + $0x218] sm:$0xff]
    %v464 = vld [vmem:[#allocation8 + $0x220] sm:$0xff]
    %v465 = vld [vmem:[#allocation8 + $0x228] sm:$0xff]
    %v466 = vld [vmem:[#allocation8 + $0x230] sm:$0xff]
    %v467 = vld [vmem:[#allocation8 + $0x238] sm:$0xff]
    %v468 = vld [vmem:[#allocation8 + $0x240] sm:$0xff]
    %v469 = vld [vmem:[#allocation8 + $0x248] sm:$0xff]
    %v470 = vld [vmem:[#allocation8 + $0x250] sm:$0xff]
    %v471 = vld [vmem:[#allocation8 + $0x258] sm:$0xff]
    %v472 = vld [vmem:[#allocation8 + $0x260] sm:$0xff]
    %v473 = vld [vmem:[#allocation8 + $0x268] sm:$0xff]
    %v474 = vld [vmem:[#allocation8 + $0x270] sm:$0xff]
    %v475 = vld [vmem:[#allocation8 + $0x278] sm:$0xff]
    %v476 = vld [vmem:[#allocation8 + $0x280] sm:$0xff]
    %v477 = vld [vmem:[#allocation8 + $0x288] sm:$0xff]
    %v478 = vld [vmem:[#allocation8 + $0x290] sm:$0xff]
    %v479 = vld [vmem:[#allocation8 + $0x298] sm:$0xff]
    %v480 = vld [vmem:[#allocation8 + $0x2a0] sm:$0xff]
    %v481 = vld [vmem:[#allocation8 + $0x2a8] sm:$0xff]
    %v482 = vld [vmem:[#allocation8 + $0x2b0] sm:$0xff]
    %v483 = vld [vmem:[#allocation8 + $0x2b8] sm:$0xff]
    %v484 = vld [vmem:[#allocation8 + $0x2c0] sm:$0xff]
    %v485 = vld [vmem:[#allocation8 + $0x2c8] sm:$0xff]
    %v486 = vld [vmem:[#allocation8 + $0x2d0] sm:$0xff]
    %v487 = vld [vmem:[#allocation8 + $0x2d8] sm:$0xff]
    %v488 = vld [vmem:[#allocation8 + $0x2e0] sm:$0xff]
    %v489 = vld [vmem:[#allocation8 + $0x2e8] sm:$0xff]
    %v490 = vld [vmem:[#allocation8 + $0x2f0] sm:$0xff]
    %v491 = vld [vmem:[#allocation8 + $0x2f8] sm:$0xff]
    %v492 = vld [vmem:[#allocation8 + $0x300] sm:$0xff]
    %v493 = vld [vmem:[#allocation8 + $0x308] sm:$0xff]
    %v494 = vld [vmem:[#allocation8 + $0x310] sm:$0xff]
    %v495 = vld [vmem:[#allocation8 + $0x318] sm:$0xff]
    %v496 = vld [vmem:[#allocation8 + $0x320] sm:$0xff]
    %v497 = vld [vmem:[#allocation8 + $0x328] sm:$0xff]
    %v498 = vld [vmem:[#allocation8 + $0x330] sm:$0xff]
    %v499 = vld [vmem:[#allocation8 + $0x338] sm:$0xff]
    %v500 = vld [vmem:[#allocation8 + $0x340] sm:$0xff]
    %v501 = vld [vmem:[#allocation8 + $0x348] sm:$0xff]
    %v502 = vld [vmem:[#allocation8 + $0x350] sm:$0xff]
    %v503 = vld [vmem:[#allocation8 + $0x358] sm:$0xff]
    %v504 = vld [vmem:[#allocation8 + $0x360] sm:$0xff]
    %v505 = vld [vmem:[#allocation8 + $0x368] sm:$0xff]
    %v506 = vld [vmem:[#allocation8 + $0x370] sm:$0xff]
    %v507 = vld [vmem:[#allocation8 + $0x378] sm:$0xff]
    %v508 = vld [vmem:[#allocation8 + $0x380] sm:$0xff]
    %v509 = vld [vmem:[#allocation8 + $0x388] sm:$0xff]
    %v510 = vld [vmem:[#allocation8 + $0x390] sm:$0xff]
    %v511 = vld [vmem:[#allocation8 + $0x398] sm:$0xff]
    %v512 = vld [vmem:[#allocation8 + $0x3a0] sm:$0xff]
    %v513 = vld [vmem:[#allocation8 + $0x3a8] sm:$0xff]
    %v514 = vld [vmem:[#allocation8 + $0x3b0] sm:$0xff]
    %v515 = vld [vmem:[#allocation8 + $0x3b8] sm:$0xff]
    %v516 = vld [vmem:[#allocation8 + $0x3c0] sm:$0xff]
    %v517 = vld [vmem:[#allocation8 + $0x3c8] sm:$0xff]
    %v518 = vld [vmem:[#allocation8 + $0x3d0] sm:$0xff]
    %v519 = vld [vmem:[#allocation8 + $0x3d8] sm:$0xff]
    %v520 = vld [vmem:[#allocation8 + $0x3e0] sm:$0xff]
    %v521 = vld [vmem:[#allocation8 + $0x3e8] sm:$0xff]
    %v522 = vld [vmem:[#allocation8 + $0x3f0] sm:$0xff]
    %v523 = vld [vmem:[#allocation8 + $0x3f8] sm:$0xff]
    %v524 = vld [vmem:[#allocation8 + $0x400] sm:$0xff]
    %v525 = vld [vmem:[#allocation8 + $0x408] sm:$0xff]
    %v526 = vld [vmem:[#allocation8 + $0x410] sm:$0xff]
    %v527 = vld [vmem:[#allocation8 + $0x418] sm:$0xff]
    %v528 = vld [vmem:[#allocation8 + $0x420] sm:$0xff]
    %v529 = vld [vmem:[#allocation8 + $0x428] sm:$0xff]
    %v530 = vld [vmem:[#allocation8 + $0x430] sm:$0xff]
    %v531 = vld [vmem:[#allocation8 + $0x438] sm:$0xff]
    %v532 = vld [vmem:[#allocation8 + $0x440] sm:$0xff]
    %v533 = vld [vmem:[#allocation8 + $0x448] sm:$0xff]
    %v534 = vld [vmem:[#allocation8 + $0x450] sm:$0xff]
    %v535 = vld [vmem:[#allocation8 + $0x458] sm:$0xff]
    %v536 = vld [vmem:[#allocation8 + $0x460] sm:$0xff]
    %v537 = vld [vmem:[#allocation8 + $0x468] sm:$0xff]
    %v538 = vld [vmem:[#allocation8 + $0x470] sm:$0xff]
    %v539 = vld [vmem:[#allocation8 + $0x478] sm:$0xff]
    %v540 = vld [vmem:[#allocation8 + $0x480] sm:$0xff]
    %v541 = vld [vmem:[#allocation8 + $0x488] sm:$0xff]
    %v542 = vld [vmem:[#allocation8 + $0x490] sm:$0xff]
    %v543 = vld [vmem:[#allocation8 + $0x498] sm:$0xff]
    %v544 = vld [vmem:[#allocation8 + $0x4a0] sm:$0xff]
    %v545 = vld [vmem:[#allocation8 + $0x4a8] sm:$0xff]
    %v546 = vld [vmem:[#allocation8 + $0x4b0] sm:$0xff]
    %v547 = vld [vmem:[#allocation8 + $0x4b8] sm:$0xff]
    %v548 = vld [vmem:[#allocation8 + $0x4c0] sm:$0xff]
    %v549 = vld [vmem:[#allocation8 + $0x4c8] sm:$0xff]
    %v550 = vld [vmem:[#allocation8 + $0x4d0] sm:$0xff]
    %v551 = vld [vmem:[#allocation8 + $0x4d8] sm:$0xff]
    %v552 = vld [vmem:[#allocation8 + $0x4e0] sm:$0xff]
    %v553 = vld [vmem:[#allocation8 + $0x4e8] sm:$0xff]
    %v554 = vld [vmem:[#allocation8 + $0x4f0] sm:$0xff]
    %v555 = vld [vmem:[#allocation8 + $0x4f8] sm:$0xff]
    %v556 = vld [vmem:[#allocation8 + $0x500] sm:$0xff]
    %v557 = vld [vmem:[#allocation8 + $0x508] sm:$0xff]
    %v558 = vld [vmem:[#allocation8 + $0x510] sm:$0xff]
    %v559 = vld [vmem:[#allocation8 + $0x518] sm:$0xff]
    %v560 = vld [vmem:[#allocation8 + $0x520] sm:$0xff]
    %v561 = vld [vmem:[#allocation8 + $0x528] sm:$0xff]
    %v562 = vld [vmem:[#allocation8 + $0x530] sm:$0xff]
    %v563 = vld [vmem:[#allocation8 + $0x538] sm:$0xff]
    %v564 = vld [vmem:[#allocation8 + $0x540] sm:$0xff]
    %v565 = vld [vmem:[#allocation8 + $0x548] sm:$0xff]
    %v566 = vld [vmem:[#allocation8 + $0x550] sm:$0xff]
    %v567 = vld [vmem:[#allocation8 + $0x558] sm:$0xff]
    %v568 = vld [vmem:[#allocation8 + $0x560] sm:$0xff]
    %v569 = vld [vmem:[#allocation8 + $0x568] sm:$0xff]
    %v570 = vld [vmem:[#allocation8 + $0x570] sm:$0xff]
    %v571 = vld [vmem:[#allocation8 + $0x578] sm:$0xff]
    %v572 = vld [vmem:[#allocation8 + $0x580] sm:$0xff]
    %v573 = vld [vmem:[#allocation8 + $0x588] sm:$0xff]
    %v574 = vld [vmem:[#allocation8 + $0x590] sm:$0xff]
    %v575 = vld [vmem:[#allocation8 + $0x598] sm:$0xff]
    %v576 = vld [vmem:[#allocation8 + $0x5a0] sm:$0xff]
    %v577 = vld [vmem:[#allocation8 + $0x5a8] sm:$0xff]
    %v578 = vld [vmem:[#allocation8 + $0x5b0] sm:$0xff]
    %v579 = vld [vmem:[#allocation8 + $0x5b8] sm:$0xff]
    %v580 = vld [vmem:[#allocation8 + $0x5c0] sm:$0xff]
    %v581 = vld [vmem:[#allocation8 + $0x5c8] sm:$0xff]
    %v582 = vld [vmem:[#allocation8 + $0x5d0] sm:$0xff]
    %v583 = vld [vmem:[#allocation8 + $0x5d8] sm:$0xff]
    %v584 = vld [vmem:[#allocation8 + $0x5e0] sm:$0xff]
    %v585 = vld [vmem:[#allocation8 + $0x5e8] sm:$0xff]
    %v586 = vld [vmem:[#allocation8 + $0x5f0] sm:$0xff]
    %v587 = vld [vmem:[#allocation8 + $0x5f8] sm:$0xff]
    %v588 = vld [vmem:[%s4] sm:$0x7]
    %v590 = vlaneseq
    %v591 = vshrl.u32 %v590, 7
    %v592 = vsub.s32 0, %v591
    %v593 = vrot.slane %v588, %v592
    %v594 = vlaneseq
    %v595 = vshrl.u32 %v594, 7
    %v596 = vsub.s32 1, %v595
    %v597 = vrot.slane %v588, %v596
    %v598 = vlaneseq
    %v599 = vshrl.u32 %v598, 7
    %v600 = vsub.s32 2, %v599
    %v601 = vrot.slane %v588, %v600
    %v605 = vand.u32 %v442, 4294901760
    %606 = vmatprep.subr.mxu0 %v605
    %v607 = vand.u32 %v441, 4294901760
    %608 = vmatpush1.msra.mxu0 %v607
    %v609 = vand.u32 %v439, 4294901760
    %610 = vmatprep.subr.mxu0 %v609
    %v611 = vand.u32 %v438, 4294901760
    %612 = vmatpush1.msra.mxu0 %v611
    %v613 = vand.u32 %v436, 4294901760
    %614 = vmatprep.subr.mxu0 %v613
    %v615 = vand.u32 %v435, 4294901760
    %616 = vmatpush1.msra.mxu0 %v615
    %v617 = vand.u32 %v433, 4294901760
    %618 = vmatprep.subr.mxu0 %v617
    %v619 = vand.u32 %v432, 4294901760
    %620 = vmatpush1.msra.mxu0 %v619
    %v621 = vand.u32 %v430, 4294901760
    %622 = vmatprep.subr.mxu0 %v621
    %v623 = vand.u32 %v429, 4294901760
    %624 = vmatpush1.msra.mxu0 %v623
    %v625 = vand.u32 %v427, 4294901760
    %626 = vmatprep.subr.mxu0 %v625
    %v627 = vand.u32 %v426, 4294901760
    %628 = vmatpush1.msra.mxu0 %v627
    %v629 = vand.u32 %v424, 4294901760
    %630 = vmatprep.subr.mxu0 %v629
    %v631 = vand.u32 %v423, 4294901760
    %632 = vmatpush1.msra.mxu0 %v631
    %v633 = vand.u32 %v421, 4294901760
    %634 = vmatprep.subr.mxu0 %v633
    %v635 = vand.u32 %v420, 4294901760
    %636 = vmatpush1.msra.mxu0 %v635
    %v637 = vand.u32 %v418, 4294901760
    %638 = vmatprep.subr.mxu0 %v637
    %v639 = vand.u32 %v417, 4294901760
    %640 = vmatpush1.msra.mxu0 %v639
    %v641 = vand.u32 %v415, 4294901760
    %642 = vmatprep.subr.mxu0 %v641
    %v643 = vand.u32 %v414, 4294901760
    %644 = vmatpush1.msra.mxu0 %v643
    %v645 = vand.u32 %v412, 4294901760
    %646 = vmatprep.subr.mxu0 %v645
    %v647 = vand.u32 %v411, 4294901760
    %648 = vmatpush1.msra.mxu0 %v647
    %v649 = vand.u32 %v409, 4294901760
    %650 = vmatprep.subr.mxu0 %v649
    %v651 = vand.u32 %v408, 4294901760
    %652 = vmatpush1.msra.mxu0 %v651
    %v653 = vand.u32 %v406, 4294901760
    %654 = vmatprep.subr.mxu0 %v653
    %v655 = vand.u32 %v405, 4294901760
    %656 = vmatpush1.msra.mxu0 %v655
    %v657 = vand.u32 %v403, 4294901760
    %658 = vmatprep.subr.mxu0 %v657
    %v659 = vand.u32 %v402, 4294901760
    %660 = vmatpush1.msra.mxu0 %v659
    %v661 = vand.u32 %v400, 4294901760
    %662 = vmatprep.subr.mxu0 %v661
    %v663 = vand.u32 %v399, 4294901760
    %664 = vmatpush1.msra.mxu0 %v663
    %v665 = vand.u32 %v397, 4294901760
    %666 = vmatprep.subr.mxu0 %v665
    %v667 = vand.u32 %v396, 4294901760
    %668 = vmatpush1.msra.mxu0 %v667
    %v669 = vand.u32 %v490, 4294901760
    %670 = vmatprep.subr.mxu0 %v669
    %v671 = vand.u32 %v489, 4294901760
    %672 = vmatpush2.msra.mxu0 %v671
    %v673 = vand.u32 %v487, 4294901760
    %674 = vmatprep.subr.mxu0 %v673
    %v675 = vand.u32 %v486, 4294901760
    %676 = vmatpush2.msra.mxu0 %v675
    %v677 = vand.u32 %v484, 4294901760
    %678 = vmatprep.subr.mxu0 %v677
    %v679 = vand.u32 %v483, 4294901760
    %680 = vmatpush2.msra.mxu0 %v679
    %v681 = vand.u32 %v481, 4294901760
    %682 = vmatprep.subr.mxu0 %v681
    %v683 = vand.u32 %v480, 4294901760
    %684 = vmatpush2.msra.mxu0 %v683
    %v685 = vand.u32 %v478, 4294901760
    %686 = vmatprep.subr.mxu0 %v685
    %v687 = vand.u32 %v477, 4294901760
    %688 = vmatpush2.msra.mxu0 %v687
    %v689 = vand.u32 %v475, 4294901760
    %690 = vmatprep.subr.mxu0 %v689
    %v691 = vand.u32 %v474, 4294901760
    %692 = vmatpush2.msra.mxu0 %v691
    %v693 = vand.u32 %v472, 4294901760
    %694 = vmatprep.subr.mxu0 %v693
    %v695 = vand.u32 %v471, 4294901760
    %696 = vmatpush2.msra.mxu0 %v695
    %v697 = vand.u32 %v469, 4294901760
    %698 = vmatprep.subr.mxu0 %v697
    %v699 = vand.u32 %v468, 4294901760
    %700 = vmatpush2.msra.mxu0 %v699
    %v701 = vand.u32 %v466, 4294901760
    %702 = vmatprep.subr.mxu0 %v701
    %v703 = vand.u32 %v465, 4294901760
    %704 = vmatpush2.msra.mxu0 %v703
    %v705 = vand.u32 %v463, 4294901760
    %706 = vmatprep.subr.mxu0 %v705
    %v707 = vand.u32 %v462, 4294901760
    %708 = vmatpush2.msra.mxu0 %v707
    %v709 = vand.u32 %v460, 4294901760
    %710 = vmatprep.subr.mxu0 %v709
    %v711 = vand.u32 %v459, 4294901760
    %712 = vmatpush2.msra.mxu0 %v711
    %v713 = vand.u32 %v457, 4294901760
    %714 = vmatprep.subr.mxu0 %v713
    %v715 = vand.u32 %v456, 4294901760
    %716 = vmatpush2.msra.mxu0 %v715
    %v717 = vand.u32 %v454, 4294901760
    %718 = vmatprep.subr.mxu0 %v717
    %v719 = vand.u32 %v453, 4294901760
    %720 = vmatpush2.msra.mxu0 %v719
    %v721 = vand.u32 %v451, 4294901760
    %722 = vmatprep.subr.mxu0 %v721
    %v723 = vand.u32 %v450, 4294901760
    %724 = vmatpush2.msra.mxu0 %v723
    %v725 = vand.u32 %v448, 4294901760
    %726 = vmatprep.subr.mxu0 %v725
    %v727 = vand.u32 %v447, 4294901760
    %728 = vmatpush2.msra.mxu0 %v727
    %v729 = vand.u32 %v445, 4294901760
    %730 = vmatprep.subr.mxu0 %v729
    %v731 = vand.u32 %v444, 4294901760
    %732 = vmatpush2.msra.mxu0 %v731
    %v733 = vand.u32 %v393, 4294901760
    %v734 = vsub.f32 %v393, %v733
    %v735 = vand.u32 %v734, 4294901760
    %v736 = vsub.f32 %v734, %v735
    %v737 = vand.u32 %v736, 4294901760
    %738 = vmatprep.mubr.f32.mxu0 %v737
    %v739 = vand.u32 %v392, 4294901760
    %v740 = vsub.f32 %v392, %v739
    %v741 = vand.u32 %v740, 4294901760
    %v742 = vsub.f32 %v740, %v741
    %v743 = vand.u32 %v742, 4294901760
    %744 = vmatmul.mubr.f32.gmra.mxu0 %v743
    %v745 = vpop.f32.mrf.mxu0
    %v746 = vadd.f32 %v593, %v745
    %v747 = vpop.f32.mrf.mxu0
    %v748 = vadd.f32 %v597, %v747
    %749 = vdwg.mxu0
    %v750 = vand.u32 %v442, 4294901760
    %v751 = vsub.f32 %v442, %v750
    %v752 = vand.u32 %v751, 4294901760
    %v753 = vsub.f32 %v751, %v752
    %v754 = vand.u32 %v753, 4294901760
    %755 = vmatprep.subr.mxu0 %v754
    %v756 = vand.u32 %v441, 4294901760
    %v757 = vsub.f32 %v441, %v756
    %v758 = vand.u32 %v757, 4294901760
    %v759 = vsub.f32 %v757, %v758
    %v760 = vand.u32 %v759, 4294901760
    %761 = vmatpush1.msra.mxu0 %v760
    %v762 = vand.u32 %v439, 4294901760
    %v763 = vsub.f32 %v439, %v762
    %v764 = vand.u32 %v763, 4294901760
    %v765 = vsub.f32 %v763, %v764
    %v766 = vand.u32 %v765, 4294901760
    %767 = vmatprep.subr.mxu0 %v766
    %v768 = vand.u32 %v438, 4294901760
    %v769 = vsub.f32 %v438, %v768
    %v770 = vand.u32 %v769, 4294901760
    %v771 = vsub.f32 %v769, %v770
    %v772 = vand.u32 %v771, 4294901760
    %773 = vmatpush1.msra.mxu0 %v772
    %v774 = vand.u32 %v436, 4294901760
    %v775 = vsub.f32 %v436, %v774
    %v776 = vand.u32 %v775, 4294901760
    %v777 = vsub.f32 %v775, %v776
    %v778 = vand.u32 %v777, 4294901760
    %779 = vmatprep.subr.mxu0 %v778
    %v780 = vand.u32 %v435, 4294901760
    %v781 = vsub.f32 %v435, %v780
    %v782 = vand.u32 %v781, 4294901760
    %v783 = vsub.f32 %v781, %v782
    %v784 = vand.u32 %v783, 4294901760
    %785 = vmatpush1.msra.mxu0 %v784
    %v786 = vand.u32 %v433, 4294901760
    %v787 = vsub.f32 %v433, %v786
    %v788 = vand.u32 %v787, 4294901760
    %v789 = vsub.f32 %v787, %v788
    %v790 = vand.u32 %v789, 4294901760
    %791 = vmatprep.subr.mxu0 %v790
    %v792 = vand.u32 %v432, 4294901760
    %v793 = vsub.f32 %v432, %v792
    %v794 = vand.u32 %v793, 4294901760
    %v795 = vsub.f32 %v793, %v794
    %v796 = vand.u32 %v795, 4294901760
    %797 = vmatpush1.msra.mxu0 %v796
    %v798 = vand.u32 %v430, 4294901760
    %v799 = vsub.f32 %v430, %v798
    %v800 = vand.u32 %v799, 4294901760
    %v801 = vsub.f32 %v799, %v800
    %v802 = vand.u32 %v801, 4294901760
    %803 = vmatprep.subr.mxu0 %v802
    %v804 = vand.u32 %v429, 4294901760
    %v805 = vsub.f32 %v429, %v804
    %v806 = vand.u32 %v805, 4294901760
    %v807 = vsub.f32 %v805, %v806
    %v808 = vand.u32 %v807, 4294901760
    %809 = vmatpush1.msra.mxu0 %v808
    %v810 = vand.u32 %v427, 4294901760
    %v811 = vsub.f32 %v427, %v810
    %v812 = vand.u32 %v811, 4294901760
    %v813 = vsub.f32 %v811, %v812
    %v814 = vand.u32 %v813, 4294901760
    %815 = vmatprep.subr.mxu0 %v814
    %v816 = vand.u32 %v426, 4294901760
    %v817 = vsub.f32 %v426, %v816
    %v818 = vand.u32 %v817, 4294901760
    %v819 = vsub.f32 %v817, %v818
    %v820 = vand.u32 %v819, 4294901760
    %821 = vmatpush1.msra.mxu0 %v820
    %v822 = vand.u32 %v424, 4294901760
    %v823 = vsub.f32 %v424, %v822
    %v824 = vand.u32 %v823, 4294901760
    %v825 = vsub.f32 %v823, %v824
    %v826 = vand.u32 %v825, 4294901760
    %827 = vmatprep.subr.mxu0 %v826
    %v828 = vand.u32 %v423, 4294901760
    %v829 = vsub.f32 %v423, %v828
    %v830 = vand.u32 %v829, 4294901760
    %v831 = vsub.f32 %v829, %v830
    %v832 = vand.u32 %v831, 4294901760
    %833 = vmatpush1.msra.mxu0 %v832
    %v834 = vand.u32 %v421, 4294901760
    %v835 = vsub.f32 %v421, %v834
    %v836 = vand.u32 %v835, 4294901760
    %v837 = vsub.f32 %v835, %v836
    %v838 = vand.u32 %v837, 4294901760
    %839 = vmatprep.subr.mxu0 %v838
    %v840 = vand.u32 %v420, 4294901760
    %v841 = vsub.f32 %v420, %v840
    %v842 = vand.u32 %v841, 4294901760
    %v843 = vsub.f32 %v841, %v842
    %v844 = vand.u32 %v843, 4294901760
    %845 = vmatpush1.msra.mxu0 %v844
    %v846 = vand.u32 %v418, 4294901760
    %v847 = vsub.f32 %v418, %v846
    %v848 = vand.u32 %v847, 4294901760
    %v849 = vsub.f32 %v847, %v848
    %v850 = vand.u32 %v849, 4294901760
    %851 = vmatprep.subr.mxu0 %v850
    %v852 = vand.u32 %v417, 4294901760
    %v853 = vsub.f32 %v417, %v852
    %v854 = vand.u32 %v853, 4294901760
    %v855 = vsub.f32 %v853, %v854
    %v856 = vand.u32 %v855, 4294901760
    %857 = vmatpush1.msra.mxu0 %v856
    %v858 = vand.u32 %v415, 4294901760
    %v859 = vsub.f32 %v415, %v858
    %v860 = vand.u32 %v859, 4294901760
    %v861 = vsub.f32 %v859, %v860
    %v862 = vand.u32 %v861, 4294901760
    %863 = vmatprep.subr.mxu0 %v862
    %v864 = vand.u32 %v414, 4294901760
    %v865 = vsub.f32 %v414, %v864
    %v866 = vand.u32 %v865, 4294901760
    %v867 = vsub.f32 %v865, %v866
    %v868 = vand.u32 %v867, 4294901760
    %869 = vmatpush1.msra.mxu0 %v868
    %v870 = vand.u32 %v412, 4294901760
    %v871 = vsub.f32 %v412, %v870
    %v872 = vand.u32 %v871, 4294901760
    %v873 = vsub.f32 %v871, %v872
    %v874 = vand.u32 %v873, 4294901760
    %875 = vmatprep.subr.mxu0 %v874
    %v876 = vand.u32 %v411, 4294901760
    %v877 = vsub.f32 %v411, %v876
    %v878 = vand.u32 %v877, 4294901760
    %v879 = vsub.f32 %v877, %v878
    %v880 = vand.u32 %v879, 4294901760
    %881 = vmatpush1.msra.mxu0 %v880
    %v882 = vand.u32 %v409, 4294901760
    %v883 = vsub.f32 %v409, %v882
    %v884 = vand.u32 %v883, 4294901760
    %v885 = vsub.f32 %v883, %v884
    %v886 = vand.u32 %v885, 4294901760
    %887 = vmatprep.subr.mxu0 %v886
    %v888 = vand.u32 %v408, 4294901760
    %v889 = vsub.f32 %v408, %v888
    %v890 = vand.u32 %v889, 4294901760
    %v891 = vsub.f32 %v889, %v890
    %v892 = vand.u32 %v891, 4294901760
    %893 = vmatpush1.msra.mxu0 %v892
    %v894 = vand.u32 %v406, 4294901760
    %v895 = vsub.f32 %v406, %v894
    %v896 = vand.u32 %v895, 4294901760
    %v897 = vsub.f32 %v895, %v896
    %v898 = vand.u32 %v897, 4294901760
    %899 = vmatprep.subr.mxu0 %v898
    %v900 = vand.u32 %v405, 4294901760
    %v901 = vsub.f32 %v405, %v900
    %v902 = vand.u32 %v901, 4294901760
    %v903 = vsub.f32 %v901, %v902
    %v904 = vand.u32 %v903, 4294901760
    %905 = vmatpush1.msra.mxu0 %v904
    %v906 = vand.u32 %v403, 4294901760
    %v907 = vsub.f32 %v403, %v906
    %v908 = vand.u32 %v907, 4294901760
    %v909 = vsub.f32 %v907, %v908
    %v910 = vand.u32 %v909, 4294901760
    %911 = vmatprep.subr.mxu0 %v910
    %v912 = vand.u32 %v402, 4294901760
    %v913 = vsub.f32 %v402, %v912
    %v914 = vand.u32 %v913, 4294901760
    %v915 = vsub.f32 %v913, %v914
    %v916 = vand.u32 %v915, 4294901760
    %917 = vmatpush1.msra.mxu0 %v916
    %v918 = vand.u32 %v400, 4294901760
    %v919 = vsub.f32 %v400, %v918
    %v920 = vand.u32 %v919, 4294901760
    %v921 = vsub.f32 %v919, %v920
    %v922 = vand.u32 %v921, 4294901760
    %923 = vmatprep.subr.mxu0 %v922
    %v924 = vand.u32 %v399, 4294901760
    %v925 = vsub.f32 %v399, %v924
    %v926 = vand.u32 %v925, 4294901760
    %v927 = vsub.f32 %v925, %v926
    %v928 = vand.u32 %v927, 4294901760
    %929 = vmatpush1.msra.mxu0 %v928
    %v930 = vand.u32 %v397, 4294901760
    %v931 = vsub.f32 %v397, %v930
    %v932 = vand.u32 %v931, 4294901760
    %v933 = vsub.f32 %v931, %v932
    %v934 = vand.u32 %v933, 4294901760
    %935 = vmatprep.subr.mxu0 %v934
    %v936 = vand.u32 %v396, 4294901760
    %v937 = vsub.f32 %v396, %v936
    %v938 = vand.u32 %v937, 4294901760
    %v939 = vsub.f32 %v937, %v938
    %v940 = vand.u32 %v939, 4294901760
    %941 = vmatpush1.msra.mxu0 %v940
    %v942 = vand.u32 %v490, 4294901760
    %v943 = vsub.f32 %v490, %v942
    %v944 = vand.u32 %v943, 4294901760
    %v945 = vsub.f32 %v943, %v944
    %v946 = vand.u32 %v945, 4294901760
    %947 = vmatprep.subr.mxu0 %v946
    %v948 = vand.u32 %v489, 4294901760
    %v949 = vsub.f32 %v489, %v948
    %v950 = vand.u32 %v949, 4294901760
    %v951 = vsub.f32 %v949, %v950
    %v952 = vand.u32 %v951, 4294901760
    %953 = vmatpush2.msra.mxu0 %v952
    %v954 = vand.u32 %v487, 4294901760
    %v955 = vsub.f32 %v487, %v954
    %v956 = vand.u32 %v955, 4294901760
    %v957 = vsub.f32 %v955, %v956
    %v958 = vand.u32 %v957, 4294901760
    %959 = vmatprep.subr.mxu0 %v958
    %v960 = vand.u32 %v486, 4294901760
    %v961 = vsub.f32 %v486, %v960
    %v962 = vand.u32 %v961, 4294901760
    %v963 = vsub.f32 %v961, %v962
    %v964 = vand.u32 %v963, 4294901760
    %965 = vmatpush2.msra.mxu0 %v964
    %v966 = vand.u32 %v484, 4294901760
    %v967 = vsub.f32 %v484, %v966
    %v968 = vand.u32 %v967, 4294901760
    %v969 = vsub.f32 %v967, %v968
    %v970 = vand.u32 %v969, 4294901760
    %971 = vmatprep.subr.mxu0 %v970
    %v972 = vand.u32 %v483, 4294901760
    %v973 = vsub.f32 %v483, %v972
    %v974 = vand.u32 %v973, 4294901760
    %v975 = vsub.f32 %v973, %v974
    %v976 = vand.u32 %v975, 4294901760
    %977 = vmatpush2.msra.mxu0 %v976
    %v978 = vand.u32 %v481, 4294901760
    %v979 = vsub.f32 %v481, %v978
    %v980 = vand.u32 %v979, 4294901760
    %v981 = vsub.f32 %v979, %v980
    %v982 = vand.u32 %v981, 4294901760
    %983 = vmatprep.subr.mxu0 %v982
    %v984 = vand.u32 %v480, 4294901760
    %v985 = vsub.f32 %v480, %v984
    %v986 = vand.u32 %v985, 4294901760
    %v987 = vsub.f32 %v985, %v986
    %v988 = vand.u32 %v987, 4294901760
    %989 = vmatpush2.msra.mxu0 %v988
    %v990 = vand.u32 %v478, 4294901760
    %v991 = vsub.f32 %v478, %v990
    %v992 = vand.u32 %v991, 4294901760
    %v993 = vsub.f32 %v991, %v992
    %v994 = vand.u32 %v993, 4294901760
    %995 = vmatprep.subr.mxu0 %v994
    %v996 = vand.u32 %v477, 4294901760
    %v997 = vsub.f32 %v477, %v996
    %v998 = vand.u32 %v997, 4294901760
    %v999 = vsub.f32 %v997, %v998
    %v1000 = vand.u32 %v999, 4294901760
    %1001 = vmatpush2.msra.mxu0 %v1000
    %v1002 = vand.u32 %v475, 4294901760
    %v1003 = vsub.f32 %v475, %v1002
    %v1004 = vand.u32 %v1003, 4294901760
    %v1005 = vsub.f32 %v1003, %v1004
    %v1006 = vand.u32 %v1005, 4294901760
    %1007 = vmatprep.subr.mxu0 %v1006
    %v1008 = vand.u32 %v474, 4294901760
    %v1009 = vsub.f32 %v474, %v1008
    %v1010 = vand.u32 %v1009, 4294901760
    %v1011 = vsub.f32 %v1009, %v1010
    %v1012 = vand.u32 %v1011, 4294901760
    %1013 = vmatpush2.msra.mxu0 %v1012
    %v1014 = vand.u32 %v472, 4294901760
    %v1015 = vsub.f32 %v472, %v1014
    %v1016 = vand.u32 %v1015, 4294901760
    %v1017 = vsub.f32 %v1015, %v1016
    %v1018 = vand.u32 %v1017, 4294901760
    %1019 = vmatprep.subr.mxu0 %v1018
    %v1020 = vand.u32 %v471, 4294901760
    %v1021 = vsub.f32 %v471, %v1020
    %v1022 = vand.u32 %v1021, 4294901760
    %v1023 = vsub.f32 %v1021, %v1022
    %v1024 = vand.u32 %v1023, 4294901760
    %1025 = vmatpush2.msra.mxu0 %v1024
    %v1026 = vand.u32 %v469, 4294901760
    %v1027 = vsub.f32 %v469, %v1026
    %v1028 = vand.u32 %v1027, 4294901760
    %v1029 = vsub.f32 %v1027, %v1028
    %v1030 = vand.u32 %v1029, 4294901760
    %1031 = vmatprep.subr.mxu0 %v1030
    %v1032 = vand.u32 %v468, 4294901760
    %v1033 = vsub.f32 %v468, %v1032
    %v1034 = vand.u32 %v1033, 4294901760
    %v1035 = vsub.f32 %v1033, %v1034
    %v1036 = vand.u32 %v1035, 4294901760
    %1037 = vmatpush2.msra.mxu0 %v1036
    %v1038 = vand.u32 %v466, 4294901760
    %v1039 = vsub.f32 %v466, %v1038
    %v1040 = vand.u32 %v1039, 4294901760
    %v1041 = vsub.f32 %v1039, %v1040
    %v1042 = vand.u32 %v1041, 4294901760
    %1043 = vmatprep.subr.mxu0 %v1042
    %v1044 = vand.u32 %v465, 4294901760
    %v1045 = vsub.f32 %v465, %v1044
    %v1046 = vand.u32 %v1045, 4294901760
    %v1047 = vsub.f32 %v1045, %v1046
    %v1048 = vand.u32 %v1047, 4294901760
    %1049 = vmatpush2.msra.mxu0 %v1048
    %v1050 = vand.u32 %v463, 4294901760
    %v1051 = vsub.f32 %v463, %v1050
    %v1052 = vand.u32 %v1051, 4294901760
    %v1053 = vsub.f32 %v1051, %v1052
    %v1054 = vand.u32 %v1053, 4294901760
    %1055 = vmatprep.subr.mxu0 %v1054
    %v1056 = vand.u32 %v462, 4294901760
    %v1057 = vsub.f32 %v462, %v1056
    %v1058 = vand.u32 %v1057, 4294901760
    %v1059 = vsub.f32 %v1057, %v1058
    %v1060 = vand.u32 %v1059, 4294901760
    %1061 = vmatpush2.msra.mxu0 %v1060
    %v1062 = vand.u32 %v460, 4294901760
    %v1063 = vsub.f32 %v460, %v1062
    %v1064 = vand.u32 %v1063, 4294901760
    %v1065 = vsub.f32 %v1063, %v1064
    %v1066 = vand.u32 %v1065, 4294901760
    %1067 = vmatprep.subr.mxu0 %v1066
    %v1068 = vand.u32 %v459, 4294901760
    %v1069 = vsub.f32 %v459, %v1068
    %v1070 = vand.u32 %v1069, 4294901760
    %v1071 = vsub.f32 %v1069, %v1070
    %v1072 = vand.u32 %v1071, 4294901760
    %1073 = vmatpush2.msra.mxu0 %v1072
    %v1074 = vand.u32 %v457, 4294901760
    %v1075 = vsub.f32 %v457, %v1074
    %v1076 = vand.u32 %v1075, 4294901760
    %v1077 = vsub.f32 %v1075, %v1076
    %v1078 = vand.u32 %v1077, 4294901760
    %1079 = vmatprep.subr.mxu0 %v1078
    %v1080 = vand.u32 %v456, 4294901760
    %v1081 = vsub.f32 %v456, %v1080
    %v1082 = vand.u32 %v1081, 4294901760
    %v1083 = vsub.f32 %v1081, %v1082
    %v1084 = vand.u32 %v1083, 4294901760
    %1085 = vmatpush2.msra.mxu0 %v1084
    %v1086 = vand.u32 %v454, 4294901760
    %v1087 = vsub.f32 %v454, %v1086
    %v1088 = vand.u32 %v1087, 4294901760
    %v1089 = vsub.f32 %v1087, %v1088
    %v1090 = vand.u32 %v1089, 4294901760
    %1091 = vmatprep.subr.mxu0 %v1090
    %v1092 = vand.u32 %v453, 4294901760
    %v1093 = vsub.f32 %v453, %v1092
    %v1094 = vand.u32 %v1093, 4294901760
    %v1095 = vsub.f32 %v1093, %v1094
    %v1096 = vand.u32 %v1095, 4294901760
    %1097 = vmatpush2.msra.mxu0 %v1096
    %v1098 = vand.u32 %v451, 4294901760
    %v1099 = vsub.f32 %v451, %v1098
    %v1100 = vand.u32 %v1099, 4294901760
    %v1101 = vsub.f32 %v1099, %v1100
    %v1102 = vand.u32 %v1101, 4294901760
    %1103 = vmatprep.subr.mxu0 %v1102
    %v1104 = vand.u32 %v450, 4294901760
    %v1105 = vsub.f32 %v450, %v1104
    %v1106 = vand.u32 %v1105, 4294901760
    %v1107 = vsub.f32 %v1105, %v1106
    %v1108 = vand.u32 %v1107, 4294901760
    %1109 = vmatpush2.msra.mxu0 %v1108
    %v1110 = vand.u32 %v448, 4294901760
    %v1111 = vsub.f32 %v448, %v1110
    %v1112 = vand.u32 %v1111, 4294901760
    %v1113 = vsub.f32 %v1111, %v1112
    %v1114 = vand.u32 %v1113, 4294901760
    %1115 = vmatprep.subr.mxu0 %v1114
    %v1116 = vand.u32 %v447, 4294901760
    %v1117 = vsub.f32 %v447, %v1116
    %v1118 = vand.u32 %v1117, 4294901760
    %v1119 = vsub.f32 %v1117, %v1118
    %v1120 = vand.u32 %v1119, 4294901760
    %1121 = vmatpush2.msra.mxu0 %v1120
    %v1122 = vand.u32 %v445, 4294901760
    %v1123 = vsub.f32 %v445, %v1122
    %v1124 = vand.u32 %v1123, 4294901760
    %v1125 = vsub.f32 %v1123, %v1124
    %v1126 = vand.u32 %v1125, 4294901760
    %1127 = vmatprep.subr.mxu0 %v1126
    %v1128 = vand.u32 %v444, 4294901760
    %v1129 = vsub.f32 %v444, %v1128
    %v1130 = vand.u32 %v1129, 4294901760
    %v1131 = vsub.f32 %v1129, %v1130
    %v1132 = vand.u32 %v1131, 4294901760
    %1133 = vmatpush2.msra.mxu0 %v1132
    %v1134 = vand.u32 %v393, 4294901760
    %1135 = vmatprep.mubr.f32.mxu0 %v1134
    %v1136 = vand.u32 %v392, 4294901760
    %1137 = vmatmul.mubr.f32.gmra.mxu0 %v1136
    %v1138 = vpop.f32.mrf.mxu0
    %v1139 = vadd.f32 %v746, %v1138
    %v1140 = vpop.f32.mrf.mxu0
    %v1141 = vadd.f32 %v748, %v1140
    %1142 = vdwg.mxu0
    %v1143 = vand.u32 %v442, 4294901760
    %v1144 = vsub.f32 %v442, %v1143
    %1145 = vmatprep.subr.mxu0 %v1144
    %v1146 = vand.u32 %v441, 4294901760
    %v1147 = vsub.f32 %v441, %v1146
    %1148 = vmatpush1.msra.mxu0 %v1147
    %v1149 = vand.u32 %v439, 4294901760
    %v1150 = vsub.f32 %v439, %v1149
    %1151 = vmatprep.subr.mxu0 %v1150
    %v1152 = vand.u32 %v438, 4294901760
    %v1153 = vsub.f32 %v438, %v1152
    %1154 = vmatpush1.msra.mxu0 %v1153
    %v1155 = vand.u32 %v436, 4294901760
    %v1156 = vsub.f32 %v436, %v1155
    %1157 = vmatprep.subr.mxu0 %v1156
    %v1158 = vand.u32 %v435, 4294901760
    %v1159 = vsub.f32 %v435, %v1158
    %1160 = vmatpush1.msra.mxu0 %v1159
    %v1161 = vand.u32 %v433, 4294901760
    %v1162 = vsub.f32 %v433, %v1161
    %1163 = vmatprep.subr.mxu0 %v1162
    %v1164 = vand.u32 %v432, 4294901760
    %v1165 = vsub.f32 %v432, %v1164
    %1166 = vmatpush1.msra.mxu0 %v1165
    %v1167 = vand.u32 %v430, 4294901760
    %v1168 = vsub.f32 %v430, %v1167
    %1169 = vmatprep.subr.mxu0 %v1168
    %v1170 = vand.u32 %v429, 4294901760
    %v1171 = vsub.f32 %v429, %v1170
    %1172 = vmatpush1.msra.mxu0 %v1171
    %v1173 = vand.u32 %v427, 4294901760
    %v1174 = vsub.f32 %v427, %v1173
    %1175 = vmatprep.subr.mxu0 %v1174
    %v1176 = vand.u32 %v426, 4294901760
    %v1177 = vsub.f32 %v426, %v1176
    %1178 = vmatpush1.msra.mxu0 %v1177
    %v1179 = vand.u32 %v424, 4294901760
    %v1180 = vsub.f32 %v424, %v1179
    %1181 = vmatprep.subr.mxu0 %v1180
    %v1182 = vand.u32 %v423, 4294901760
    %v1183 = vsub.f32 %v423, %v1182
    %1184 = vmatpush1.msra.mxu0 %v1183
    %v1185 = vand.u32 %v421, 4294901760
    %v1186 = vsub.f32 %v421, %v1185
    %1187 = vmatprep.subr.mxu0 %v1186
    %v1188 = vand.u32 %v420, 4294901760
    %v1189 = vsub.f32 %v420, %v1188
    %1190 = vmatpush1.msra.mxu0 %v1189
    %v1191 = vand.u32 %v418, 4294901760
    %v1192 = vsub.f32 %v418, %v1191
    %1193 = vmatprep.subr.mxu0 %v1192
    %v1194 = vand.u32 %v417, 4294901760
    %v1195 = vsub.f32 %v417, %v1194
    %1196 = vmatpush1.msra.mxu0 %v1195
    %v1197 = vand.u32 %v415, 4294901760
    %v1198 = vsub.f32 %v415, %v1197
    %1199 = vmatprep.subr.mxu0 %v1198
    %v1200 = vand.u32 %v414, 4294901760
    %v1201 = vsub.f32 %v414, %v1200
    %1202 = vmatpush1.msra.mxu0 %v1201
    %v1203 = vand.u32 %v412, 4294901760
    %v1204 = vsub.f32 %v412, %v1203
    %1205 = vmatprep.subr.mxu0 %v1204
    %v1206 = vand.u32 %v411, 4294901760
    %v1207 = vsub.f32 %v411, %v1206
    %1208 = vmatpush1.msra.mxu0 %v1207
    %v1209 = vand.u32 %v409, 4294901760
    %v1210 = vsub.f32 %v409, %v1209
    %1211 = vmatprep.subr.mxu0 %v1210
    %v1212 = vand.u32 %v408, 4294901760
    %v1213 = vsub.f32 %v408, %v1212
    %1214 = vmatpush1.msra.mxu0 %v1213
    %v1215 = vand.u32 %v406, 4294901760
    %v1216 = vsub.f32 %v406, %v1215
    %1217 = vmatprep.subr.mxu0 %v1216
    %v1218 = vand.u32 %v405, 4294901760
    %v1219 = vsub.f32 %v405, %v1218
    %1220 = vmatpush1.msra.mxu0 %v1219
    %v1221 = vand.u32 %v403, 4294901760
    %v1222 = vsub.f32 %v403, %v1221
    %1223 = vmatprep.subr.mxu0 %v1222
    %v1224 = vand.u32 %v402, 4294901760
    %v1225 = vsub.f32 %v402, %v1224
    %1226 = vmatpush1.msra.mxu0 %v1225
    %v1227 = vand.u32 %v400, 4294901760
    %v1228 = vsub.f32 %v400, %v1227
    %1229 = vmatprep.subr.mxu0 %v1228
    %v1230 = vand.u32 %v399, 4294901760
    %v1231 = vsub.f32 %v399, %v1230
    %1232 = vmatpush1.msra.mxu0 %v1231
    %v1233 = vand.u32 %v397, 4294901760
    %v1234 = vsub.f32 %v397, %v1233
    %1235 = vmatprep.subr.mxu0 %v1234
    %v1236 = vand.u32 %v396, 4294901760
    %v1237 = vsub.f32 %v396, %v1236
    %1238 = vmatpush1.msra.mxu0 %v1237
    %v1239 = vand.u32 %v490, 4294901760
    %v1240 = vsub.f32 %v490, %v1239
    %1241 = vmatprep.subr.mxu0 %v1240
    %v1242 = vand.u32 %v489, 4294901760
    %v1243 = vsub.f32 %v489, %v1242
    %1244 = vmatpush2.msra.mxu0 %v1243
    %v1245 = vand.u32 %v487, 4294901760
    %v1246 = vsub.f32 %v487, %v1245
    %1247 = vmatprep.subr.mxu0 %v1246
    %v1248 = vand.u32 %v486, 4294901760
    %v1249 = vsub.f32 %v486, %v1248
    %1250 = vmatpush2.msra.mxu0 %v1249
    %v1251 = vand.u32 %v484, 4294901760
    %v1252 = vsub.f32 %v484, %v1251
    %1253 = vmatprep.subr.mxu0 %v1252
    %v1254 = vand.u32 %v483, 4294901760
    %v1255 = vsub.f32 %v483, %v1254
    %1256 = vmatpush2.msra.mxu0 %v1255
    %v1257 = vand.u32 %v481, 4294901760
    %v1258 = vsub.f32 %v481, %v1257
    %1259 = vmatprep.subr.mxu0 %v1258
    %v1260 = vand.u32 %v480, 4294901760
    %v1261 = vsub.f32 %v480, %v1260
    %1262 = vmatpush2.msra.mxu0 %v1261
    %v1263 = vand.u32 %v478, 4294901760
    %v1264 = vsub.f32 %v478, %v1263
    %1265 = vmatprep.subr.mxu0 %v1264
    %v1266 = vand.u32 %v477, 4294901760
    %v1267 = vsub.f32 %v477, %v1266
    %1268 = vmatpush2.msra.mxu0 %v1267
    %v1269 = vand.u32 %v475, 4294901760
    %v1270 = vsub.f32 %v475, %v1269
    %1271 = vmatprep.subr.mxu0 %v1270
    %v1272 = vand.u32 %v474, 4294901760
    %v1273 = vsub.f32 %v474, %v1272
    %1274 = vmatpush2.msra.mxu0 %v1273
    %v1275 = vand.u32 %v472, 4294901760
    %v1276 = vsub.f32 %v472, %v1275
    %1277 = vmatprep.subr.mxu0 %v1276
    %v1278 = vand.u32 %v471, 4294901760
    %v1279 = vsub.f32 %v471, %v1278
    %1280 = vmatpush2.msra.mxu0 %v1279
    %v1281 = vand.u32 %v469, 4294901760
    %v1282 = vsub.f32 %v469, %v1281
    %1283 = vmatprep.subr.mxu0 %v1282
    %v1284 = vand.u32 %v468, 4294901760
    %v1285 = vsub.f32 %v468, %v1284
    %1286 = vmatpush2.msra.mxu0 %v1285
    %v1287 = vand.u32 %v466, 4294901760
    %v1288 = vsub.f32 %v466, %v1287
    %1289 = vmatprep.subr.mxu0 %v1288
    %v1290 = vand.u32 %v465, 4294901760
    %v1291 = vsub.f32 %v465, %v1290
    %1292 = vmatpush2.msra.mxu0 %v1291
    %v1293 = vand.u32 %v463, 4294901760
    %v1294 = vsub.f32 %v463, %v1293
    %1295 = vmatprep.subr.mxu0 %v1294
    %v1296 = vand.u32 %v462, 4294901760
    %v1297 = vsub.f32 %v462, %v1296
    %1298 = vmatpush2.msra.mxu0 %v1297
    %v1299 = vand.u32 %v460, 4294901760
    %v1300 = vsub.f32 %v460, %v1299
    %1301 = vmatprep.subr.mxu0 %v1300
    %v1302 = vand.u32 %v459, 4294901760
    %v1303 = vsub.f32 %v459, %v1302
    %1304 = vmatpush2.msra.mxu0 %v1303
    %v1305 = vand.u32 %v457, 4294901760
    %v1306 = vsub.f32 %v457, %v1305
    %1307 = vmatprep.subr.mxu0 %v1306
    %v1308 = vand.u32 %v456, 4294901760
    %v1309 = vsub.f32 %v456, %v1308
    %1310 = vmatpush2.msra.mxu0 %v1309
    %v1311 = vand.u32 %v454, 4294901760
    %v1312 = vsub.f32 %v454, %v1311
    %1313 = vmatprep.subr.mxu0 %v1312
    %v1314 = vand.u32 %v453, 4294901760
    %v1315 = vsub.f32 %v453, %v1314
    %1316 = vmatpush2.msra.mxu0 %v1315
    %v1317 = vand.u32 %v451, 4294901760
    %v1318 = vsub.f32 %v451, %v1317
    %1319 = vmatprep.subr.mxu0 %v1318
    %v1320 = vand.u32 %v450, 4294901760
    %v1321 = vsub.f32 %v450, %v1320
    %1322 = vmatpush2.msra.mxu0 %v1321
    %v1323 = vand.u32 %v448, 4294901760
    %v1324 = vsub.f32 %v448, %v1323
    %1325 = vmatprep.subr.mxu0 %v1324
    %v1326 = vand.u32 %v447, 4294901760
    %v1327 = vsub.f32 %v447, %v1326
    %1328 = vmatpush2.msra.mxu0 %v1327
    %v1329 = vand.u32 %v445, 4294901760
    %v1330 = vsub.f32 %v445, %v1329
    %1331 = vmatprep.subr.mxu0 %v1330
    %v1332 = vand.u32 %v444, 4294901760
    %v1333 = vsub.f32 %v444, %v1332
    %1334 = vmatpush2.msra.mxu0 %v1333
    %v1335 = vand.u32 %v393, 4294901760
    %v1336 = vsub.f32 %v393, %v1335
    %1337 = vmatprep.mubr.f32.mxu0 %v1336
    %v1338 = vand.u32 %v392, 4294901760
    %v1339 = vsub.f32 %v392, %v1338
    %1340 = vmatmul.mubr.f32.gmra.mxu0 %v1339
    %v1341 = vpop.f32.mrf.mxu0
    %v1342 = vadd.f32 %v1139, %v1341
    %v1343 = vpop.f32.mrf.mxu0
    %v1344 = vadd.f32 %v1141, %v1343
    %1345 = vdwg.mxu0
    %v1346 = vand.u32 %v442, 4294901760
    %1347 = vmatprep.subr.mxu0 %v1346
    %v1348 = vand.u32 %v441, 4294901760
    %1349 = vmatpush1.msra.mxu0 %v1348
    %v1350 = vand.u32 %v439, 4294901760
    %1351 = vmatprep.subr.mxu0 %v1350
    %v1352 = vand.u32 %v438, 4294901760
    %1353 = vmatpush1.msra.mxu0 %v1352
    %v1354 = vand.u32 %v436, 4294901760
    %1355 = vmatprep.subr.mxu0 %v1354
    %v1356 = vand.u32 %v435, 4294901760
    %1357 = vmatpush1.msra.mxu0 %v1356
    %v1358 = vand.u32 %v433, 4294901760
    %1359 = vmatprep.subr.mxu0 %v1358
    %v1360 = vand.u32 %v432, 4294901760
    %1361 = vmatpush1.msra.mxu0 %v1360
    %v1362 = vand.u32 %v430, 4294901760
    %1363 = vmatprep.subr.mxu0 %v1362
    %v1364 = vand.u32 %v429, 4294901760
    %1365 = vmatpush1.msra.mxu0 %v1364
    %v1366 = vand.u32 %v427, 4294901760
    %1367 = vmatprep.subr.mxu0 %v1366
    %v1368 = vand.u32 %v426, 4294901760
    %1369 = vmatpush1.msra.mxu0 %v1368
    %v1370 = vand.u32 %v424, 4294901760
    %1371 = vmatprep.subr.mxu0 %v1370
    %v1372 = vand.u32 %v423, 4294901760
    %1373 = vmatpush1.msra.mxu0 %v1372
    %v1374 = vand.u32 %v421, 4294901760
    %1375 = vmatprep.subr.mxu0 %v1374
    %v1376 = vand.u32 %v420, 4294901760
    %1377 = vmatpush1.msra.mxu0 %v1376
    %v1378 = vand.u32 %v418, 4294901760
    %1379 = vmatprep.subr.mxu0 %v1378
    %v1380 = vand.u32 %v417, 4294901760
    %1381 = vmatpush1.msra.mxu0 %v1380
    %v1382 = vand.u32 %v415, 4294901760
    %1383 = vmatprep.subr.mxu0 %v1382
    %v1384 = vand.u32 %v414, 4294901760
    %1385 = vmatpush1.msra.mxu0 %v1384
    %v1386 = vand.u32 %v412, 4294901760
    %1387 = vmatprep.subr.mxu0 %v1386
    %v1388 = vand.u32 %v411, 4294901760
    %1389 = vmatpush1.msra.mxu0 %v1388
    %v1390 = vand.u32 %v409, 4294901760
    %1391 = vmatprep.subr.mxu0 %v1390
    %v1392 = vand.u32 %v408, 4294901760
    %1393 = vmatpush1.msra.mxu0 %v1392
    %v1394 = vand.u32 %v406, 4294901760
    %1395 = vmatprep.subr.mxu0 %v1394
    %v1396 = vand.u32 %v405, 4294901760
    %1397 = vmatpush1.msra.mxu0 %v1396
    %v1398 = vand.u32 %v403, 4294901760
    %1399 = vmatprep.subr.mxu0 %v1398
    %v1400 = vand.u32 %v402, 4294901760
    %1401 = vmatpush1.msra.mxu0 %v1400
    %v1402 = vand.u32 %v400, 4294901760
    %1403 = vmatprep.subr.mxu0 %v1402
    %v1404 = vand.u32 %v399, 4294901760
    %1405 = vmatpush1.msra.mxu0 %v1404
    %v1406 = vand.u32 %v397, 4294901760
    %1407 = vmatprep.subr.mxu0 %v1406
    %v1408 = vand.u32 %v396, 4294901760
    %1409 = vmatpush1.msra.mxu0 %v1408
    %v1410 = vand.u32 %v490, 4294901760
    %1411 = vmatprep.subr.mxu0 %v1410
    %v1412 = vand.u32 %v489, 4294901760
    %1413 = vmatpush2.msra.mxu0 %v1412
    %v1414 = vand.u32 %v487, 4294901760
    %1415 = vmatprep.subr.mxu0 %v1414
    %v1416 = vand.u32 %v486, 4294901760
    %1417 = vmatpush2.msra.mxu0 %v1416
    %v1418 = vand.u32 %v484, 4294901760
    %1419 = vmatprep.subr.mxu0 %v1418
    %v1420 = vand.u32 %v483, 4294901760
    %1421 = vmatpush2.msra.mxu0 %v1420
    %v1422 = vand.u32 %v481, 4294901760
    %1423 = vmatprep.subr.mxu0 %v1422
    %v1424 = vand.u32 %v480, 4294901760
    %1425 = vmatpush2.msra.mxu0 %v1424
    %v1426 = vand.u32 %v478, 4294901760
    %1427 = vmatprep.subr.mxu0 %v1426
    %v1428 = vand.u32 %v477, 4294901760
    %1429 = vmatpush2.msra.mxu0 %v1428
    %v1430 = vand.u32 %v475, 4294901760
    %1431 = vmatprep.subr.mxu0 %v1430
    %v1432 = vand.u32 %v474, 4294901760
    %1433 = vmatpush2.msra.mxu0 %v1432
    %v1434 = vand.u32 %v472, 4294901760
    %1435 = vmatprep.subr.mxu0 %v1434
    %v1436 = vand.u32 %v471, 4294901760
    %1437 = vmatpush2.msra.mxu0 %v1436
    %v1438 = vand.u32 %v469, 4294901760
    %1439 = vmatprep.subr.mxu0 %v1438
    %v1440 = vand.u32 %v468, 4294901760
    %1441 = vmatpush2.msra.mxu0 %v1440
    %v1442 = vand.u32 %v466, 4294901760
    %1443 = vmatprep.subr.mxu0 %v1442
    %v1444 = vand.u32 %v465, 4294901760
    %1445 = vmatpush2.msra.mxu0 %v1444
    %v1446 = vand.u32 %v463, 4294901760
    %1447 = vmatprep.subr.mxu0 %v1446
    %v1448 = vand.u32 %v462, 4294901760
    %1449 = vmatpush2.msra.mxu0 %v1448
    %v1450 = vand.u32 %v460, 4294901760
    %1451 = vmatprep.subr.mxu0 %v1450
    %v1452 = vand.u32 %v459, 4294901760
    %1453 = vmatpush2.msra.mxu0 %v1452
    %v1454 = vand.u32 %v457, 4294901760
    %1455 = vmatprep.subr.mxu0 %v1454
    %v1456 = vand.u32 %v456, 4294901760
    %1457 = vmatpush2.msra.mxu0 %v1456
    %v1458 = vand.u32 %v454, 4294901760
    %1459 = vmatprep.subr.mxu0 %v1458
    %v1460 = vand.u32 %v453, 4294901760
    %1461 = vmatpush2.msra.mxu0 %v1460
    %v1462 = vand.u32 %v451, 4294901760
    %1463 = vmatprep.subr.mxu0 %v1462
    %v1464 = vand.u32 %v450, 4294901760
    %1465 = vmatpush2.msra.mxu0 %v1464
    %v1466 = vand.u32 %v448, 4294901760
    %1467 = vmatprep.subr.mxu0 %v1466
    %v1468 = vand.u32 %v447, 4294901760
    %1469 = vmatpush2.msra.mxu0 %v1468
    %v1470 = vand.u32 %v445, 4294901760
    %1471 = vmatprep.subr.mxu0 %v1470
    %v1472 = vand.u32 %v444, 4294901760
    %1473 = vmatpush2.msra.mxu0 %v1472
    %v1474 = vand.u32 %v393, 4294901760
    %v1475 = vsub.f32 %v393, %v1474
    %v1476 = vand.u32 %v1475, 4294901760
    %1477 = vmatprep.mubr.f32.mxu0 %v1476
    %v1478 = vand.u32 %v392, 4294901760
    %v1479 = vsub.f32 %v392, %v1478
    %v1480 = vand.u32 %v1479, 4294901760
    %1481 = vmatmul.mubr.f32.gmra.mxu0 %v1480
    %v1482 = vpop.f32.mrf.mxu0
    %v1483 = vadd.f32 %v1342, %v1482
    %v1484 = vpop.f32.mrf.mxu0
    %v1485 = vadd.f32 %v1344, %v1484
    %1486 = vdwg.mxu0
    %v1487 = vand.u32 %v442, 4294901760
    %v1488 = vsub.f32 %v442, %v1487
    %v1489 = vand.u32 %v1488, 4294901760
    %1490 = vmatprep.subr.mxu0 %v1489
    %v1491 = vand.u32 %v441, 4294901760
    %v1492 = vsub.f32 %v441, %v1491
    %v1493 = vand.u32 %v1492, 4294901760
    %1494 = vmatpush1.msra.mxu0 %v1493
    %v1495 = vand.u32 %v439, 4294901760
    %v1496 = vsub.f32 %v439, %v1495
    %v1497 = vand.u32 %v1496, 4294901760
    %1498 = vmatprep.subr.mxu0 %v1497
    %v1499 = vand.u32 %v438, 4294901760
    %v1500 = vsub.f32 %v438, %v1499
    %v1501 = vand.u32 %v1500, 4294901760
    %1502 = vmatpush1.msra.mxu0 %v1501
    %v1503 = vand.u32 %v436, 4294901760
    %v1504 = vsub.f32 %v436, %v1503
    %v1505 = vand.u32 %v1504, 4294901760
    %1506 = vmatprep.subr.mxu0 %v1505
    %v1507 = vand.u32 %v435, 4294901760
    %v1508 = vsub.f32 %v435, %v1507
    %v1509 = vand.u32 %v1508, 4294901760
    %1510 = vmatpush1.msra.mxu0 %v1509
    %v1511 = vand.u32 %v433, 4294901760
    %v1512 = vsub.f32 %v433, %v1511
    %v1513 = vand.u32 %v1512, 4294901760
    %1514 = vmatprep.subr.mxu0 %v1513
    %v1515 = vand.u32 %v432, 4294901760
    %v1516 = vsub.f32 %v432, %v1515
    %v1517 = vand.u32 %v1516, 4294901760
    %1518 = vmatpush1.msra.mxu0 %v1517
    %v1519 = vand.u32 %v430, 4294901760
    %v1520 = vsub.f32 %v430, %v1519
    %v1521 = vand.u32 %v1520, 4294901760
    %1522 = vmatprep.subr.mxu0 %v1521
    %v1523 = vand.u32 %v429, 4294901760
    %v1524 = vsub.f32 %v429, %v1523
    %v1525 = vand.u32 %v1524, 4294901760
    %1526 = vmatpush1.msra.mxu0 %v1525
    %v1527 = vand.u32 %v427, 4294901760
    %v1528 = vsub.f32 %v427, %v1527
    %v1529 = vand.u32 %v1528, 4294901760
    %1530 = vmatprep.subr.mxu0 %v1529
    %v1531 = vand.u32 %v426, 4294901760
    %v1532 = vsub.f32 %v426, %v1531
    %v1533 = vand.u32 %v1532, 4294901760
    %1534 = vmatpush1.msra.mxu0 %v1533
    %v1535 = vand.u32 %v424, 4294901760
    %v1536 = vsub.f32 %v424, %v1535
    %v1537 = vand.u32 %v1536, 4294901760
    %1538 = vmatprep.subr.mxu0 %v1537
    %v1539 = vand.u32 %v423, 4294901760
    %v1540 = vsub.f32 %v423, %v1539
    %v1541 = vand.u32 %v1540, 4294901760
    %1542 = vmatpush1.msra.mxu0 %v1541
    %v1543 = vand.u32 %v421, 4294901760
    %v1544 = vsub.f32 %v421, %v1543
    %v1545 = vand.u32 %v1544, 4294901760
    %1546 = vmatprep.subr.mxu0 %v1545
    %v1547 = vand.u32 %v420, 4294901760
    %v1548 = vsub.f32 %v420, %v1547
    %v1549 = vand.u32 %v1548, 4294901760
    %1550 = vmatpush1.msra.mxu0 %v1549
    %v1551 = vand.u32 %v418, 4294901760
    %v1552 = vsub.f32 %v418, %v1551
    %v1553 = vand.u32 %v1552, 4294901760
    %1554 = vmatprep.subr.mxu0 %v1553
    %v1555 = vand.u32 %v417, 4294901760
    %v1556 = vsub.f32 %v417, %v1555
    %v1557 = vand.u32 %v1556, 4294901760
    %1558 = vmatpush1.msra.mxu0 %v1557
    %v1559 = vand.u32 %v415, 4294901760
    %v1560 = vsub.f32 %v415, %v1559
    %v1561 = vand.u32 %v1560, 4294901760
    %1562 = vmatprep.subr.mxu0 %v1561
    %v1563 = vand.u32 %v414, 4294901760
    %v1564 = vsub.f32 %v414, %v1563
    %v1565 = vand.u32 %v1564, 4294901760
    %1566 = vmatpush1.msra.mxu0 %v1565
    %v1567 = vand.u32 %v412, 4294901760
    %v1568 = vsub.f32 %v412, %v1567
    %v1569 = vand.u32 %v1568, 4294901760
    %1570 = vmatprep.subr.mxu0 %v1569
    %v1571 = vand.u32 %v411, 4294901760
    %v1572 = vsub.f32 %v411, %v1571
    %v1573 = vand.u32 %v1572, 4294901760
    %1574 = vmatpush1.msra.mxu0 %v1573
    %v1575 = vand.u32 %v409, 4294901760
    %v1576 = vsub.f32 %v409, %v1575
    %v1577 = vand.u32 %v1576, 4294901760
    %1578 = vmatprep.subr.mxu0 %v1577
    %v1579 = vand.u32 %v408, 4294901760
    %v1580 = vsub.f32 %v408, %v1579
    %v1581 = vand.u32 %v1580, 4294901760
    %1582 = vmatpush1.msra.mxu0 %v1581
    %v1583 = vand.u32 %v406, 4294901760
    %v1584 = vsub.f32 %v406, %v1583
    %v1585 = vand.u32 %v1584, 4294901760
    %1586 = vmatprep.subr.mxu0 %v1585
    %v1587 = vand.u32 %v405, 4294901760
    %v1588 = vsub.f32 %v405, %v1587
    %v1589 = vand.u32 %v1588, 4294901760
    %1590 = vmatpush1.msra.mxu0 %v1589
    %v1591 = vand.u32 %v403, 4294901760
    %v1592 = vsub.f32 %v403, %v1591
    %v1593 = vand.u32 %v1592, 4294901760
    %1594 = vmatprep.subr.mxu0 %v1593
    %v1595 = vand.u32 %v402, 4294901760
    %v1596 = vsub.f32 %v402, %v1595
    %v1597 = vand.u32 %v1596, 4294901760
    %1598 = vmatpush1.msra.mxu0 %v1597
    %v1599 = vand.u32 %v400, 4294901760
    %v1600 = vsub.f32 %v400, %v1599
    %v1601 = vand.u32 %v1600, 4294901760
    %1602 = vmatprep.subr.mxu0 %v1601
    %v1603 = vand.u32 %v399, 4294901760
    %v1604 = vsub.f32 %v399, %v1603
    %v1605 = vand.u32 %v1604, 4294901760
    %1606 = vmatpush1.msra.mxu0 %v1605
    %v1607 = vand.u32 %v397, 4294901760
    %v1608 = vsub.f32 %v397, %v1607
    %v1609 = vand.u32 %v1608, 4294901760
    %1610 = vmatprep.subr.mxu0 %v1609
    %v1611 = vand.u32 %v396, 4294901760
    %v1612 = vsub.f32 %v396, %v1611
    %v1613 = vand.u32 %v1612, 4294901760
    %1614 = vmatpush1.msra.mxu0 %v1613
    %v1615 = vand.u32 %v490, 4294901760
    %v1616 = vsub.f32 %v490, %v1615
    %v1617 = vand.u32 %v1616, 4294901760
    %1618 = vmatprep.subr.mxu0 %v1617
    %v1619 = vand.u32 %v489, 4294901760
    %v1620 = vsub.f32 %v489, %v1619
    %v1621 = vand.u32 %v1620, 4294901760
    %1622 = vmatpush2.msra.mxu0 %v1621
    %v1623 = vand.u32 %v487, 4294901760
    %v1624 = vsub.f32 %v487, %v1623
    %v1625 = vand.u32 %v1624, 4294901760
    %1626 = vmatprep.subr.mxu0 %v1625
    %v1627 = vand.u32 %v486, 4294901760
    %v1628 = vsub.f32 %v486, %v1627
    %v1629 = vand.u32 %v1628, 4294901760
    %1630 = vmatpush2.msra.mxu0 %v1629
    %v1631 = vand.u32 %v484, 4294901760
    %v1632 = vsub.f32 %v484, %v1631
    %v1633 = vand.u32 %v1632, 4294901760
    %1634 = vmatprep.subr.mxu0 %v1633
    %v1635 = vand.u32 %v483, 4294901760
    %v1636 = vsub.f32 %v483, %v1635
    %v1637 = vand.u32 %v1636, 4294901760
    %1638 = vmatpush2.msra.mxu0 %v1637
    %v1639 = vand.u32 %v481, 4294901760
    %v1640 = vsub.f32 %v481, %v1639
    %v1641 = vand.u32 %v1640, 4294901760
    %1642 = vmatprep.subr.mxu0 %v1641
    %v1643 = vand.u32 %v480, 4294901760
    %v1644 = vsub.f32 %v480, %v1643
    %v1645 = vand.u32 %v1644, 4294901760
    %1646 = vmatpush2.msra.mxu0 %v1645
    %v1647 = vand.u32 %v478, 4294901760
    %v1648 = vsub.f32 %v478, %v1647
    %v1649 = vand.u32 %v1648, 4294901760
    %1650 = vmatprep.subr.mxu0 %v1649
    %v1651 = vand.u32 %v477, 4294901760
    %v1652 = vsub.f32 %v477, %v1651
    %v1653 = vand.u32 %v1652, 4294901760
    %1654 = vmatpush2.msra.mxu0 %v1653
    %v1655 = vand.u32 %v475, 4294901760
    %v1656 = vsub.f32 %v475, %v1655
    %v1657 = vand.u32 %v1656, 4294901760
    %1658 = vmatprep.subr.mxu0 %v1657
    %v1659 = vand.u32 %v474, 4294901760
    %v1660 = vsub.f32 %v474, %v1659
    %v1661 = vand.u32 %v1660, 4294901760
    %1662 = vmatpush2.msra.mxu0 %v1661
    %v1663 = vand.u32 %v472, 4294901760
    %v1664 = vsub.f32 %v472, %v1663
    %v1665 = vand.u32 %v1664, 4294901760
    %1666 = vmatprep.subr.mxu0 %v1665
    %v1667 = vand.u32 %v471, 4294901760
    %v1668 = vsub.f32 %v471, %v1667
    %v1669 = vand.u32 %v1668, 4294901760
    %1670 = vmatpush2.msra.mxu0 %v1669
    %v1671 = vand.u32 %v469, 4294901760
    %v1672 = vsub.f32 %v469, %v1671
    %v1673 = vand.u32 %v1672, 4294901760
    %1674 = vmatprep.subr.mxu0 %v1673
    %v1675 = vand.u32 %v468, 4294901760
    %v1676 = vsub.f32 %v468, %v1675
    %v1677 = vand.u32 %v1676, 4294901760
    %1678 = vmatpush2.msra.mxu0 %v1677
    %v1679 = vand.u32 %v466, 4294901760
    %v1680 = vsub.f32 %v466, %v1679
    %v1681 = vand.u32 %v1680, 4294901760
    %1682 = vmatprep.subr.mxu0 %v1681
    %v1683 = vand.u32 %v465, 4294901760
    %v1684 = vsub.f32 %v465, %v1683
    %v1685 = vand.u32 %v1684, 4294901760
    %1686 = vmatpush2.msra.mxu0 %v1685
    %v1687 = vand.u32 %v463, 4294901760
    %v1688 = vsub.f32 %v463, %v1687
    %v1689 = vand.u32 %v1688, 4294901760
    %1690 = vmatprep.subr.mxu0 %v1689
    %v1691 = vand.u32 %v462, 4294901760
    %v1692 = vsub.f32 %v462, %v1691
    %v1693 = vand.u32 %v1692, 4294901760
    %1694 = vmatpush2.msra.mxu0 %v1693
    %v1695 = vand.u32 %v460, 4294901760
    %v1696 = vsub.f32 %v460, %v1695
    %v1697 = vand.u32 %v1696, 4294901760
    %1698 = vmatprep.subr.mxu0 %v1697
    %v1699 = vand.u32 %v459, 4294901760
    %v1700 = vsub.f32 %v459, %v1699
    %v1701 = vand.u32 %v1700, 4294901760
    %1702 = vmatpush2.msra.mxu0 %v1701
    %v1703 = vand.u32 %v457, 4294901760
    %v1704 = vsub.f32 %v457, %v1703
    %v1705 = vand.u32 %v1704, 4294901760
    %1706 = vmatprep.subr.mxu0 %v1705
    %v1707 = vand.u32 %v456, 4294901760
    %v1708 = vsub.f32 %v456, %v1707
    %v1709 = vand.u32 %v1708, 4294901760
    %1710 = vmatpush2.msra.mxu0 %v1709
    %v1711 = vand.u32 %v454, 4294901760
    %v1712 = vsub.f32 %v454, %v1711
    %v1713 = vand.u32 %v1712, 4294901760
    %1714 = vmatprep.subr.mxu0 %v1713
    %v1715 = vand.u32 %v453, 4294901760
    %v1716 = vsub.f32 %v453, %v1715
    %v1717 = vand.u32 %v1716, 4294901760
    %1718 = vmatpush2.msra.mxu0 %v1717
    %v1719 = vand.u32 %v451, 4294901760
    %v1720 = vsub.f32 %v451, %v1719
    %v1721 = vand.u32 %v1720, 4294901760
    %1722 = vmatprep.subr.mxu0 %v1721
    %v1723 = vand.u32 %v450, 4294901760
    %v1724 = vsub.f32 %v450, %v1723
    %v1725 = vand.u32 %v1724, 4294901760
    %1726 = vmatpush2.msra.mxu0 %v1725
    %v1727 = vand.u32 %v448, 4294901760
    %v1728 = vsub.f32 %v448, %v1727
    %v1729 = vand.u32 %v1728, 4294901760
    %1730 = vmatprep.subr.mxu0 %v1729
    %v1731 = vand.u32 %v447, 4294901760
    %v1732 = vsub.f32 %v447, %v1731
    %v1733 = vand.u32 %v1732, 4294901760
    %1734 = vmatpush2.msra.mxu0 %v1733
    %v1735 = vand.u32 %v445, 4294901760
    %v1736 = vsub.f32 %v445, %v1735
    %v1737 = vand.u32 %v1736, 4294901760
    %1738 = vmatprep.subr.mxu0 %v1737
    %v1739 = vand.u32 %v444, 4294901760
    %v1740 = vsub.f32 %v444, %v1739
    %v1741 = vand.u32 %v1740, 4294901760
    %1742 = vmatpush2.msra.mxu0 %v1741
    %v1743 = vand.u32 %v393, 4294901760
    %1744 = vmatprep.mubr.f32.mxu0 %v1743
    %v1745 = vand.u32 %v392, 4294901760
    %1746 = vmatmul.mubr.f32.gmra.mxu0 %v1745
    %v1747 = vpop.f32.mrf.mxu0
    %v1748 = vadd.f32 %v1483, %v1747
    %v1749 = vpop.f32.mrf.mxu0
    %v1750 = vadd.f32 %v1485, %v1749
    %1751 = vdwg.mxu0
    %v1752 = vand.u32 %v442, 4294901760
    %1753 = vmatprep.subr.mxu0 %v1752
    %v1754 = vand.u32 %v441, 4294901760
    %1755 = vmatpush1.msra.mxu0 %v1754
    %v1756 = vand.u32 %v439, 4294901760
    %1757 = vmatprep.subr.mxu0 %v1756
    %v1758 = vand.u32 %v438, 4294901760
    %1759 = vmatpush1.msra.mxu0 %v1758
    %v1760 = vand.u32 %v436, 4294901760
    %1761 = vmatprep.subr.mxu0 %v1760
    %v1762 = vand.u32 %v435, 4294901760
    %1763 = vmatpush1.msra.mxu0 %v1762
    %v1764 = vand.u32 %v433, 4294901760
    %1765 = vmatprep.subr.mxu0 %v1764
    %v1766 = vand.u32 %v432, 4294901760
    %1767 = vmatpush1.msra.mxu0 %v1766
    %v1768 = vand.u32 %v430, 4294901760
    %1769 = vmatprep.subr.mxu0 %v1768
    %v1770 = vand.u32 %v429, 4294901760
    %1771 = vmatpush1.msra.mxu0 %v1770
    %v1772 = vand.u32 %v427, 4294901760
    %1773 = vmatprep.subr.mxu0 %v1772
    %v1774 = vand.u32 %v426, 4294901760
    %1775 = vmatpush1.msra.mxu0 %v1774
    %v1776 = vand.u32 %v424, 4294901760
    %1777 = vmatprep.subr.mxu0 %v1776
    %v1778 = vand.u32 %v423, 4294901760
    %1779 = vmatpush1.msra.mxu0 %v1778
    %v1780 = vand.u32 %v421, 4294901760
    %1781 = vmatprep.subr.mxu0 %v1780
    %v1782 = vand.u32 %v420, 4294901760
    %1783 = vmatpush1.msra.mxu0 %v1782
    %v1784 = vand.u32 %v418, 4294901760
    %1785 = vmatprep.subr.mxu0 %v1784
    %v1786 = vand.u32 %v417, 4294901760
    %1787 = vmatpush1.msra.mxu0 %v1786
    %v1788 = vand.u32 %v415, 4294901760
    %1789 = vmatprep.subr.mxu0 %v1788
    %v1790 = vand.u32 %v414, 4294901760
    %1791 = vmatpush1.msra.mxu0 %v1790
    %v1792 = vand.u32 %v412, 4294901760
    %1793 = vmatprep.subr.mxu0 %v1792
    %v1794 = vand.u32 %v411, 4294901760
    %1795 = vmatpush1.msra.mxu0 %v1794
    %v1796 = vand.u32 %v409, 4294901760
    %1797 = vmatprep.subr.mxu0 %v1796
    %v1798 = vand.u32 %v408, 4294901760
    %1799 = vmatpush1.msra.mxu0 %v1798
    %v1800 = vand.u32 %v406, 4294901760
    %1801 = vmatprep.subr.mxu0 %v1800
    %v1802 = vand.u32 %v405, 4294901760
    %1803 = vmatpush1.msra.mxu0 %v1802
    %v1804 = vand.u32 %v403, 4294901760
    %1805 = vmatprep.subr.mxu0 %v1804
    %v1806 = vand.u32 %v402, 4294901760
    %1807 = vmatpush1.msra.mxu0 %v1806
    %v1808 = vand.u32 %v400, 4294901760
    %1809 = vmatprep.subr.mxu0 %v1808
    %v1810 = vand.u32 %v399, 4294901760
    %1811 = vmatpush1.msra.mxu0 %v1810
    %v1812 = vand.u32 %v397, 4294901760
    %1813 = vmatprep.subr.mxu0 %v1812
    %v1814 = vand.u32 %v396, 4294901760
    %1815 = vmatpush1.msra.mxu0 %v1814
    %v1816 = vand.u32 %v490, 4294901760
    %1817 = vmatprep.subr.mxu0 %v1816
    %v1818 = vand.u32 %v489, 4294901760
    %1819 = vmatpush2.msra.mxu0 %v1818
    %v1820 = vand.u32 %v487, 4294901760
    %1821 = vmatprep.subr.mxu0 %v1820
    %v1822 = vand.u32 %v486, 4294901760
    %1823 = vmatpush2.msra.mxu0 %v1822
    %v1824 = vand.u32 %v484, 4294901760
    %1825 = vmatprep.subr.mxu0 %v1824
    %v1826 = vand.u32 %v483, 4294901760
    %1827 = vmatpush2.msra.mxu0 %v1826
    %v1828 = vand.u32 %v481, 4294901760
    %1829 = vmatprep.subr.mxu0 %v1828
    %v1830 = vand.u32 %v480, 4294901760
    %1831 = vmatpush2.msra.mxu0 %v1830
    %v1832 = vand.u32 %v478, 4294901760
    %1833 = vmatprep.subr.mxu0 %v1832
    %v1834 = vand.u32 %v477, 4294901760
    %1835 = vmatpush2.msra.mxu0 %v1834
    %v1836 = vand.u32 %v475, 4294901760
    %1837 = vmatprep.subr.mxu0 %v1836
    %v1838 = vand.u32 %v474, 4294901760
    %1839 = vmatpush2.msra.mxu0 %v1838
    %v1840 = vand.u32 %v472, 4294901760
    %1841 = vmatprep.subr.mxu0 %v1840
    %v1842 = vand.u32 %v471, 4294901760
    %1843 = vmatpush2.msra.mxu0 %v1842
    %v1844 = vand.u32 %v469, 4294901760
    %1845 = vmatprep.subr.mxu0 %v1844
    %v1846 = vand.u32 %v468, 4294901760
    %1847 = vmatpush2.msra.mxu0 %v1846
    %v1848 = vand.u32 %v466, 4294901760
    %1849 = vmatprep.subr.mxu0 %v1848
    %v1850 = vand.u32 %v465, 4294901760
    %1851 = vmatpush2.msra.mxu0 %v1850
    %v1852 = vand.u32 %v463, 4294901760
    %1853 = vmatprep.subr.mxu0 %v1852
    %v1854 = vand.u32 %v462, 4294901760
    %1855 = vmatpush2.msra.mxu0 %v1854
    %v1856 = vand.u32 %v460, 4294901760
    %1857 = vmatprep.subr.mxu0 %v1856
    %v1858 = vand.u32 %v459, 4294901760
    %1859 = vmatpush2.msra.mxu0 %v1858
    %v1860 = vand.u32 %v457, 4294901760
    %1861 = vmatprep.subr.mxu0 %v1860
    %v1862 = vand.u32 %v456, 4294901760
    %1863 = vmatpush2.msra.mxu0 %v1862
    %v1864 = vand.u32 %v454, 4294901760
    %1865 = vmatprep.subr.mxu0 %v1864
    %v1866 = vand.u32 %v453, 4294901760
    %1867 = vmatpush2.msra.mxu0 %v1866
    %v1868 = vand.u32 %v451, 4294901760
    %1869 = vmatprep.subr.mxu0 %v1868
    %v1870 = vand.u32 %v450, 4294901760
    %1871 = vmatpush2.msra.mxu0 %v1870
    %v1872 = vand.u32 %v448, 4294901760
    %1873 = vmatprep.subr.mxu0 %v1872
    %v1874 = vand.u32 %v447, 4294901760
    %1875 = vmatpush2.msra.mxu0 %v1874
    %v1876 = vand.u32 %v445, 4294901760
    %1877 = vmatprep.subr.mxu0 %v1876
    %v1878 = vand.u32 %v444, 4294901760
    %1879 = vmatpush2.msra.mxu0 %v1878
    %v1880 = vand.u32 %v393, 4294901760
    %1881 = vmatprep.mubr.f32.mxu0 %v1880
    %v1882 = vand.u32 %v392, 4294901760
    %1883 = vmatmul.mubr.f32.gmra.mxu0 %v1882
    %v1884 = vpop.f32.mrf.mxu0
    %v1885 = vadd.f32 %v1748, %v1884
    %v1886 = vpop.f32.mrf.mxu0
    %v1887 = vadd.f32 %v1750, %v1886
    %1888 = vdwg.mxu0
    %v1889 = vand.u32 %v538, 4294901760
    %1890 = vmatprep.subr.mxu0 %v1889
    %v1891 = vand.u32 %v537, 4294901760
    %1892 = vmatpush1.msra.mxu0 %v1891
    %v1893 = vand.u32 %v535, 4294901760
    %1894 = vmatprep.subr.mxu0 %v1893
    %v1895 = vand.u32 %v534, 4294901760
    %1896 = vmatpush1.msra.mxu0 %v1895
    %v1897 = vand.u32 %v532, 4294901760
    %1898 = vmatprep.subr.mxu0 %v1897
    %v1899 = vand.u32 %v531, 4294901760
    %1900 = vmatpush1.msra.mxu0 %v1899
    %v1901 = vand.u32 %v529, 4294901760
    %1902 = vmatprep.subr.mxu0 %v1901
    %v1903 = vand.u32 %v528, 4294901760
    %1904 = vmatpush1.msra.mxu0 %v1903
    %v1905 = vand.u32 %v526, 4294901760
    %1906 = vmatprep.subr.mxu0 %v1905
    %v1907 = vand.u32 %v525, 4294901760
    %1908 = vmatpush1.msra.mxu0 %v1907
    %v1909 = vand.u32 %v523, 4294901760
    %1910 = vmatprep.subr.mxu0 %v1909
    %v1911 = vand.u32 %v522, 4294901760
    %1912 = vmatpush1.msra.mxu0 %v1911
    %v1913 = vand.u32 %v520, 4294901760
    %1914 = vmatprep.subr.mxu0 %v1913
    %v1915 = vand.u32 %v519, 4294901760
    %1916 = vmatpush1.msra.mxu0 %v1915
    %v1917 = vand.u32 %v517, 4294901760
    %1918 = vmatprep.subr.mxu0 %v1917
    %v1919 = vand.u32 %v516, 4294901760
    %1920 = vmatpush1.msra.mxu0 %v1919
    %v1921 = vand.u32 %v514, 4294901760
    %1922 = vmatprep.subr.mxu0 %v1921
    %v1923 = vand.u32 %v513, 4294901760
    %1924 = vmatpush1.msra.mxu0 %v1923
    %v1925 = vand.u32 %v511, 4294901760
    %1926 = vmatprep.subr.mxu0 %v1925
    %v1927 = vand.u32 %v510, 4294901760
    %1928 = vmatpush1.msra.mxu0 %v1927
    %v1929 = vand.u32 %v508, 4294901760
    %1930 = vmatprep.subr.mxu0 %v1929
    %v1931 = vand.u32 %v507, 4294901760
    %1932 = vmatpush1.msra.mxu0 %v1931
    %v1933 = vand.u32 %v505, 4294901760
    %1934 = vmatprep.subr.mxu0 %v1933
    %v1935 = vand.u32 %v504, 4294901760
    %1936 = vmatpush1.msra.mxu0 %v1935
    %v1937 = vand.u32 %v502, 4294901760
    %1938 = vmatprep.subr.mxu0 %v1937
    %v1939 = vand.u32 %v501, 4294901760
    %1940 = vmatpush1.msra.mxu0 %v1939
    %v1941 = vand.u32 %v499, 4294901760
    %1942 = vmatprep.subr.mxu0 %v1941
    %v1943 = vand.u32 %v498, 4294901760
    %1944 = vmatpush1.msra.mxu0 %v1943
    %v1945 = vand.u32 %v496, 4294901760
    %1946 = vmatprep.subr.mxu0 %v1945
    %v1947 = vand.u32 %v495, 4294901760
    %1948 = vmatpush1.msra.mxu0 %v1947
    %v1949 = vand.u32 %v493, 4294901760
    %1950 = vmatprep.subr.mxu0 %v1949
    %v1951 = vand.u32 %v492, 4294901760
    %1952 = vmatpush1.msra.mxu0 %v1951
    %v1953 = vand.u32 %v586, 4294901760
    %1954 = vmatprep.subr.mxu0 %v1953
    %v1955 = vand.u32 %v585, 4294901760
    %1956 = vmatpush2.msra.mxu0 %v1955
    %v1957 = vand.u32 %v583, 4294901760
    %1958 = vmatprep.subr.mxu0 %v1957
    %v1959 = vand.u32 %v582, 4294901760
    %1960 = vmatpush2.msra.mxu0 %v1959
    %v1961 = vand.u32 %v580, 4294901760
    %1962 = vmatprep.subr.mxu0 %v1961
    %v1963 = vand.u32 %v579, 4294901760
    %1964 = vmatpush2.msra.mxu0 %v1963
    %v1965 = vand.u32 %v577, 4294901760
    %1966 = vmatprep.subr.mxu0 %v1965
    %v1967 = vand.u32 %v576, 4294901760
    %1968 = vmatpush2.msra.mxu0 %v1967
    %v1969 = vand.u32 %v574, 4294901760
    %1970 = vmatprep.subr.mxu0 %v1969
    %v1971 = vand.u32 %v573, 4294901760
    %1972 = vmatpush2.msra.mxu0 %v1971
    %v1973 = vand.u32 %v571, 4294901760
    %1974 = vmatprep.subr.mxu0 %v1973
    %v1975 = vand.u32 %v570, 4294901760
    %1976 = vmatpush2.msra.mxu0 %v1975
    %v1977 = vand.u32 %v568, 4294901760
    %1978 = vmatprep.subr.mxu0 %v1977
    %v1979 = vand.u32 %v567, 4294901760
    %1980 = vmatpush2.msra.mxu0 %v1979
    %v1981 = vand.u32 %v565, 4294901760
    %1982 = vmatprep.subr.mxu0 %v1981
    %v1983 = vand.u32 %v564, 4294901760
    %1984 = vmatpush2.msra.mxu0 %v1983
    %v1985 = vand.u32 %v562, 4294901760
    %1986 = vmatprep.subr.mxu0 %v1985
    %v1987 = vand.u32 %v561, 4294901760
    %1988 = vmatpush2.msra.mxu0 %v1987
    %v1989 = vand.u32 %v559, 4294901760
    %1990 = vmatprep.subr.mxu0 %v1989
    %v1991 = vand.u32 %v558, 4294901760
    %1992 = vmatpush2.msra.mxu0 %v1991
    %v1993 = vand.u32 %v556, 4294901760
    %1994 = vmatprep.subr.mxu0 %v1993
    %v1995 = vand.u32 %v555, 4294901760
    %1996 = vmatpush2.msra.mxu0 %v1995
    %v1997 = vand.u32 %v553, 4294901760
    %1998 = vmatprep.subr.mxu0 %v1997
    %v1999 = vand.u32 %v552, 4294901760
    %2000 = vmatpush2.msra.mxu0 %v1999
    %v2001 = vand.u32 %v550, 4294901760
    %2002 = vmatprep.subr.mxu0 %v2001
    %v2003 = vand.u32 %v549, 4294901760
    %2004 = vmatpush2.msra.mxu0 %v2003
    %v2005 = vand.u32 %v547, 4294901760
    %2006 = vmatprep.subr.mxu0 %v2005
    %v2007 = vand.u32 %v546, 4294901760
    %2008 = vmatpush2.msra.mxu0 %v2007
    %v2009 = vand.u32 %v544, 4294901760
    %2010 = vmatprep.subr.mxu0 %v2009
    %v2011 = vand.u32 %v543, 4294901760
    %2012 = vmatpush2.msra.mxu0 %v2011
    %v2013 = vand.u32 %v541, 4294901760
    %2014 = vmatprep.subr.mxu0 %v2013
    %v2015 = vand.u32 %v540, 4294901760
    %2016 = vmatpush2.msra.mxu0 %v2015
    %v2017 = vand.u32 %v395, 4294901760
    %v2018 = vsub.f32 %v395, %v2017
    %v2019 = vand.u32 %v2018, 4294901760
    %v2020 = vsub.f32 %v2018, %v2019
    %v2021 = vand.u32 %v2020, 4294901760
    %2022 = vmatprep.mubr.f32.mxu0 %v2021
    %v2023 = vand.u32 %v394, 4294901760
    %v2024 = vsub.f32 %v394, %v2023
    %v2025 = vand.u32 %v2024, 4294901760
    %v2026 = vsub.f32 %v2024, %v2025
    %v2027 = vand.u32 %v2026, 4294901760
    %2028 = vmatmul.mubr.f32.gmra.mxu0 %v2027
    %v2029 = vpop.f32.mrf.mxu0
    %v2030 = vadd.f32 %v1885, %v2029
    %v2031 = vpop.f32.mrf.mxu0
    %v2032 = vadd.f32 %v1887, %v2031
    %2033 = vdwg.mxu0
    %v2034 = vand.u32 %v538, 4294901760
    %v2035 = vsub.f32 %v538, %v2034
    %v2036 = vand.u32 %v2035, 4294901760
    %v2037 = vsub.f32 %v2035, %v2036
    %v2038 = vand.u32 %v2037, 4294901760
    %2039 = vmatprep.subr.mxu0 %v2038
    %v2040 = vand.u32 %v537, 4294901760
    %v2041 = vsub.f32 %v537, %v2040
    %v2042 = vand.u32 %v2041, 4294901760
    %v2043 = vsub.f32 %v2041, %v2042
    %v2044 = vand.u32 %v2043, 4294901760
    %2045 = vmatpush1.msra.mxu0 %v2044
    %v2046 = vand.u32 %v535, 4294901760
    %v2047 = vsub.f32 %v535, %v2046
    %v2048 = vand.u32 %v2047, 4294901760
    %v2049 = vsub.f32 %v2047, %v2048
    %v2050 = vand.u32 %v2049, 4294901760
    %2051 = vmatprep.subr.mxu0 %v2050
    %v2052 = vand.u32 %v534, 4294901760
    %v2053 = vsub.f32 %v534, %v2052
    %v2054 = vand.u32 %v2053, 4294901760
    %v2055 = vsub.f32 %v2053, %v2054
    %v2056 = vand.u32 %v2055, 4294901760
    %2057 = vmatpush1.msra.mxu0 %v2056
    %v2058 = vand.u32 %v532, 4294901760
    %v2059 = vsub.f32 %v532, %v2058
    %v2060 = vand.u32 %v2059, 4294901760
    %v2061 = vsub.f32 %v2059, %v2060
    %v2062 = vand.u32 %v2061, 4294901760
    %2063 = vmatprep.subr.mxu0 %v2062
    %v2064 = vand.u32 %v531, 4294901760
    %v2065 = vsub.f32 %v531, %v2064
    %v2066 = vand.u32 %v2065, 4294901760
    %v2067 = vsub.f32 %v2065, %v2066
    %v2068 = vand.u32 %v2067, 4294901760
    %2069 = vmatpush1.msra.mxu0 %v2068
    %v2070 = vand.u32 %v529, 4294901760
    %v2071 = vsub.f32 %v529, %v2070
    %v2072 = vand.u32 %v2071, 4294901760
    %v2073 = vsub.f32 %v2071, %v2072
    %v2074 = vand.u32 %v2073, 4294901760
    %2075 = vmatprep.subr.mxu0 %v2074
    %v2076 = vand.u32 %v528, 4294901760
    %v2077 = vsub.f32 %v528, %v2076
    %v2078 = vand.u32 %v2077, 4294901760
    %v2079 = vsub.f32 %v2077, %v2078
    %v2080 = vand.u32 %v2079, 4294901760
    %2081 = vmatpush1.msra.mxu0 %v2080
    %v2082 = vand.u32 %v526, 4294901760
    %v2083 = vsub.f32 %v526, %v2082
    %v2084 = vand.u32 %v2083, 4294901760
    %v2085 = vsub.f32 %v2083, %v2084
    %v2086 = vand.u32 %v2085, 4294901760
    %2087 = vmatprep.subr.mxu0 %v2086
    %v2088 = vand.u32 %v525, 4294901760
    %v2089 = vsub.f32 %v525, %v2088
    %v2090 = vand.u32 %v2089, 4294901760
    %v2091 = vsub.f32 %v2089, %v2090
    %v2092 = vand.u32 %v2091, 4294901760
    %2093 = vmatpush1.msra.mxu0 %v2092
    %v2094 = vand.u32 %v523, 4294901760
    %v2095 = vsub.f32 %v523, %v2094
    %v2096 = vand.u32 %v2095, 4294901760
    %v2097 = vsub.f32 %v2095, %v2096
    %v2098 = vand.u32 %v2097, 4294901760
    %2099 = vmatprep.subr.mxu0 %v2098
    %v2100 = vand.u32 %v522, 4294901760
    %v2101 = vsub.f32 %v522, %v2100
    %v2102 = vand.u32 %v2101, 4294901760
    %v2103 = vsub.f32 %v2101, %v2102
    %v2104 = vand.u32 %v2103, 4294901760
    %2105 = vmatpush1.msra.mxu0 %v2104
    %v2106 = vand.u32 %v520, 4294901760
    %v2107 = vsub.f32 %v520, %v2106
    %v2108 = vand.u32 %v2107, 4294901760
    %v2109 = vsub.f32 %v2107, %v2108
    %v2110 = vand.u32 %v2109, 4294901760
    %2111 = vmatprep.subr.mxu0 %v2110
    %v2112 = vand.u32 %v519, 4294901760
    %v2113 = vsub.f32 %v519, %v2112
    %v2114 = vand.u32 %v2113, 4294901760
    %v2115 = vsub.f32 %v2113, %v2114
    %v2116 = vand.u32 %v2115, 4294901760
    %2117 = vmatpush1.msra.mxu0 %v2116
    %v2118 = vand.u32 %v517, 4294901760
    %v2119 = vsub.f32 %v517, %v2118
    %v2120 = vand.u32 %v2119, 4294901760
    %v2121 = vsub.f32 %v2119, %v2120
    %v2122 = vand.u32 %v2121, 4294901760
    %2123 = vmatprep.subr.mxu0 %v2122
    %v2124 = vand.u32 %v516, 4294901760
    %v2125 = vsub.f32 %v516, %v2124
    %v2126 = vand.u32 %v2125, 4294901760
    %v2127 = vsub.f32 %v2125, %v2126
    %v2128 = vand.u32 %v2127, 4294901760
    %2129 = vmatpush1.msra.mxu0 %v2128
    %v2130 = vand.u32 %v514, 4294901760
    %v2131 = vsub.f32 %v514, %v2130
    %v2132 = vand.u32 %v2131, 4294901760
    %v2133 = vsub.f32 %v2131, %v2132
    %v2134 = vand.u32 %v2133, 4294901760
    %2135 = vmatprep.subr.mxu0 %v2134
    %v2136 = vand.u32 %v513, 4294901760
    %v2137 = vsub.f32 %v513, %v2136
    %v2138 = vand.u32 %v2137, 4294901760
    %v2139 = vsub.f32 %v2137, %v2138
    %v2140 = vand.u32 %v2139, 4294901760
    %2141 = vmatpush1.msra.mxu0 %v2140
    %v2142 = vand.u32 %v511, 4294901760
    %v2143 = vsub.f32 %v511, %v2142
    %v2144 = vand.u32 %v2143, 4294901760
    %v2145 = vsub.f32 %v2143, %v2144
    %v2146 = vand.u32 %v2145, 4294901760
    %2147 = vmatprep.subr.mxu0 %v2146
    %v2148 = vand.u32 %v510, 4294901760
    %v2149 = vsub.f32 %v510, %v2148
    %v2150 = vand.u32 %v2149, 4294901760
    %v2151 = vsub.f32 %v2149, %v2150
    %v2152 = vand.u32 %v2151, 4294901760
    %2153 = vmatpush1.msra.mxu0 %v2152
    %v2154 = vand.u32 %v508, 4294901760
    %v2155 = vsub.f32 %v508, %v2154
    %v2156 = vand.u32 %v2155, 4294901760
    %v2157 = vsub.f32 %v2155, %v2156
    %v2158 = vand.u32 %v2157, 4294901760
    %2159 = vmatprep.subr.mxu0 %v2158
    %v2160 = vand.u32 %v507, 4294901760
    %v2161 = vsub.f32 %v507, %v2160
    %v2162 = vand.u32 %v2161, 4294901760
    %v2163 = vsub.f32 %v2161, %v2162
    %v2164 = vand.u32 %v2163, 4294901760
    %2165 = vmatpush1.msra.mxu0 %v2164
    %v2166 = vand.u32 %v505, 4294901760
    %v2167 = vsub.f32 %v505, %v2166
    %v2168 = vand.u32 %v2167, 4294901760
    %v2169 = vsub.f32 %v2167, %v2168
    %v2170 = vand.u32 %v2169, 4294901760
    %2171 = vmatprep.subr.mxu0 %v2170
    %v2172 = vand.u32 %v504, 4294901760
    %v2173 = vsub.f32 %v504, %v2172
    %v2174 = vand.u32 %v2173, 4294901760
    %v2175 = vsub.f32 %v2173, %v2174
    %v2176 = vand.u32 %v2175, 4294901760
    %2177 = vmatpush1.msra.mxu0 %v2176
    %v2178 = vand.u32 %v502, 4294901760
    %v2179 = vsub.f32 %v502, %v2178
    %v2180 = vand.u32 %v2179, 4294901760
    %v2181 = vsub.f32 %v2179, %v2180
    %v2182 = vand.u32 %v2181, 4294901760
    %2183 = vmatprep.subr.mxu0 %v2182
    %v2184 = vand.u32 %v501, 4294901760
    %v2185 = vsub.f32 %v501, %v2184
    %v2186 = vand.u32 %v2185, 4294901760
    %v2187 = vsub.f32 %v2185, %v2186
    %v2188 = vand.u32 %v2187, 4294901760
    %2189 = vmatpush1.msra.mxu0 %v2188
    %v2190 = vand.u32 %v499, 4294901760
    %v2191 = vsub.f32 %v499, %v2190
    %v2192 = vand.u32 %v2191, 4294901760
    %v2193 = vsub.f32 %v2191, %v2192
    %v2194 = vand.u32 %v2193, 4294901760
    %2195 = vmatprep.subr.mxu0 %v2194
    %v2196 = vand.u32 %v498, 4294901760
    %v2197 = vsub.f32 %v498, %v2196
    %v2198 = vand.u32 %v2197, 4294901760
    %v2199 = vsub.f32 %v2197, %v2198
    %v2200 = vand.u32 %v2199, 4294901760
    %2201 = vmatpush1.msra.mxu0 %v2200
    %v2202 = vand.u32 %v496, 4294901760
    %v2203 = vsub.f32 %v496, %v2202
    %v2204 = vand.u32 %v2203, 4294901760
    %v2205 = vsub.f32 %v2203, %v2204
    %v2206 = vand.u32 %v2205, 4294901760
    %2207 = vmatprep.subr.mxu0 %v2206
    %v2208 = vand.u32 %v495, 4294901760
    %v2209 = vsub.f32 %v495, %v2208
    %v2210 = vand.u32 %v2209, 4294901760
    %v2211 = vsub.f32 %v2209, %v2210
    %v2212 = vand.u32 %v2211, 4294901760
    %2213 = vmatpush1.msra.mxu0 %v2212
    %v2214 = vand.u32 %v493, 4294901760
    %v2215 = vsub.f32 %v493, %v2214
    %v2216 = vand.u32 %v2215, 4294901760
    %v2217 = vsub.f32 %v2215, %v2216
    %v2218 = vand.u32 %v2217, 4294901760
    %2219 = vmatprep.subr.mxu0 %v2218
    %v2220 = vand.u32 %v492, 4294901760
    %v2221 = vsub.f32 %v492, %v2220
    %v2222 = vand.u32 %v2221, 4294901760
    %v2223 = vsub.f32 %v2221, %v2222
    %v2224 = vand.u32 %v2223, 4294901760
    %2225 = vmatpush1.msra.mxu0 %v2224
    %v2226 = vand.u32 %v586, 4294901760
    %v2227 = vsub.f32 %v586, %v2226
    %v2228 = vand.u32 %v2227, 4294901760
    %v2229 = vsub.f32 %v2227, %v2228
    %v2230 = vand.u32 %v2229, 4294901760
    %2231 = vmatprep.subr.mxu0 %v2230
    %v2232 = vand.u32 %v585, 4294901760
    %v2233 = vsub.f32 %v585, %v2232
    %v2234 = vand.u32 %v2233, 4294901760
    %v2235 = vsub.f32 %v2233, %v2234
    %v2236 = vand.u32 %v2235, 4294901760
    %2237 = vmatpush2.msra.mxu0 %v2236
    %v2238 = vand.u32 %v583, 4294901760
    %v2239 = vsub.f32 %v583, %v2238
    %v2240 = vand.u32 %v2239, 4294901760
    %v2241 = vsub.f32 %v2239, %v2240
    %v2242 = vand.u32 %v2241, 4294901760
    %2243 = vmatprep.subr.mxu0 %v2242
    %v2244 = vand.u32 %v582, 4294901760
    %v2245 = vsub.f32 %v582, %v2244
    %v2246 = vand.u32 %v2245, 4294901760
    %v2247 = vsub.f32 %v2245, %v2246
    %v2248 = vand.u32 %v2247, 4294901760
    %2249 = vmatpush2.msra.mxu0 %v2248
    %v2250 = vand.u32 %v580, 4294901760
    %v2251 = vsub.f32 %v580, %v2250
    %v2252 = vand.u32 %v2251, 4294901760
    %v2253 = vsub.f32 %v2251, %v2252
    %v2254 = vand.u32 %v2253, 4294901760
    %2255 = vmatprep.subr.mxu0 %v2254
    %v2256 = vand.u32 %v579, 4294901760
    %v2257 = vsub.f32 %v579, %v2256
    %v2258 = vand.u32 %v2257, 4294901760
    %v2259 = vsub.f32 %v2257, %v2258
    %v2260 = vand.u32 %v2259, 4294901760
    %2261 = vmatpush2.msra.mxu0 %v2260
    %v2262 = vand.u32 %v577, 4294901760
    %v2263 = vsub.f32 %v577, %v2262
    %v2264 = vand.u32 %v2263, 4294901760
    %v2265 = vsub.f32 %v2263, %v2264
    %v2266 = vand.u32 %v2265, 4294901760
    %2267 = vmatprep.subr.mxu0 %v2266
    %v2268 = vand.u32 %v576, 4294901760
    %v2269 = vsub.f32 %v576, %v2268
    %v2270 = vand.u32 %v2269, 4294901760
    %v2271 = vsub.f32 %v2269, %v2270
    %v2272 = vand.u32 %v2271, 4294901760
    %2273 = vmatpush2.msra.mxu0 %v2272
    %v2274 = vand.u32 %v574, 4294901760
    %v2275 = vsub.f32 %v574, %v2274
    %v2276 = vand.u32 %v2275, 4294901760
    %v2277 = vsub.f32 %v2275, %v2276
    %v2278 = vand.u32 %v2277, 4294901760
    %2279 = vmatprep.subr.mxu0 %v2278
    %v2280 = vand.u32 %v573, 4294901760
    %v2281 = vsub.f32 %v573, %v2280
    %v2282 = vand.u32 %v2281, 4294901760
    %v2283 = vsub.f32 %v2281, %v2282
    %v2284 = vand.u32 %v2283, 4294901760
    %2285 = vmatpush2.msra.mxu0 %v2284
    %v2286 = vand.u32 %v571, 4294901760
    %v2287 = vsub.f32 %v571, %v2286
    %v2288 = vand.u32 %v2287, 4294901760
    %v2289 = vsub.f32 %v2287, %v2288
    %v2290 = vand.u32 %v2289, 4294901760
    %2291 = vmatprep.subr.mxu0 %v2290
    %v2292 = vand.u32 %v570, 4294901760
    %v2293 = vsub.f32 %v570, %v2292
    %v2294 = vand.u32 %v2293, 4294901760
    %v2295 = vsub.f32 %v2293, %v2294
    %v2296 = vand.u32 %v2295, 4294901760
    %2297 = vmatpush2.msra.mxu0 %v2296
    %v2298 = vand.u32 %v568, 4294901760
    %v2299 = vsub.f32 %v568, %v2298
    %v2300 = vand.u32 %v2299, 4294901760
    %v2301 = vsub.f32 %v2299, %v2300
    %v2302 = vand.u32 %v2301, 4294901760
    %2303 = vmatprep.subr.mxu0 %v2302
    %v2304 = vand.u32 %v567, 4294901760
    %v2305 = vsub.f32 %v567, %v2304
    %v2306 = vand.u32 %v2305, 4294901760
    %v2307 = vsub.f32 %v2305, %v2306
    %v2308 = vand.u32 %v2307, 4294901760
    %2309 = vmatpush2.msra.mxu0 %v2308
    %v2310 = vand.u32 %v565, 4294901760
    %v2311 = vsub.f32 %v565, %v2310
    %v2312 = vand.u32 %v2311, 4294901760
    %v2313 = vsub.f32 %v2311, %v2312
    %v2314 = vand.u32 %v2313, 4294901760
    %2315 = vmatprep.subr.mxu0 %v2314
    %v2316 = vand.u32 %v564, 4294901760
    %v2317 = vsub.f32 %v564, %v2316
    %v2318 = vand.u32 %v2317, 4294901760
    %v2319 = vsub.f32 %v2317, %v2318
    %v2320 = vand.u32 %v2319, 4294901760
    %2321 = vmatpush2.msra.mxu0 %v2320
    %v2322 = vand.u32 %v562, 4294901760
    %v2323 = vsub.f32 %v562, %v2322
    %v2324 = vand.u32 %v2323, 4294901760
    %v2325 = vsub.f32 %v2323, %v2324
    %v2326 = vand.u32 %v2325, 4294901760
    %2327 = vmatprep.subr.mxu0 %v2326
    %v2328 = vand.u32 %v561, 4294901760
    %v2329 = vsub.f32 %v561, %v2328
    %v2330 = vand.u32 %v2329, 4294901760
    %v2331 = vsub.f32 %v2329, %v2330
    %v2332 = vand.u32 %v2331, 4294901760
    %2333 = vmatpush2.msra.mxu0 %v2332
    %v2334 = vand.u32 %v559, 4294901760
    %v2335 = vsub.f32 %v559, %v2334
    %v2336 = vand.u32 %v2335, 4294901760
    %v2337 = vsub.f32 %v2335, %v2336
    %v2338 = vand.u32 %v2337, 4294901760
    %2339 = vmatprep.subr.mxu0 %v2338
    %v2340 = vand.u32 %v558, 4294901760
    %v2341 = vsub.f32 %v558, %v2340
    %v2342 = vand.u32 %v2341, 4294901760
    %v2343 = vsub.f32 %v2341, %v2342
    %v2344 = vand.u32 %v2343, 4294901760
    %2345 = vmatpush2.msra.mxu0 %v2344
    %v2346 = vand.u32 %v556, 4294901760
    %v2347 = vsub.f32 %v556, %v2346
    %v2348 = vand.u32 %v2347, 4294901760
    %v2349 = vsub.f32 %v2347, %v2348
    %v2350 = vand.u32 %v2349, 4294901760
    %2351 = vmatprep.subr.mxu0 %v2350
    %v2352 = vand.u32 %v555, 4294901760
    %v2353 = vsub.f32 %v555, %v2352
    %v2354 = vand.u32 %v2353, 4294901760
    %v2355 = vsub.f32 %v2353, %v2354
    %v2356 = vand.u32 %v2355, 4294901760
    %2357 = vmatpush2.msra.mxu0 %v2356
    %v2358 = vand.u32 %v553, 4294901760
    %v2359 = vsub.f32 %v553, %v2358
    %v2360 = vand.u32 %v2359, 4294901760
    %v2361 = vsub.f32 %v2359, %v2360
    %v2362 = vand.u32 %v2361, 4294901760
    %2363 = vmatprep.subr.mxu0 %v2362
    %v2364 = vand.u32 %v552, 4294901760
    %v2365 = vsub.f32 %v552, %v2364
    %v2366 = vand.u32 %v2365, 4294901760
    %v2367 = vsub.f32 %v2365, %v2366
    %v2368 = vand.u32 %v2367, 4294901760
    %2369 = vmatpush2.msra.mxu0 %v2368
    %v2370 = vand.u32 %v550, 4294901760
    %v2371 = vsub.f32 %v550, %v2370
    %v2372 = vand.u32 %v2371, 4294901760
    %v2373 = vsub.f32 %v2371, %v2372
    %v2374 = vand.u32 %v2373, 4294901760
    %2375 = vmatprep.subr.mxu0 %v2374
    %v2376 = vand.u32 %v549, 4294901760
    %v2377 = vsub.f32 %v549, %v2376
    %v2378 = vand.u32 %v2377, 4294901760
    %v2379 = vsub.f32 %v2377, %v2378
    %v2380 = vand.u32 %v2379, 4294901760
    %2381 = vmatpush2.msra.mxu0 %v2380
    %v2382 = vand.u32 %v547, 4294901760
    %v2383 = vsub.f32 %v547, %v2382
    %v2384 = vand.u32 %v2383, 4294901760
    %v2385 = vsub.f32 %v2383, %v2384
    %v2386 = vand.u32 %v2385, 4294901760
    %2387 = vmatprep.subr.mxu0 %v2386
    %v2388 = vand.u32 %v546, 4294901760
    %v2389 = vsub.f32 %v546, %v2388
    %v2390 = vand.u32 %v2389, 4294901760
    %v2391 = vsub.f32 %v2389, %v2390
    %v2392 = vand.u32 %v2391, 4294901760
    %2393 = vmatpush2.msra.mxu0 %v2392
    %v2394 = vand.u32 %v544, 4294901760
    %v2395 = vsub.f32 %v544, %v2394
    %v2396 = vand.u32 %v2395, 4294901760
    %v2397 = vsub.f32 %v2395, %v2396
    %v2398 = vand.u32 %v2397, 4294901760
    %2399 = vmatprep.subr.mxu0 %v2398
    %v2400 = vand.u32 %v543, 4294901760
    %v2401 = vsub.f32 %v543, %v2400
    %v2402 = vand.u32 %v2401, 4294901760
    %v2403 = vsub.f32 %v2401, %v2402
    %v2404 = vand.u32 %v2403, 4294901760
    %2405 = vmatpush2.msra.mxu0 %v2404
    %v2406 = vand.u32 %v541, 4294901760
    %v2407 = vsub.f32 %v541, %v2406
    %v2408 = vand.u32 %v2407, 4294901760
    %v2409 = vsub.f32 %v2407, %v2408
    %v2410 = vand.u32 %v2409, 4294901760
    %2411 = vmatprep.subr.mxu0 %v2410
    %v2412 = vand.u32 %v540, 4294901760
    %v2413 = vsub.f32 %v540, %v2412
    %v2414 = vand.u32 %v2413, 4294901760
    %v2415 = vsub.f32 %v2413, %v2414
    %v2416 = vand.u32 %v2415, 4294901760
    %2417 = vmatpush2.msra.mxu0 %v2416
    %v2418 = vand.u32 %v395, 4294901760
    %2419 = vmatprep.mubr.f32.mxu0 %v2418
    %v2420 = vand.u32 %v394, 4294901760
    %2421 = vmatmul.mubr.f32.gmra.mxu0 %v2420
    %v2422 = vpop.f32.mrf.mxu0
    %v2423 = vadd.f32 %v2030, %v2422
    %v2424 = vpop.f32.mrf.mxu0
    %v2425 = vadd.f32 %v2032, %v2424
    %2426 = vdwg.mxu0
    %v2427 = vand.u32 %v538, 4294901760
    %v2428 = vsub.f32 %v538, %v2427
    %2429 = vmatprep.subr.mxu0 %v2428
    %v2430 = vand.u32 %v537, 4294901760
    %v2431 = vsub.f32 %v537, %v2430
    %2432 = vmatpush1.msra.mxu0 %v2431
    %v2433 = vand.u32 %v535, 4294901760
    %v2434 = vsub.f32 %v535, %v2433
    %2435 = vmatprep.subr.mxu0 %v2434
    %v2436 = vand.u32 %v534, 4294901760
    %v2437 = vsub.f32 %v534, %v2436
    %2438 = vmatpush1.msra.mxu0 %v2437
    %v2439 = vand.u32 %v532, 4294901760
    %v2440 = vsub.f32 %v532, %v2439
    %2441 = vmatprep.subr.mxu0 %v2440
    %v2442 = vand.u32 %v531, 4294901760
    %v2443 = vsub.f32 %v531, %v2442
    %2444 = vmatpush1.msra.mxu0 %v2443
    %v2445 = vand.u32 %v529, 4294901760
    %v2446 = vsub.f32 %v529, %v2445
    %2447 = vmatprep.subr.mxu0 %v2446
    %v2448 = vand.u32 %v528, 4294901760
    %v2449 = vsub.f32 %v528, %v2448
    %2450 = vmatpush1.msra.mxu0 %v2449
    %v2451 = vand.u32 %v526, 4294901760
    %v2452 = vsub.f32 %v526, %v2451
    %2453 = vmatprep.subr.mxu0 %v2452
    %v2454 = vand.u32 %v525, 4294901760
    %v2455 = vsub.f32 %v525, %v2454
    %2456 = vmatpush1.msra.mxu0 %v2455
    %v2457 = vand.u32 %v523, 4294901760
    %v2458 = vsub.f32 %v523, %v2457
    %2459 = vmatprep.subr.mxu0 %v2458
    %v2460 = vand.u32 %v522, 4294901760
    %v2461 = vsub.f32 %v522, %v2460
    %2462 = vmatpush1.msra.mxu0 %v2461
    %v2463 = vand.u32 %v520, 4294901760
    %v2464 = vsub.f32 %v520, %v2463
    %2465 = vmatprep.subr.mxu0 %v2464
    %v2466 = vand.u32 %v519, 4294901760
    %v2467 = vsub.f32 %v519, %v2466
    %2468 = vmatpush1.msra.mxu0 %v2467
    %v2469 = vand.u32 %v517, 4294901760
    %v2470 = vsub.f32 %v517, %v2469
    %2471 = vmatprep.subr.mxu0 %v2470
    %v2472 = vand.u32 %v516, 4294901760
    %v2473 = vsub.f32 %v516, %v2472
    %2474 = vmatpush1.msra.mxu0 %v2473
    %v2475 = vand.u32 %v514, 4294901760
    %v2476 = vsub.f32 %v514, %v2475
    %2477 = vmatprep.subr.mxu0 %v2476
    %v2478 = vand.u32 %v513, 4294901760
    %v2479 = vsub.f32 %v513, %v2478
    %2480 = vmatpush1.msra.mxu0 %v2479
    %v2481 = vand.u32 %v511, 4294901760
    %v2482 = vsub.f32 %v511, %v2481
    %2483 = vmatprep.subr.mxu0 %v2482
    %v2484 = vand.u32 %v510, 4294901760
    %v2485 = vsub.f32 %v510, %v2484
    %2486 = vmatpush1.msra.mxu0 %v2485
    %v2487 = vand.u32 %v508, 4294901760
    %v2488 = vsub.f32 %v508, %v2487
    %2489 = vmatprep.subr.mxu0 %v2488
    %v2490 = vand.u32 %v507, 4294901760
    %v2491 = vsub.f32 %v507, %v2490
    %2492 = vmatpush1.msra.mxu0 %v2491
    %v2493 = vand.u32 %v505, 4294901760
    %v2494 = vsub.f32 %v505, %v2493
    %2495 = vmatprep.subr.mxu0 %v2494
    %v2496 = vand.u32 %v504, 4294901760
    %v2497 = vsub.f32 %v504, %v2496
    %2498 = vmatpush1.msra.mxu0 %v2497
    %v2499 = vand.u32 %v502, 4294901760
    %v2500 = vsub.f32 %v502, %v2499
    %2501 = vmatprep.subr.mxu0 %v2500
    %v2502 = vand.u32 %v501, 4294901760
    %v2503 = vsub.f32 %v501, %v2502
    %2504 = vmatpush1.msra.mxu0 %v2503
    %v2505 = vand.u32 %v499, 4294901760
    %v2506 = vsub.f32 %v499, %v2505
    %2507 = vmatprep.subr.mxu0 %v2506
    %v2508 = vand.u32 %v498, 4294901760
    %v2509 = vsub.f32 %v498, %v2508
    %2510 = vmatpush1.msra.mxu0 %v2509
    %v2511 = vand.u32 %v496, 4294901760
    %v2512 = vsub.f32 %v496, %v2511
    %2513 = vmatprep.subr.mxu0 %v2512
    %v2514 = vand.u32 %v495, 4294901760
    %v2515 = vsub.f32 %v495, %v2514
    %2516 = vmatpush1.msra.mxu0 %v2515
    %v2517 = vand.u32 %v493, 4294901760
    %v2518 = vsub.f32 %v493, %v2517
    %2519 = vmatprep.subr.mxu0 %v2518
    %v2520 = vand.u32 %v492, 4294901760
    %v2521 = vsub.f32 %v492, %v2520
    %2522 = vmatpush1.msra.mxu0 %v2521
    %v2523 = vand.u32 %v586, 4294901760
    %v2524 = vsub.f32 %v586, %v2523
    %2525 = vmatprep.subr.mxu0 %v2524
    %v2526 = vand.u32 %v585, 4294901760
    %v2527 = vsub.f32 %v585, %v2526
    %2528 = vmatpush2.msra.mxu0 %v2527
    %v2529 = vand.u32 %v583, 4294901760
    %v2530 = vsub.f32 %v583, %v2529
    %2531 = vmatprep.subr.mxu0 %v2530
    %v2532 = vand.u32 %v582, 4294901760
    %v2533 = vsub.f32 %v582, %v2532
    %2534 = vmatpush2.msra.mxu0 %v2533
    %v2535 = vand.u32 %v580, 4294901760
    %v2536 = vsub.f32 %v580, %v2535
    %2537 = vmatprep.subr.mxu0 %v2536
    %v2538 = vand.u32 %v579, 4294901760
    %v2539 = vsub.f32 %v579, %v2538
    %2540 = vmatpush2.msra.mxu0 %v2539
    %v2541 = vand.u32 %v577, 4294901760
    %v2542 = vsub.f32 %v577, %v2541
    %2543 = vmatprep.subr.mxu0 %v2542
    %v2544 = vand.u32 %v576, 4294901760
    %v2545 = vsub.f32 %v576, %v2544
    %2546 = vmatpush2.msra.mxu0 %v2545
    %v2547 = vand.u32 %v574, 4294901760
    %v2548 = vsub.f32 %v574, %v2547
    %2549 = vmatprep.subr.mxu0 %v2548
    %v2550 = vand.u32 %v573, 4294901760
    %v2551 = vsub.f32 %v573, %v2550
    %2552 = vmatpush2.msra.mxu0 %v2551
    %v2553 = vand.u32 %v571, 4294901760
    %v2554 = vsub.f32 %v571, %v2553
    %2555 = vmatprep.subr.mxu0 %v2554
    %v2556 = vand.u32 %v570, 4294901760
    %v2557 = vsub.f32 %v570, %v2556
    %2558 = vmatpush2.msra.mxu0 %v2557
    %v2559 = vand.u32 %v568, 4294901760
    %v2560 = vsub.f32 %v568, %v2559
    %2561 = vmatprep.subr.mxu0 %v2560
    %v2562 = vand.u32 %v567, 4294901760
    %v2563 = vsub.f32 %v567, %v2562
    %2564 = vmatpush2.msra.mxu0 %v2563
    %v2565 = vand.u32 %v565, 4294901760
    %v2566 = vsub.f32 %v565, %v2565
    %2567 = vmatprep.subr.mxu0 %v2566
    %v2568 = vand.u32 %v564, 4294901760
    %v2569 = vsub.f32 %v564, %v2568
    %2570 = vmatpush2.msra.mxu0 %v2569
    %v2571 = vand.u32 %v562, 4294901760
    %v2572 = vsub.f32 %v562, %v2571
    %2573 = vmatprep.subr.mxu0 %v2572
    %v2574 = vand.u32 %v561, 4294901760
    %v2575 = vsub.f32 %v561, %v2574
    %2576 = vmatpush2.msra.mxu0 %v2575
    %v2577 = vand.u32 %v559, 4294901760
    %v2578 = vsub.f32 %v559, %v2577
    %2579 = vmatprep.subr.mxu0 %v2578
    %v2580 = vand.u32 %v558, 4294901760
    %v2581 = vsub.f32 %v558, %v2580
    %2582 = vmatpush2.msra.mxu0 %v2581
    %v2583 = vand.u32 %v556, 4294901760
    %v2584 = vsub.f32 %v556, %v2583
    %2585 = vmatprep.subr.mxu0 %v2584
    %v2586 = vand.u32 %v555, 4294901760
    %v2587 = vsub.f32 %v555, %v2586
    %2588 = vmatpush2.msra.mxu0 %v2587
    %v2589 = vand.u32 %v553, 4294901760
    %v2590 = vsub.f32 %v553, %v2589
    %2591 = vmatprep.subr.mxu0 %v2590
    %v2592 = vand.u32 %v552, 4294901760
    %v2593 = vsub.f32 %v552, %v2592
    %2594 = vmatpush2.msra.mxu0 %v2593
    %v2595 = vand.u32 %v550, 4294901760
    %v2596 = vsub.f32 %v550, %v2595
    %2597 = vmatprep.subr.mxu0 %v2596
    %v2598 = vand.u32 %v549, 4294901760
    %v2599 = vsub.f32 %v549, %v2598
    %2600 = vmatpush2.msra.mxu0 %v2599
    %v2601 = vand.u32 %v547, 4294901760
    %v2602 = vsub.f32 %v547, %v2601
    %2603 = vmatprep.subr.mxu0 %v2602
    %v2604 = vand.u32 %v546, 4294901760
    %v2605 = vsub.f32 %v546, %v2604
    %2606 = vmatpush2.msra.mxu0 %v2605
    %v2607 = vand.u32 %v544, 4294901760
    %v2608 = vsub.f32 %v544, %v2607
    %2609 = vmatprep.subr.mxu0 %v2608
    %v2610 = vand.u32 %v543, 4294901760
    %v2611 = vsub.f32 %v543, %v2610
    %2612 = vmatpush2.msra.mxu0 %v2611
    %v2613 = vand.u32 %v541, 4294901760
    %v2614 = vsub.f32 %v541, %v2613
    %2615 = vmatprep.subr.mxu0 %v2614
    %v2616 = vand.u32 %v540, 4294901760
    %v2617 = vsub.f32 %v540, %v2616
    %2618 = vmatpush2.msra.mxu0 %v2617
    %v2619 = vand.u32 %v395, 4294901760
    %v2620 = vsub.f32 %v395, %v2619
    %2621 = vmatprep.mubr.f32.mxu0 %v2620
    %v2622 = vand.u32 %v394, 4294901760
    %v2623 = vsub.f32 %v394, %v2622
    %2624 = vmatmul.mubr.f32.gmra.mxu0 %v2623
    %v2625 = vpop.f32.mrf.mxu0
    %v2626 = vadd.f32 %v2423, %v2625
    %v2627 = vpop.f32.mrf.mxu0
    %v2628 = vadd.f32 %v2425, %v2627
    %2629 = vdwg.mxu0
    %v2630 = vand.u32 %v538, 4294901760
    %2631 = vmatprep.subr.mxu0 %v2630
    %v2632 = vand.u32 %v537, 4294901760
    %2633 = vmatpush1.msra.mxu0 %v2632
    %v2634 = vand.u32 %v535, 4294901760
    %2635 = vmatprep.subr.mxu0 %v2634
    %v2636 = vand.u32 %v534, 4294901760
    %2637 = vmatpush1.msra.mxu0 %v2636
    %v2638 = vand.u32 %v532, 4294901760
    %2639 = vmatprep.subr.mxu0 %v2638
    %v2640 = vand.u32 %v531, 4294901760
    %2641 = vmatpush1.msra.mxu0 %v2640
    %v2642 = vand.u32 %v529, 4294901760
    %2643 = vmatprep.subr.mxu0 %v2642
    %v2644 = vand.u32 %v528, 4294901760
    %2645 = vmatpush1.msra.mxu0 %v2644
    %v2646 = vand.u32 %v526, 4294901760
    %2647 = vmatprep.subr.mxu0 %v2646
    %v2648 = vand.u32 %v525, 4294901760
    %2649 = vmatpush1.msra.mxu0 %v2648
    %v2650 = vand.u32 %v523, 4294901760
    %2651 = vmatprep.subr.mxu0 %v2650
    %v2652 = vand.u32 %v522, 4294901760
    %2653 = vmatpush1.msra.mxu0 %v2652
    %v2654 = vand.u32 %v520, 4294901760
    %2655 = vmatprep.subr.mxu0 %v2654
    %v2656 = vand.u32 %v519, 4294901760
    %2657 = vmatpush1.msra.mxu0 %v2656
    %v2658 = vand.u32 %v517, 4294901760
    %2659 = vmatprep.subr.mxu0 %v2658
    %v2660 = vand.u32 %v516, 4294901760
    %2661 = vmatpush1.msra.mxu0 %v2660
    %v2662 = vand.u32 %v514, 4294901760
    %2663 = vmatprep.subr.mxu0 %v2662
    %v2664 = vand.u32 %v513, 4294901760
    %2665 = vmatpush1.msra.mxu0 %v2664
    %v2666 = vand.u32 %v511, 4294901760
    %2667 = vmatprep.subr.mxu0 %v2666
    %v2668 = vand.u32 %v510, 4294901760
    %2669 = vmatpush1.msra.mxu0 %v2668
    %v2670 = vand.u32 %v508, 4294901760
    %2671 = vmatprep.subr.mxu0 %v2670
    %v2672 = vand.u32 %v507, 4294901760
    %2673 = vmatpush1.msra.mxu0 %v2672
    %v2674 = vand.u32 %v505, 4294901760
    %2675 = vmatprep.subr.mxu0 %v2674
    %v2676 = vand.u32 %v504, 4294901760
    %2677 = vmatpush1.msra.mxu0 %v2676
    %v2678 = vand.u32 %v502, 4294901760
    %2679 = vmatprep.subr.mxu0 %v2678
    %v2680 = vand.u32 %v501, 4294901760
    %2681 = vmatpush1.msra.mxu0 %v2680
    %v2682 = vand.u32 %v499, 4294901760
    %2683 = vmatprep.subr.mxu0 %v2682
    %v2684 = vand.u32 %v498, 4294901760
    %2685 = vmatpush1.msra.mxu0 %v2684
    %v2686 = vand.u32 %v496, 4294901760
    %2687 = vmatprep.subr.mxu0 %v2686
    %v2688 = vand.u32 %v495, 4294901760
    %2689 = vmatpush1.msra.mxu0 %v2688
    %v2690 = vand.u32 %v493, 4294901760
    %2691 = vmatprep.subr.mxu0 %v2690
    %v2692 = vand.u32 %v492, 4294901760
    %2693 = vmatpush1.msra.mxu0 %v2692
    %v2694 = vand.u32 %v586, 4294901760
    %2695 = vmatprep.subr.mxu0 %v2694
    %v2696 = vand.u32 %v585, 4294901760
    %2697 = vmatpush2.msra.mxu0 %v2696
    %v2698 = vand.u32 %v583, 4294901760
    %2699 = vmatprep.subr.mxu0 %v2698
    %v2700 = vand.u32 %v582, 4294901760
    %2701 = vmatpush2.msra.mxu0 %v2700
    %v2702 = vand.u32 %v580, 4294901760
    %2703 = vmatprep.subr.mxu0 %v2702
    %v2704 = vand.u32 %v579, 4294901760
    %2705 = vmatpush2.msra.mxu0 %v2704
    %v2706 = vand.u32 %v577, 4294901760
    %2707 = vmatprep.subr.mxu0 %v2706
    %v2708 = vand.u32 %v576, 4294901760
    %2709 = vmatpush2.msra.mxu0 %v2708
    %v2710 = vand.u32 %v574, 4294901760
    %2711 = vmatprep.subr.mxu0 %v2710
    %v2712 = vand.u32 %v573, 4294901760
    %2713 = vmatpush2.msra.mxu0 %v2712
    %v2714 = vand.u32 %v571, 4294901760
    %2715 = vmatprep.subr.mxu0 %v2714
    %v2716 = vand.u32 %v570, 4294901760
    %2717 = vmatpush2.msra.mxu0 %v2716
    %v2718 = vand.u32 %v568, 4294901760
    %2719 = vmatprep.subr.mxu0 %v2718
    %v2720 = vand.u32 %v567, 4294901760
    %2721 = vmatpush2.msra.mxu0 %v2720
    %v2722 = vand.u32 %v565, 4294901760
    %2723 = vmatprep.subr.mxu0 %v2722
    %v2724 = vand.u32 %v564, 4294901760
    %2725 = vmatpush2.msra.mxu0 %v2724
    %v2726 = vand.u32 %v562, 4294901760
    %2727 = vmatprep.subr.mxu0 %v2726
    %v2728 = vand.u32 %v561, 4294901760
    %2729 = vmatpush2.msra.mxu0 %v2728
    %v2730 = vand.u32 %v559, 4294901760
    %2731 = vmatprep.subr.mxu0 %v2730
    %v2732 = vand.u32 %v558, 4294901760
    %2733 = vmatpush2.msra.mxu0 %v2732
    %v2734 = vand.u32 %v556, 4294901760
    %2735 = vmatprep.subr.mxu0 %v2734
    %v2736 = vand.u32 %v555, 4294901760
    %2737 = vmatpush2.msra.mxu0 %v2736
    %v2738 = vand.u32 %v553, 4294901760
    %2739 = vmatprep.subr.mxu0 %v2738
    %v2740 = vand.u32 %v552, 4294901760
    %2741 = vmatpush2.msra.mxu0 %v2740
    %v2742 = vand.u32 %v550, 4294901760
    %2743 = vmatprep.subr.mxu0 %v2742
    %v2744 = vand.u32 %v549, 4294901760
    %2745 = vmatpush2.msra.mxu0 %v2744
    %v2746 = vand.u32 %v547, 4294901760
    %2747 = vmatprep.subr.mxu0 %v2746
    %v2748 = vand.u32 %v546, 4294901760
    %2749 = vmatpush2.msra.mxu0 %v2748
    %v2750 = vand.u32 %v544, 4294901760
    %2751 = vmatprep.subr.mxu0 %v2750
    %v2752 = vand.u32 %v543, 4294901760
    %2753 = vmatpush2.msra.mxu0 %v2752
    %v2754 = vand.u32 %v541, 4294901760
    %2755 = vmatprep.subr.mxu0 %v2754
    %v2756 = vand.u32 %v540, 4294901760
    %2757 = vmatpush2.msra.mxu0 %v2756
    %v2758 = vand.u32 %v395, 4294901760
    %v2759 = vsub.f32 %v395, %v2758
    %v2760 = vand.u32 %v2759, 4294901760
    %2761 = vmatprep.mubr.f32.mxu0 %v2760
    %v2762 = vand.u32 %v394, 4294901760
    %v2763 = vsub.f32 %v394, %v2762
    %v2764 = vand.u32 %v2763, 4294901760
    %2765 = vmatmul.mubr.f32.gmra.mxu0 %v2764
    %v2766 = vpop.f32.mrf.mxu0
    %v2767 = vadd.f32 %v2626, %v2766
    %v2768 = vpop.f32.mrf.mxu0
    %v2769 = vadd.f32 %v2628, %v2768
    %2770 = vdwg.mxu0
    %v2771 = vand.u32 %v538, 4294901760
    %v2772 = vsub.f32 %v538, %v2771
    %v2773 = vand.u32 %v2772, 4294901760
    %2774 = vmatprep.subr.mxu0 %v2773
    %v2775 = vand.u32 %v537, 4294901760
    %v2776 = vsub.f32 %v537, %v2775
    %v2777 = vand.u32 %v2776, 4294901760
    %2778 = vmatpush1.msra.mxu0 %v2777
    %v2779 = vand.u32 %v535, 4294901760
    %v2780 = vsub.f32 %v535, %v2779
    %v2781 = vand.u32 %v2780, 4294901760
    %2782 = vmatprep.subr.mxu0 %v2781
    %v2783 = vand.u32 %v534, 4294901760
    %v2784 = vsub.f32 %v534, %v2783
    %v2785 = vand.u32 %v2784, 4294901760
    %2786 = vmatpush1.msra.mxu0 %v2785
    %v2787 = vand.u32 %v532, 4294901760
    %v2788 = vsub.f32 %v532, %v2787
    %v2789 = vand.u32 %v2788, 4294901760
    %2790 = vmatprep.subr.mxu0 %v2789
    %v2791 = vand.u32 %v531, 4294901760
    %v2792 = vsub.f32 %v531, %v2791
    %v2793 = vand.u32 %v2792, 4294901760
    %2794 = vmatpush1.msra.mxu0 %v2793
    %v2795 = vand.u32 %v529, 4294901760
    %v2796 = vsub.f32 %v529, %v2795
    %v2797 = vand.u32 %v2796, 4294901760
    %2798 = vmatprep.subr.mxu0 %v2797
    %v2799 = vand.u32 %v528, 4294901760
    %v2800 = vsub.f32 %v528, %v2799
    %v2801 = vand.u32 %v2800, 4294901760
    %2802 = vmatpush1.msra.mxu0 %v2801
    %v2803 = vand.u32 %v526, 4294901760
    %v2804 = vsub.f32 %v526, %v2803
    %v2805 = vand.u32 %v2804, 4294901760
    %2806 = vmatprep.subr.mxu0 %v2805
    %v2807 = vand.u32 %v525, 4294901760
    %v2808 = vsub.f32 %v525, %v2807
    %v2809 = vand.u32 %v2808, 4294901760
    %2810 = vmatpush1.msra.mxu0 %v2809
    %v2811 = vand.u32 %v523, 4294901760
    %v2812 = vsub.f32 %v523, %v2811
    %v2813 = vand.u32 %v2812, 4294901760
    %2814 = vmatprep.subr.mxu0 %v2813
    %v2815 = vand.u32 %v522, 4294901760
    %v2816 = vsub.f32 %v522, %v2815
    %v2817 = vand.u32 %v2816, 4294901760
    %2818 = vmatpush1.msra.mxu0 %v2817
    %v2819 = vand.u32 %v520, 4294901760
    %v2820 = vsub.f32 %v520, %v2819
    %v2821 = vand.u32 %v2820, 4294901760
    %2822 = vmatprep.subr.mxu0 %v2821
    %v2823 = vand.u32 %v519, 4294901760
    %v2824 = vsub.f32 %v519, %v2823
    %v2825 = vand.u32 %v2824, 4294901760
    %2826 = vmatpush1.msra.mxu0 %v2825
    %v2827 = vand.u32 %v517, 4294901760
    %v2828 = vsub.f32 %v517, %v2827
    %v2829 = vand.u32 %v2828, 4294901760
    %2830 = vmatprep.subr.mxu0 %v2829
    %v2831 = vand.u32 %v516, 4294901760
    %v2832 = vsub.f32 %v516, %v2831
    %v2833 = vand.u32 %v2832, 4294901760
    %2834 = vmatpush1.msra.mxu0 %v2833
    %v2835 = vand.u32 %v514, 4294901760
    %v2836 = vsub.f32 %v514, %v2835
    %v2837 = vand.u32 %v2836, 4294901760
    %2838 = vmatprep.subr.mxu0 %v2837
    %v2839 = vand.u32 %v513, 4294901760
    %v2840 = vsub.f32 %v513, %v2839
    %v2841 = vand.u32 %v2840, 4294901760
    %2842 = vmatpush1.msra.mxu0 %v2841
    %v2843 = vand.u32 %v511, 4294901760
    %v2844 = vsub.f32 %v511, %v2843
    %v2845 = vand.u32 %v2844, 4294901760
    %2846 = vmatprep.subr.mxu0 %v2845
    %v2847 = vand.u32 %v510, 4294901760
    %v2848 = vsub.f32 %v510, %v2847
    %v2849 = vand.u32 %v2848, 4294901760
    %2850 = vmatpush1.msra.mxu0 %v2849
    %v2851 = vand.u32 %v508, 4294901760
    %v2852 = vsub.f32 %v508, %v2851
    %v2853 = vand.u32 %v2852, 4294901760
    %2854 = vmatprep.subr.mxu0 %v2853
    %v2855 = vand.u32 %v507, 4294901760
    %v2856 = vsub.f32 %v507, %v2855
    %v2857 = vand.u32 %v2856, 4294901760
    %2858 = vmatpush1.msra.mxu0 %v2857
    %v2859 = vand.u32 %v505, 4294901760
    %v2860 = vsub.f32 %v505, %v2859
    %v2861 = vand.u32 %v2860, 4294901760
    %2862 = vmatprep.subr.mxu0 %v2861
    %v2863 = vand.u32 %v504, 4294901760
    %v2864 = vsub.f32 %v504, %v2863
    %v2865 = vand.u32 %v2864, 4294901760
    %2866 = vmatpush1.msra.mxu0 %v2865
    %v2867 = vand.u32 %v502, 4294901760
    %v2868 = vsub.f32 %v502, %v2867
    %v2869 = vand.u32 %v2868, 4294901760
    %2870 = vmatprep.subr.mxu0 %v2869
    %v2871 = vand.u32 %v501, 4294901760
    %v2872 = vsub.f32 %v501, %v2871
    %v2873 = vand.u32 %v2872, 4294901760
    %2874 = vmatpush1.msra.mxu0 %v2873
    %v2875 = vand.u32 %v499, 4294901760
    %v2876 = vsub.f32 %v499, %v2875
    %v2877 = vand.u32 %v2876, 4294901760
    %2878 = vmatprep.subr.mxu0 %v2877
    %v2879 = vand.u32 %v498, 4294901760
    %v2880 = vsub.f32 %v498, %v2879
    %v2881 = vand.u32 %v2880, 4294901760
    %2882 = vmatpush1.msra.mxu0 %v2881
    %v2883 = vand.u32 %v496, 4294901760
    %v2884 = vsub.f32 %v496, %v2883
    %v2885 = vand.u32 %v2884, 4294901760
    %2886 = vmatprep.subr.mxu0 %v2885
    %v2887 = vand.u32 %v495, 4294901760
    %v2888 = vsub.f32 %v495, %v2887
    %v2889 = vand.u32 %v2888, 4294901760
    %2890 = vmatpush1.msra.mxu0 %v2889
    %v2891 = vand.u32 %v493, 4294901760
    %v2892 = vsub.f32 %v493, %v2891
    %v2893 = vand.u32 %v2892, 4294901760
    %2894 = vmatprep.subr.mxu0 %v2893
    %v2895 = vand.u32 %v492, 4294901760
    %v2896 = vsub.f32 %v492, %v2895
    %v2897 = vand.u32 %v2896, 4294901760
    %2898 = vmatpush1.msra.mxu0 %v2897
    %v2899 = vand.u32 %v586, 4294901760
    %v2900 = vsub.f32 %v586, %v2899
    %v2901 = vand.u32 %v2900, 4294901760
    %2902 = vmatprep.subr.mxu0 %v2901
    %v2903 = vand.u32 %v585, 4294901760
    %v2904 = vsub.f32 %v585, %v2903
    %v2905 = vand.u32 %v2904, 4294901760
    %2906 = vmatpush2.msra.mxu0 %v2905
    %v2907 = vand.u32 %v583, 4294901760
    %v2908 = vsub.f32 %v583, %v2907
    %v2909 = vand.u32 %v2908, 4294901760
    %2910 = vmatprep.subr.mxu0 %v2909
    %v2911 = vand.u32 %v582, 4294901760
    %v2912 = vsub.f32 %v582, %v2911
    %v2913 = vand.u32 %v2912, 4294901760
    %2914 = vmatpush2.msra.mxu0 %v2913
    %v2915 = vand.u32 %v580, 4294901760
    %v2916 = vsub.f32 %v580, %v2915
    %v2917 = vand.u32 %v2916, 4294901760
    %2918 = vmatprep.subr.mxu0 %v2917
    %v2919 = vand.u32 %v579, 4294901760
    %v2920 = vsub.f32 %v579, %v2919
    %v2921 = vand.u32 %v2920, 4294901760
    %2922 = vmatpush2.msra.mxu0 %v2921
    %v2923 = vand.u32 %v577, 4294901760
    %v2924 = vsub.f32 %v577, %v2923
    %v2925 = vand.u32 %v2924, 4294901760
    %2926 = vmatprep.subr.mxu0 %v2925
    %v2927 = vand.u32 %v576, 4294901760
    %v2928 = vsub.f32 %v576, %v2927
    %v2929 = vand.u32 %v2928, 4294901760
    %2930 = vmatpush2.msra.mxu0 %v2929
    %v2931 = vand.u32 %v574, 4294901760
    %v2932 = vsub.f32 %v574, %v2931
    %v2933 = vand.u32 %v2932, 4294901760
    %2934 = vmatprep.subr.mxu0 %v2933
    %v2935 = vand.u32 %v573, 4294901760
    %v2936 = vsub.f32 %v573, %v2935
    %v2937 = vand.u32 %v2936, 4294901760
    %2938 = vmatpush2.msra.mxu0 %v2937
    %v2939 = vand.u32 %v571, 4294901760
    %v2940 = vsub.f32 %v571, %v2939
    %v2941 = vand.u32 %v2940, 4294901760
    %2942 = vmatprep.subr.mxu0 %v2941
    %v2943 = vand.u32 %v570, 4294901760
    %v2944 = vsub.f32 %v570, %v2943
    %v2945 = vand.u32 %v2944, 4294901760
    %2946 = vmatpush2.msra.mxu0 %v2945
    %v2947 = vand.u32 %v568, 4294901760
    %v2948 = vsub.f32 %v568, %v2947
    %v2949 = vand.u32 %v2948, 4294901760
    %2950 = vmatprep.subr.mxu0 %v2949
    %v2951 = vand.u32 %v567, 4294901760
    %v2952 = vsub.f32 %v567, %v2951
    %v2953 = vand.u32 %v2952, 4294901760
    %2954 = vmatpush2.msra.mxu0 %v2953
    %v2955 = vand.u32 %v565, 4294901760
    %v2956 = vsub.f32 %v565, %v2955
    %v2957 = vand.u32 %v2956, 4294901760
    %2958 = vmatprep.subr.mxu0 %v2957
    %v2959 = vand.u32 %v564, 4294901760
    %v2960 = vsub.f32 %v564, %v2959
    %v2961 = vand.u32 %v2960, 4294901760
    %2962 = vmatpush2.msra.mxu0 %v2961
    %v2963 = vand.u32 %v562, 4294901760
    %v2964 = vsub.f32 %v562, %v2963
    %v2965 = vand.u32 %v2964, 4294901760
    %2966 = vmatprep.subr.mxu0 %v2965
    %v2967 = vand.u32 %v561, 4294901760
    %v2968 = vsub.f32 %v561, %v2967
    %v2969 = vand.u32 %v2968, 4294901760
    %2970 = vmatpush2.msra.mxu0 %v2969
    %v2971 = vand.u32 %v559, 4294901760
    %v2972 = vsub.f32 %v559, %v2971
    %v2973 = vand.u32 %v2972, 4294901760
    %2974 = vmatprep.subr.mxu0 %v2973
    %v2975 = vand.u32 %v558, 4294901760
    %v2976 = vsub.f32 %v558, %v2975
    %v2977 = vand.u32 %v2976, 4294901760
    %2978 = vmatpush2.msra.mxu0 %v2977
    %v2979 = vand.u32 %v556, 4294901760
    %v2980 = vsub.f32 %v556, %v2979
    %v2981 = vand.u32 %v2980, 4294901760
    %2982 = vmatprep.subr.mxu0 %v2981
    %v2983 = vand.u32 %v555, 4294901760
    %v2984 = vsub.f32 %v555, %v2983
    %v2985 = vand.u32 %v2984, 4294901760
    %2986 = vmatpush2.msra.mxu0 %v2985
    %v2987 = vand.u32 %v553, 4294901760
    %v2988 = vsub.f32 %v553, %v2987
    %v2989 = vand.u32 %v2988, 4294901760
    %2990 = vmatprep.subr.mxu0 %v2989
    %v2991 = vand.u32 %v552, 4294901760
    %v2992 = vsub.f32 %v552, %v2991
    %v2993 = vand.u32 %v2992, 4294901760
    %2994 = vmatpush2.msra.mxu0 %v2993
    %v2995 = vand.u32 %v550, 4294901760
    %v2996 = vsub.f32 %v550, %v2995
    %v2997 = vand.u32 %v2996, 4294901760
    %2998 = vmatprep.subr.mxu0 %v2997
    %v2999 = vand.u32 %v549, 4294901760
    %v3000 = vsub.f32 %v549, %v2999
    %v3001 = vand.u32 %v3000, 4294901760
    %3002 = vmatpush2.msra.mxu0 %v3001
    %v3003 = vand.u32 %v547, 4294901760
    %v3004 = vsub.f32 %v547, %v3003
    %v3005 = vand.u32 %v3004, 4294901760
    %3006 = vmatprep.subr.mxu0 %v3005
    %v3007 = vand.u32 %v546, 4294901760
    %v3008 = vsub.f32 %v546, %v3007
    %v3009 = vand.u32 %v3008, 4294901760
    %3010 = vmatpush2.msra.mxu0 %v3009
    %v3011 = vand.u32 %v544, 4294901760
    %v3012 = vsub.f32 %v544, %v3011
    %v3013 = vand.u32 %v3012, 4294901760
    %3014 = vmatprep.subr.mxu0 %v3013
    %v3015 = vand.u32 %v543, 4294901760
    %v3016 = vsub.f32 %v543, %v3015
    %v3017 = vand.u32 %v3016, 4294901760
    %3018 = vmatpush2.msra.mxu0 %v3017
    %v3019 = vand.u32 %v541, 4294901760
    %v3020 = vsub.f32 %v541, %v3019
    %v3021 = vand.u32 %v3020, 4294901760
    %3022 = vmatprep.subr.mxu0 %v3021
    %v3023 = vand.u32 %v540, 4294901760
    %v3024 = vsub.f32 %v540, %v3023
    %v3025 = vand.u32 %v3024, 4294901760
    %3026 = vmatpush2.msra.mxu0 %v3025
    %v3027 = vand.u32 %v395, 4294901760
    %3028 = vmatprep.mubr.f32.mxu0 %v3027
    %v3029 = vand.u32 %v394, 4294901760
    %3030 = vmatmul.mubr.f32.gmra.mxu0 %v3029
    %v3031 = vpop.f32.mrf.mxu0
    %v3032 = vadd.f32 %v2767, %v3031
    %v3033 = vpop.f32.mrf.mxu0
    %v3034 = vadd.f32 %v2769, %v3033
    %3035 = vdwg.mxu0
    %v3036 = vand.u32 %v538, 4294901760
    %3037 = vmatprep.subr.mxu0 %v3036
    %v3038 = vand.u32 %v537, 4294901760
    %3039 = vmatpush1.msra.mxu0 %v3038
    %v3040 = vand.u32 %v535, 4294901760
    %3041 = vmatprep.subr.mxu0 %v3040
    %v3042 = vand.u32 %v534, 4294901760
    %3043 = vmatpush1.msra.mxu0 %v3042
    %v3044 = vand.u32 %v532, 4294901760
    %3045 = vmatprep.subr.mxu0 %v3044
    %v3046 = vand.u32 %v531, 4294901760
    %3047 = vmatpush1.msra.mxu0 %v3046
    %v3048 = vand.u32 %v529, 4294901760
    %3049 = vmatprep.subr.mxu0 %v3048
    %v3050 = vand.u32 %v528, 4294901760
    %3051 = vmatpush1.msra.mxu0 %v3050
    %v3052 = vand.u32 %v526, 4294901760
    %3053 = vmatprep.subr.mxu0 %v3052
    %v3054 = vand.u32 %v525, 4294901760
    %3055 = vmatpush1.msra.mxu0 %v3054
    %v3056 = vand.u32 %v523, 4294901760
    %3057 = vmatprep.subr.mxu0 %v3056
    %v3058 = vand.u32 %v522, 4294901760
    %3059 = vmatpush1.msra.mxu0 %v3058
    %v3060 = vand.u32 %v520, 4294901760
    %3061 = vmatprep.subr.mxu0 %v3060
    %v3062 = vand.u32 %v519, 4294901760
    %3063 = vmatpush1.msra.mxu0 %v3062
    %v3064 = vand.u32 %v517, 4294901760
    %3065 = vmatprep.subr.mxu0 %v3064
    %v3066 = vand.u32 %v516, 4294901760
    %3067 = vmatpush1.msra.mxu0 %v3066
    %v3068 = vand.u32 %v514, 4294901760
    %3069 = vmatprep.subr.mxu0 %v3068
    %v3070 = vand.u32 %v513, 4294901760
    %3071 = vmatpush1.msra.mxu0 %v3070
    %v3072 = vand.u32 %v511, 4294901760
    %3073 = vmatprep.subr.mxu0 %v3072
    %v3074 = vand.u32 %v510, 4294901760
    %3075 = vmatpush1.msra.mxu0 %v3074
    %v3076 = vand.u32 %v508, 4294901760
    %3077 = vmatprep.subr.mxu0 %v3076
    %v3078 = vand.u32 %v507, 4294901760
    %3079 = vmatpush1.msra.mxu0 %v3078
    %v3080 = vand.u32 %v505, 4294901760
    %3081 = vmatprep.subr.mxu0 %v3080
    %v3082 = vand.u32 %v504, 4294901760
    %3083 = vmatpush1.msra.mxu0 %v3082
    %v3084 = vand.u32 %v502, 4294901760
    %3085 = vmatprep.subr.mxu0 %v3084
    %v3086 = vand.u32 %v501, 4294901760
    %3087 = vmatpush1.msra.mxu0 %v3086
    %v3088 = vand.u32 %v499, 4294901760
    %3089 = vmatprep.subr.mxu0 %v3088
    %v3090 = vand.u32 %v498, 4294901760
    %3091 = vmatpush1.msra.mxu0 %v3090
    %v3092 = vand.u32 %v496, 4294901760
    %3093 = vmatprep.subr.mxu0 %v3092
    %v3094 = vand.u32 %v495, 4294901760
    %3095 = vmatpush1.msra.mxu0 %v3094
    %v3096 = vand.u32 %v493, 4294901760
    %3097 = vmatprep.subr.mxu0 %v3096
    %v3098 = vand.u32 %v492, 4294901760
    %3099 = vmatpush1.msra.mxu0 %v3098
    %v3100 = vand.u32 %v586, 4294901760
    %3101 = vmatprep.subr.mxu0 %v3100
    %v3102 = vand.u32 %v585, 4294901760
    %3103 = vmatpush2.msra.mxu0 %v3102
    %v3104 = vand.u32 %v583, 4294901760
    %3105 = vmatprep.subr.mxu0 %v3104
    %v3106 = vand.u32 %v582, 4294901760
    %3107 = vmatpush2.msra.mxu0 %v3106
    %v3108 = vand.u32 %v580, 4294901760
    %3109 = vmatprep.subr.mxu0 %v3108
    %v3110 = vand.u32 %v579, 4294901760
    %3111 = vmatpush2.msra.mxu0 %v3110
    %v3112 = vand.u32 %v577, 4294901760
    %3113 = vmatprep.subr.mxu0 %v3112
    %v3114 = vand.u32 %v576, 4294901760
    %3115 = vmatpush2.msra.mxu0 %v3114
    %v3116 = vand.u32 %v574, 4294901760
    %3117 = vmatprep.subr.mxu0 %v3116
    %v3118 = vand.u32 %v573, 4294901760
    %3119 = vmatpush2.msra.mxu0 %v3118
    %v3120 = vand.u32 %v571, 4294901760
    %3121 = vmatprep.subr.mxu0 %v3120
    %v3122 = vand.u32 %v570, 4294901760
    %3123 = vmatpush2.msra.mxu0 %v3122
    %v3124 = vand.u32 %v568, 4294901760
    %3125 = vmatprep.subr.mxu0 %v3124
    %v3126 = vand.u32 %v567, 4294901760
    %3127 = vmatpush2.msra.mxu0 %v3126
    %v3128 = vand.u32 %v565, 4294901760
    %3129 = vmatprep.subr.mxu0 %v3128
    %v3130 = vand.u32 %v564, 4294901760
    %3131 = vmatpush2.msra.mxu0 %v3130
    %v3132 = vand.u32 %v562, 4294901760
    %3133 = vmatprep.subr.mxu0 %v3132
    %v3134 = vand.u32 %v561, 4294901760
    %3135 = vmatpush2.msra.mxu0 %v3134
    %v3136 = vand.u32 %v559, 4294901760
    %3137 = vmatprep.subr.mxu0 %v3136
    %v3138 = vand.u32 %v558, 4294901760
    %3139 = vmatpush2.msra.mxu0 %v3138
    %v3140 = vand.u32 %v556, 4294901760
    %3141 = vmatprep.subr.mxu0 %v3140
    %v3142 = vand.u32 %v555, 4294901760
    %3143 = vmatpush2.msra.mxu0 %v3142
    %v3144 = vand.u32 %v553, 4294901760
    %3145 = vmatprep.subr.mxu0 %v3144
    %v3146 = vand.u32 %v552, 4294901760
    %3147 = vmatpush2.msra.mxu0 %v3146
    %v3148 = vand.u32 %v550, 4294901760
    %3149 = vmatprep.subr.mxu0 %v3148
    %v3150 = vand.u32 %v549, 4294901760
    %3151 = vmatpush2.msra.mxu0 %v3150
    %v3152 = vand.u32 %v547, 4294901760
    %3153 = vmatprep.subr.mxu0 %v3152
    %v3154 = vand.u32 %v546, 4294901760
    %3155 = vmatpush2.msra.mxu0 %v3154
    %v3156 = vand.u32 %v544, 4294901760
    %3157 = vmatprep.subr.mxu0 %v3156
    %v3158 = vand.u32 %v543, 4294901760
    %3159 = vmatpush2.msra.mxu0 %v3158
    %v3160 = vand.u32 %v541, 4294901760
    %3161 = vmatprep.subr.mxu0 %v3160
    %v3162 = vand.u32 %v540, 4294901760
    %3163 = vmatpush2.msra.mxu0 %v3162
    %v3164 = vand.u32 %v395, 4294901760
    %3165 = vmatprep.mubr.f32.mxu0 %v3164
    %v3166 = vand.u32 %v394, 4294901760
    %3167 = vmatmul.mubr.f32.gmra.mxu0 %v3166
    %v3168 = vpop.f32.mrf.mxu0
    %v3169 = vadd.f32 %v3032, %v3168
    %v3170 = vpop.f32.mrf.mxu0
    %v3171 = vadd.f32 %v3034, %v3170
    %3172 = vdwg.mxu0
    %3173 = vmatprep.subr.mxu0 0.0
    %v3174 = vand.u32 %v443, 4294901760
    %3175 = vmatpush1.msra.mxu0 %v3174
    %3176 = vmatprep.subr.mxu0 0.0
    %v3177 = vand.u32 %v440, 4294901760
    %3178 = vmatpush1.msra.mxu0 %v3177
    %3179 = vmatprep.subr.mxu0 0.0
    %v3180 = vand.u32 %v437, 4294901760
    %3181 = vmatpush1.msra.mxu0 %v3180
    %3182 = vmatprep.subr.mxu0 0.0
    %v3183 = vand.u32 %v434, 4294901760
    %3184 = vmatpush1.msra.mxu0 %v3183
    %3185 = vmatprep.subr.mxu0 0.0
    %v3186 = vand.u32 %v431, 4294901760
    %3187 = vmatpush1.msra.mxu0 %v3186
    %3188 = vmatprep.subr.mxu0 0.0
    %v3189 = vand.u32 %v428, 4294901760
    %3190 = vmatpush1.msra.mxu0 %v3189
    %3191 = vmatprep.subr.mxu0 0.0
    %v3192 = vand.u32 %v425, 4294901760
    %3193 = vmatpush1.msra.mxu0 %v3192
    %3194 = vmatprep.subr.mxu0 0.0
    %v3195 = vand.u32 %v422, 4294901760
    %3196 = vmatpush1.msra.mxu0 %v3195
    %3197 = vmatprep.subr.mxu0 0.0
    %v3198 = vand.u32 %v419, 4294901760
    %3199 = vmatpush1.msra.mxu0 %v3198
    %3200 = vmatprep.subr.mxu0 0.0
    %v3201 = vand.u32 %v416, 4294901760
    %3202 = vmatpush1.msra.mxu0 %v3201
    %3203 = vmatprep.subr.mxu0 0.0
    %v3204 = vand.u32 %v413, 4294901760
    %3205 = vmatpush1.msra.mxu0 %v3204
    %3206 = vmatprep.subr.mxu0 0.0
    %v3207 = vand.u32 %v410, 4294901760
    %3208 = vmatpush1.msra.mxu0 %v3207
    %3209 = vmatprep.subr.mxu0 0.0
    %v3210 = vand.u32 %v407, 4294901760
    %3211 = vmatpush1.msra.mxu0 %v3210
    %3212 = vmatprep.subr.mxu0 0.0
    %v3213 = vand.u32 %v404, 4294901760
    %3214 = vmatpush1.msra.mxu0 %v3213
    %3215 = vmatprep.subr.mxu0 0.0
    %v3216 = vand.u32 %v401, 4294901760
    %3217 = vmatpush1.msra.mxu0 %v3216
    %3218 = vmatprep.subr.mxu0 0.0
    %v3219 = vand.u32 %v398, 4294901760
    %3220 = vmatpush1.msra.mxu0 %v3219
    %3221 = vmatprep.subr.mxu0 0.0
    %v3222 = vand.u32 %v491, 4294901760
    %3223 = vmatpush2.msra.mxu0 %v3222
    %3224 = vmatprep.subr.mxu0 0.0
    %v3225 = vand.u32 %v488, 4294901760
    %3226 = vmatpush2.msra.mxu0 %v3225
    %3227 = vmatprep.subr.mxu0 0.0
    %v3228 = vand.u32 %v485, 4294901760
    %3229 = vmatpush2.msra.mxu0 %v3228
    %3230 = vmatprep.subr.mxu0 0.0
    %v3231 = vand.u32 %v482, 4294901760
    %3232 = vmatpush2.msra.mxu0 %v3231
    %3233 = vmatprep.subr.mxu0 0.0
    %v3234 = vand.u32 %v479, 4294901760
    %3235 = vmatpush2.msra.mxu0 %v3234
    %3236 = vmatprep.subr.mxu0 0.0
    %v3237 = vand.u32 %v476, 4294901760
    %3238 = vmatpush2.msra.mxu0 %v3237
    %3239 = vmatprep.subr.mxu0 0.0
    %v3240 = vand.u32 %v473, 4294901760
    %3241 = vmatpush2.msra.mxu0 %v3240
    %3242 = vmatprep.subr.mxu0 0.0
    %v3243 = vand.u32 %v470, 4294901760
    %3244 = vmatpush2.msra.mxu0 %v3243
    %3245 = vmatprep.subr.mxu0 0.0
    %v3246 = vand.u32 %v467, 4294901760
    %3247 = vmatpush2.msra.mxu0 %v3246
    %3248 = vmatprep.subr.mxu0 0.0
    %v3249 = vand.u32 %v464, 4294901760
    %3250 = vmatpush2.msra.mxu0 %v3249
    %3251 = vmatprep.subr.mxu0 0.0
    %v3252 = vand.u32 %v461, 4294901760
    %3253 = vmatpush2.msra.mxu0 %v3252
    %3254 = vmatprep.subr.mxu0 0.0
    %v3255 = vand.u32 %v458, 4294901760
    %3256 = vmatpush2.msra.mxu0 %v3255
    %3257 = vmatprep.subr.mxu0 0.0
    %v3258 = vand.u32 %v455, 4294901760
    %3259 = vmatpush2.msra.mxu0 %v3258
    %3260 = vmatprep.subr.mxu0 0.0
    %v3261 = vand.u32 %v452, 4294901760
    %3262 = vmatpush2.msra.mxu0 %v3261
    %3263 = vmatprep.subr.mxu0 0.0
    %v3264 = vand.u32 %v449, 4294901760
    %3265 = vmatpush2.msra.mxu0 %v3264
    %3266 = vmatprep.subr.mxu0 0.0
    %v3267 = vand.u32 %v446, 4294901760
    %3268 = vmatpush2.msra.mxu0 %v3267
    %v3269 = vand.u32 %v393, 4294901760
    %v3270 = vsub.f32 %v393, %v3269
    %v3271 = vand.u32 %v3270, 4294901760
    %v3272 = vsub.f32 %v3270, %v3271
    %v3273 = vand.u32 %v3272, 4294901760
    %3274 = vmatprep.mubr.f32.mxu0 %v3273
    %v3275 = vand.u32 %v392, 4294901760
    %v3276 = vsub.f32 %v392, %v3275
    %v3277 = vand.u32 %v3276, 4294901760
    %v3278 = vsub.f32 %v3276, %v3277
    %v3279 = vand.u32 %v3278, 4294901760
    %3280 = vmatmul.mubr.f32.gmra.mxu0 %v3279
    %v3281 = vpop.f32.mrf.mxu0
    %v3282 = vadd.f32 %v601, %v3281
    %v3283 = vpop.f32.mrf.mxu0
    %3284 = vdwg.mxu0
    %3285 = vmatprep.subr.mxu0 0.0
    %v3286 = vand.u32 %v443, 4294901760
    %v3287 = vsub.f32 %v443, %v3286
    %v3288 = vand.u32 %v3287, 4294901760
    %v3289 = vsub.f32 %v3287, %v3288
    %v3290 = vand.u32 %v3289, 4294901760
    %3291 = vmatpush1.msra.mxu0 %v3290
    %3292 = vmatprep.subr.mxu0 0.0
    %v3293 = vand.u32 %v440, 4294901760
    %v3294 = vsub.f32 %v440, %v3293
    %v3295 = vand.u32 %v3294, 4294901760
    %v3296 = vsub.f32 %v3294, %v3295
    %v3297 = vand.u32 %v3296, 4294901760
    %3298 = vmatpush1.msra.mxu0 %v3297
    %3299 = vmatprep.subr.mxu0 0.0
    %v3300 = vand.u32 %v437, 4294901760
    %v3301 = vsub.f32 %v437, %v3300
    %v3302 = vand.u32 %v3301, 4294901760
    %v3303 = vsub.f32 %v3301, %v3302
    %v3304 = vand.u32 %v3303, 4294901760
    %3305 = vmatpush1.msra.mxu0 %v3304
    %3306 = vmatprep.subr.mxu0 0.0
    %v3307 = vand.u32 %v434, 4294901760
    %v3308 = vsub.f32 %v434, %v3307
    %v3309 = vand.u32 %v3308, 4294901760
    %v3310 = vsub.f32 %v3308, %v3309
    %v3311 = vand.u32 %v3310, 4294901760
    %3312 = vmatpush1.msra.mxu0 %v3311
    %3313 = vmatprep.subr.mxu0 0.0
    %v3314 = vand.u32 %v431, 4294901760
    %v3315 = vsub.f32 %v431, %v3314
    %v3316 = vand.u32 %v3315, 4294901760
    %v3317 = vsub.f32 %v3315, %v3316
    %v3318 = vand.u32 %v3317, 4294901760
    %3319 = vmatpush1.msra.mxu0 %v3318
    %3320 = vmatprep.subr.mxu0 0.0
    %v3321 = vand.u32 %v428, 4294901760
    %v3322 = vsub.f32 %v428, %v3321
    %v3323 = vand.u32 %v3322, 4294901760
    %v3324 = vsub.f32 %v3322, %v3323
    %v3325 = vand.u32 %v3324, 4294901760
    %3326 = vmatpush1.msra.mxu0 %v3325
    %3327 = vmatprep.subr.mxu0 0.0
    %v3328 = vand.u32 %v425, 4294901760
    %v3329 = vsub.f32 %v425, %v3328
    %v3330 = vand.u32 %v3329, 4294901760
    %v3331 = vsub.f32 %v3329, %v3330
    %v3332 = vand.u32 %v3331, 4294901760
    %3333 = vmatpush1.msra.mxu0 %v3332
    %3334 = vmatprep.subr.mxu0 0.0
    %v3335 = vand.u32 %v422, 4294901760
    %v3336 = vsub.f32 %v422, %v3335
    %v3337 = vand.u32 %v3336, 4294901760
    %v3338 = vsub.f32 %v3336, %v3337
    %v3339 = vand.u32 %v3338, 4294901760
    %3340 = vmatpush1.msra.mxu0 %v3339
    %3341 = vmatprep.subr.mxu0 0.0
    %v3342 = vand.u32 %v419, 4294901760
    %v3343 = vsub.f32 %v419, %v3342
    %v3344 = vand.u32 %v3343, 4294901760
    %v3345 = vsub.f32 %v3343, %v3344
    %v3346 = vand.u32 %v3345, 4294901760
    %3347 = vmatpush1.msra.mxu0 %v3346
    %3348 = vmatprep.subr.mxu0 0.0
    %v3349 = vand.u32 %v416, 4294901760
    %v3350 = vsub.f32 %v416, %v3349
    %v3351 = vand.u32 %v3350, 4294901760
    %v3352 = vsub.f32 %v3350, %v3351
    %v3353 = vand.u32 %v3352, 4294901760
    %3354 = vmatpush1.msra.mxu0 %v3353
    %3355 = vmatprep.subr.mxu0 0.0
    %v3356 = vand.u32 %v413, 4294901760
    %v3357 = vsub.f32 %v413, %v3356
    %v3358 = vand.u32 %v3357, 4294901760
    %v3359 = vsub.f32 %v3357, %v3358
    %v3360 = vand.u32 %v3359, 4294901760
    %3361 = vmatpush1.msra.mxu0 %v3360
    %3362 = vmatprep.subr.mxu0 0.0
    %v3363 = vand.u32 %v410, 4294901760
    %v3364 = vsub.f32 %v410, %v3363
    %v3365 = vand.u32 %v3364, 4294901760
    %v3366 = vsub.f32 %v3364, %v3365
    %v3367 = vand.u32 %v3366, 4294901760
    %3368 = vmatpush1.msra.mxu0 %v3367
    %3369 = vmatprep.subr.mxu0 0.0
    %v3370 = vand.u32 %v407, 4294901760
    %v3371 = vsub.f32 %v407, %v3370
    %v3372 = vand.u32 %v3371, 4294901760
    %v3373 = vsub.f32 %v3371, %v3372
    %v3374 = vand.u32 %v3373, 4294901760
    %3375 = vmatpush1.msra.mxu0 %v3374
    %3376 = vmatprep.subr.mxu0 0.0
    %v3377 = vand.u32 %v404, 4294901760
    %v3378 = vsub.f32 %v404, %v3377
    %v3379 = vand.u32 %v3378, 4294901760
    %v3380 = vsub.f32 %v3378, %v3379
    %v3381 = vand.u32 %v3380, 4294901760
    %3382 = vmatpush1.msra.mxu0 %v3381
    %3383 = vmatprep.subr.mxu0 0.0
    %v3384 = vand.u32 %v401, 4294901760
    %v3385 = vsub.f32 %v401, %v3384
    %v3386 = vand.u32 %v3385, 4294901760
    %v3387 = vsub.f32 %v3385, %v3386
    %v3388 = vand.u32 %v3387, 4294901760
    %3389 = vmatpush1.msra.mxu0 %v3388
    %3390 = vmatprep.subr.mxu0 0.0
    %v3391 = vand.u32 %v398, 4294901760
    %v3392 = vsub.f32 %v398, %v3391
    %v3393 = vand.u32 %v3392, 4294901760
    %v3394 = vsub.f32 %v3392, %v3393
    %v3395 = vand.u32 %v3394, 4294901760
    %3396 = vmatpush1.msra.mxu0 %v3395
    %3397 = vmatprep.subr.mxu0 0.0
    %v3398 = vand.u32 %v491, 4294901760
    %v3399 = vsub.f32 %v491, %v3398
    %v3400 = vand.u32 %v3399, 4294901760
    %v3401 = vsub.f32 %v3399, %v3400
    %v3402 = vand.u32 %v3401, 4294901760
    %3403 = vmatpush2.msra.mxu0 %v3402
    %3404 = vmatprep.subr.mxu0 0.0
    %v3405 = vand.u32 %v488, 4294901760
    %v3406 = vsub.f32 %v488, %v3405
    %v3407 = vand.u32 %v3406, 4294901760
    %v3408 = vsub.f32 %v3406, %v3407
    %v3409 = vand.u32 %v3408, 4294901760
    %3410 = vmatpush2.msra.mxu0 %v3409
    %3411 = vmatprep.subr.mxu0 0.0
    %v3412 = vand.u32 %v485, 4294901760
    %v3413 = vsub.f32 %v485, %v3412
    %v3414 = vand.u32 %v3413, 4294901760
    %v3415 = vsub.f32 %v3413, %v3414
    %v3416 = vand.u32 %v3415, 4294901760
    %3417 = vmatpush2.msra.mxu0 %v3416
    %3418 = vmatprep.subr.mxu0 0.0
    %v3419 = vand.u32 %v482, 4294901760
    %v3420 = vsub.f32 %v482, %v3419
    %v3421 = vand.u32 %v3420, 4294901760
    %v3422 = vsub.f32 %v3420, %v3421
    %v3423 = vand.u32 %v3422, 4294901760
    %3424 = vmatpush2.msra.mxu0 %v3423
    %3425 = vmatprep.subr.mxu0 0.0
    %v3426 = vand.u32 %v479, 4294901760
    %v3427 = vsub.f32 %v479, %v3426
    %v3428 = vand.u32 %v3427, 4294901760
    %v3429 = vsub.f32 %v3427, %v3428
    %v3430 = vand.u32 %v3429, 4294901760
    %3431 = vmatpush2.msra.mxu0 %v3430
    %3432 = vmatprep.subr.mxu0 0.0
    %v3433 = vand.u32 %v476, 4294901760
    %v3434 = vsub.f32 %v476, %v3433
    %v3435 = vand.u32 %v3434, 4294901760
    %v3436 = vsub.f32 %v3434, %v3435
    %v3437 = vand.u32 %v3436, 4294901760
    %3438 = vmatpush2.msra.mxu0 %v3437
    %3439 = vmatprep.subr.mxu0 0.0
    %v3440 = vand.u32 %v473, 4294901760
    %v3441 = vsub.f32 %v473, %v3440
    %v3442 = vand.u32 %v3441, 4294901760
    %v3443 = vsub.f32 %v3441, %v3442
    %v3444 = vand.u32 %v3443, 4294901760
    %3445 = vmatpush2.msra.mxu0 %v3444
    %3446 = vmatprep.subr.mxu0 0.0
    %v3447 = vand.u32 %v470, 4294901760
    %v3448 = vsub.f32 %v470, %v3447
    %v3449 = vand.u32 %v3448, 4294901760
    %v3450 = vsub.f32 %v3448, %v3449
    %v3451 = vand.u32 %v3450, 4294901760
    %3452 = vmatpush2.msra.mxu0 %v3451
    %3453 = vmatprep.subr.mxu0 0.0
    %v3454 = vand.u32 %v467, 4294901760
    %v3455 = vsub.f32 %v467, %v3454
    %v3456 = vand.u32 %v3455, 4294901760
    %v3457 = vsub.f32 %v3455, %v3456
    %v3458 = vand.u32 %v3457, 4294901760
    %3459 = vmatpush2.msra.mxu0 %v3458
    %3460 = vmatprep.subr.mxu0 0.0
    %v3461 = vand.u32 %v464, 4294901760
    %v3462 = vsub.f32 %v464, %v3461
    %v3463 = vand.u32 %v3462, 4294901760
    %v3464 = vsub.f32 %v3462, %v3463
    %v3465 = vand.u32 %v3464, 4294901760
    %3466 = vmatpush2.msra.mxu0 %v3465
    %3467 = vmatprep.subr.mxu0 0.0
    %v3468 = vand.u32 %v461, 4294901760
    %v3469 = vsub.f32 %v461, %v3468
    %v3470 = vand.u32 %v3469, 4294901760
    %v3471 = vsub.f32 %v3469, %v3470
    %v3472 = vand.u32 %v3471, 4294901760
    %3473 = vmatpush2.msra.mxu0 %v3472
    %3474 = vmatprep.subr.mxu0 0.0
    %v3475 = vand.u32 %v458, 4294901760
    %v3476 = vsub.f32 %v458, %v3475
    %v3477 = vand.u32 %v3476, 4294901760
    %v3478 = vsub.f32 %v3476, %v3477
    %v3479 = vand.u32 %v3478, 4294901760
    %3480 = vmatpush2.msra.mxu0 %v3479
    %3481 = vmatprep.subr.mxu0 0.0
    %v3482 = vand.u32 %v455, 4294901760
    %v3483 = vsub.f32 %v455, %v3482
    %v3484 = vand.u32 %v3483, 4294901760
    %v3485 = vsub.f32 %v3483, %v3484
    %v3486 = vand.u32 %v3485, 4294901760
    %3487 = vmatpush2.msra.mxu0 %v3486
    %3488 = vmatprep.subr.mxu0 0.0
    %v3489 = vand.u32 %v452, 4294901760
    %v3490 = vsub.f32 %v452, %v3489
    %v3491 = vand.u32 %v3490, 4294901760
    %v3492 = vsub.f32 %v3490, %v3491
    %v3493 = vand.u32 %v3492, 4294901760
    %3494 = vmatpush2.msra.mxu0 %v3493
    %3495 = vmatprep.subr.mxu0 0.0
    %v3496 = vand.u32 %v449, 4294901760
    %v3497 = vsub.f32 %v449, %v3496
    %v3498 = vand.u32 %v3497, 4294901760
    %v3499 = vsub.f32 %v3497, %v3498
    %v3500 = vand.u32 %v3499, 4294901760
    %3501 = vmatpush2.msra.mxu0 %v3500
    %3502 = vmatprep.subr.mxu0 0.0
    %v3503 = vand.u32 %v446, 4294901760
    %v3504 = vsub.f32 %v446, %v3503
    %v3505 = vand.u32 %v3504, 4294901760
    %v3506 = vsub.f32 %v3504, %v3505
    %v3507 = vand.u32 %v3506, 4294901760
    %3508 = vmatpush2.msra.mxu0 %v3507
    %v3509 = vand.u32 %v393, 4294901760
    %3510 = vmatprep.mubr.f32.mxu0 %v3509
    %v3511 = vand.u32 %v392, 4294901760
    %3512 = vmatmul.mubr.f32.gmra.mxu0 %v3511
    %v3513 = vpop.f32.mrf.mxu0
    %v3514 = vadd.f32 %v3282, %v3513
    %v3515 = vpop.f32.mrf.mxu0
    %3516 = vdwg.mxu0
    %3517 = vmatprep.subr.mxu0 0.0
    %v3518 = vand.u32 %v443, 4294901760
    %v3519 = vsub.f32 %v443, %v3518
    %3520 = vmatpush1.msra.mxu0 %v3519
    %3521 = vmatprep.subr.mxu0 0.0
    %v3522 = vand.u32 %v440, 4294901760
    %v3523 = vsub.f32 %v440, %v3522
    %3524 = vmatpush1.msra.mxu0 %v3523
    %3525 = vmatprep.subr.mxu0 0.0
    %v3526 = vand.u32 %v437, 4294901760
    %v3527 = vsub.f32 %v437, %v3526
    %3528 = vmatpush1.msra.mxu0 %v3527
    %3529 = vmatprep.subr.mxu0 0.0
    %v3530 = vand.u32 %v434, 4294901760
    %v3531 = vsub.f32 %v434, %v3530
    %3532 = vmatpush1.msra.mxu0 %v3531
    %3533 = vmatprep.subr.mxu0 0.0
    %v3534 = vand.u32 %v431, 4294901760
    %v3535 = vsub.f32 %v431, %v3534
    %3536 = vmatpush1.msra.mxu0 %v3535
    %3537 = vmatprep.subr.mxu0 0.0
    %v3538 = vand.u32 %v428, 4294901760
    %v3539 = vsub.f32 %v428, %v3538
    %3540 = vmatpush1.msra.mxu0 %v3539
    %3541 = vmatprep.subr.mxu0 0.0
    %v3542 = vand.u32 %v425, 4294901760
    %v3543 = vsub.f32 %v425, %v3542
    %3544 = vmatpush1.msra.mxu0 %v3543
    %3545 = vmatprep.subr.mxu0 0.0
    %v3546 = vand.u32 %v422, 4294901760
    %v3547 = vsub.f32 %v422, %v3546
    %3548 = vmatpush1.msra.mxu0 %v3547
    %3549 = vmatprep.subr.mxu0 0.0
    %v3550 = vand.u32 %v419, 4294901760
    %v3551 = vsub.f32 %v419, %v3550
    %3552 = vmatpush1.msra.mxu0 %v3551
    %3553 = vmatprep.subr.mxu0 0.0
    %v3554 = vand.u32 %v416, 4294901760
    %v3555 = vsub.f32 %v416, %v3554
    %3556 = vmatpush1.msra.mxu0 %v3555
    %3557 = vmatprep.subr.mxu0 0.0
    %v3558 = vand.u32 %v413, 4294901760
    %v3559 = vsub.f32 %v413, %v3558
    %3560 = vmatpush1.msra.mxu0 %v3559
    %3561 = vmatprep.subr.mxu0 0.0
    %v3562 = vand.u32 %v410, 4294901760
    %v3563 = vsub.f32 %v410, %v3562
    %3564 = vmatpush1.msra.mxu0 %v3563
    %3565 = vmatprep.subr.mxu0 0.0
    %v3566 = vand.u32 %v407, 4294901760
    %v3567 = vsub.f32 %v407, %v3566
    %3568 = vmatpush1.msra.mxu0 %v3567
    %3569 = vmatprep.subr.mxu0 0.0
    %v3570 = vand.u32 %v404, 4294901760
    %v3571 = vsub.f32 %v404, %v3570
    %3572 = vmatpush1.msra.mxu0 %v3571
    %3573 = vmatprep.subr.mxu0 0.0
    %v3574 = vand.u32 %v401, 4294901760
    %v3575 = vsub.f32 %v401, %v3574
    %3576 = vmatpush1.msra.mxu0 %v3575
    %3577 = vmatprep.subr.mxu0 0.0
    %v3578 = vand.u32 %v398, 4294901760
    %v3579 = vsub.f32 %v398, %v3578
    %3580 = vmatpush1.msra.mxu0 %v3579
    %3581 = vmatprep.subr.mxu0 0.0
    %v3582 = vand.u32 %v491, 4294901760
    %v3583 = vsub.f32 %v491, %v3582
    %3584 = vmatpush2.msra.mxu0 %v3583
    %3585 = vmatprep.subr.mxu0 0.0
    %v3586 = vand.u32 %v488, 4294901760
    %v3587 = vsub.f32 %v488, %v3586
    %3588 = vmatpush2.msra.mxu0 %v3587
    %3589 = vmatprep.subr.mxu0 0.0
    %v3590 = vand.u32 %v485, 4294901760
    %v3591 = vsub.f32 %v485, %v3590
    %3592 = vmatpush2.msra.mxu0 %v3591
    %3593 = vmatprep.subr.mxu0 0.0
    %v3594 = vand.u32 %v482, 4294901760
    %v3595 = vsub.f32 %v482, %v3594
    %3596 = vmatpush2.msra.mxu0 %v3595
    %3597 = vmatprep.subr.mxu0 0.0
    %v3598 = vand.u32 %v479, 4294901760
    %v3599 = vsub.f32 %v479, %v3598
    %3600 = vmatpush2.msra.mxu0 %v3599
    %3601 = vmatprep.subr.mxu0 0.0
    %v3602 = vand.u32 %v476, 4294901760
    %v3603 = vsub.f32 %v476, %v3602
    %3604 = vmatpush2.msra.mxu0 %v3603
    %3605 = vmatprep.subr.mxu0 0.0
    %v3606 = vand.u32 %v473, 4294901760
    %v3607 = vsub.f32 %v473, %v3606
    %3608 = vmatpush2.msra.mxu0 %v3607
    %3609 = vmatprep.subr.mxu0 0.0
    %v3610 = vand.u32 %v470, 4294901760
    %v3611 = vsub.f32 %v470, %v3610
    %3612 = vmatpush2.msra.mxu0 %v3611
    %3613 = vmatprep.subr.mxu0 0.0
    %v3614 = vand.u32 %v467, 4294901760
    %v3615 = vsub.f32 %v467, %v3614
    %3616 = vmatpush2.msra.mxu0 %v3615
    %3617 = vmatprep.subr.mxu0 0.0
    %v3618 = vand.u32 %v464, 4294901760
    %v3619 = vsub.f32 %v464, %v3618
    %3620 = vmatpush2.msra.mxu0 %v3619
    %3621 = vmatprep.subr.mxu0 0.0
    %v3622 = vand.u32 %v461, 4294901760
    %v3623 = vsub.f32 %v461, %v3622
    %3624 = vmatpush2.msra.mxu0 %v3623
    %3625 = vmatprep.subr.mxu0 0.0
    %v3626 = vand.u32 %v458, 4294901760
    %v3627 = vsub.f32 %v458, %v3626
    %3628 = vmatpush2.msra.mxu0 %v3627
    %3629 = vmatprep.subr.mxu0 0.0
    %v3630 = vand.u32 %v455, 4294901760
    %v3631 = vsub.f32 %v455, %v3630
    %3632 = vmatpush2.msra.mxu0 %v3631
    %3633 = vmatprep.subr.mxu0 0.0
    %v3634 = vand.u32 %v452, 4294901760
    %v3635 = vsub.f32 %v452, %v3634
    %3636 = vmatpush2.msra.mxu0 %v3635
    %3637 = vmatprep.subr.mxu0 0.0
    %v3638 = vand.u32 %v449, 4294901760
    %v3639 = vsub.f32 %v449, %v3638
    %3640 = vmatpush2.msra.mxu0 %v3639
    %3641 = vmatprep.subr.mxu0 0.0
    %v3642 = vand.u32 %v446, 4294901760
    %v3643 = vsub.f32 %v446, %v3642
    %3644 = vmatpush2.msra.mxu0 %v3643
    %v3645 = vand.u32 %v393, 4294901760
    %v3646 = vsub.f32 %v393, %v3645
    %3647 = vmatprep.mubr.f32.mxu0 %v3646
    %v3648 = vand.u32 %v392, 4294901760
    %v3649 = vsub.f32 %v392, %v3648
    %3650 = vmatmul.mubr.f32.gmra.mxu0 %v3649
    %v3651 = vpop.f32.mrf.mxu0
    %v3652 = vadd.f32 %v3514, %v3651
    %v3653 = vpop.f32.mrf.mxu0
    %3654 = vdwg.mxu0
    %3655 = vmatprep.subr.mxu0 0.0
    %v3656 = vand.u32 %v443, 4294901760
    %3657 = vmatpush1.msra.mxu0 %v3656
    %3658 = vmatprep.subr.mxu0 0.0
    %v3659 = vand.u32 %v440, 4294901760
    %3660 = vmatpush1.msra.mxu0 %v3659
    %3661 = vmatprep.subr.mxu0 0.0
    %v3662 = vand.u32 %v437, 4294901760
    %3663 = vmatpush1.msra.mxu0 %v3662
    %3664 = vmatprep.subr.mxu0 0.0
    %v3665 = vand.u32 %v434, 4294901760
    %3666 = vmatpush1.msra.mxu0 %v3665
    %3667 = vmatprep.subr.mxu0 0.0
    %v3668 = vand.u32 %v431, 4294901760
    %3669 = vmatpush1.msra.mxu0 %v3668
    %3670 = vmatprep.subr.mxu0 0.0
    %v3671 = vand.u32 %v428, 4294901760
    %3672 = vmatpush1.msra.mxu0 %v3671
    %3673 = vmatprep.subr.mxu0 0.0
    %v3674 = vand.u32 %v425, 4294901760
    %3675 = vmatpush1.msra.mxu0 %v3674
    %3676 = vmatprep.subr.mxu0 0.0
    %v3677 = vand.u32 %v422, 4294901760
    %3678 = vmatpush1.msra.mxu0 %v3677
    %3679 = vmatprep.subr.mxu0 0.0
    %v3680 = vand.u32 %v419, 4294901760
    %3681 = vmatpush1.msra.mxu0 %v3680
    %3682 = vmatprep.subr.mxu0 0.0
    %v3683 = vand.u32 %v416, 4294901760
    %3684 = vmatpush1.msra.mxu0 %v3683
    %3685 = vmatprep.subr.mxu0 0.0
    %v3686 = vand.u32 %v413, 4294901760
    %3687 = vmatpush1.msra.mxu0 %v3686
    %3688 = vmatprep.subr.mxu0 0.0
    %v3689 = vand.u32 %v410, 4294901760
    %3690 = vmatpush1.msra.mxu0 %v3689
    %3691 = vmatprep.subr.mxu0 0.0
    %v3692 = vand.u32 %v407, 4294901760
    %3693 = vmatpush1.msra.mxu0 %v3692
    %3694 = vmatprep.subr.mxu0 0.0
    %v3695 = vand.u32 %v404, 4294901760
    %3696 = vmatpush1.msra.mxu0 %v3695
    %3697 = vmatprep.subr.mxu0 0.0
    %v3698 = vand.u32 %v401, 4294901760
    %3699 = vmatpush1.msra.mxu0 %v3698
    %3700 = vmatprep.subr.mxu0 0.0
    %v3701 = vand.u32 %v398, 4294901760
    %3702 = vmatpush1.msra.mxu0 %v3701
    %3703 = vmatprep.subr.mxu0 0.0
    %v3704 = vand.u32 %v491, 4294901760
    %3705 = vmatpush2.msra.mxu0 %v3704
    %3706 = vmatprep.subr.mxu0 0.0
    %v3707 = vand.u32 %v488, 4294901760
    %3708 = vmatpush2.msra.mxu0 %v3707
    %3709 = vmatprep.subr.mxu0 0.0
    %v3710 = vand.u32 %v485, 4294901760
    %3711 = vmatpush2.msra.mxu0 %v3710
    %3712 = vmatprep.subr.mxu0 0.0
    %v3713 = vand.u32 %v482, 4294901760
    %3714 = vmatpush2.msra.mxu0 %v3713
    %3715 = vmatprep.subr.mxu0 0.0
    %v3716 = vand.u32 %v479, 4294901760
    %3717 = vmatpush2.msra.mxu0 %v3716
    %3718 = vmatprep.subr.mxu0 0.0
    %v3719 = vand.u32 %v476, 4294901760
    %3720 = vmatpush2.msra.mxu0 %v3719
    %3721 = vmatprep.subr.mxu0 0.0
    %v3722 = vand.u32 %v473, 4294901760
    %3723 = vmatpush2.msra.mxu0 %v3722
    %3724 = vmatprep.subr.mxu0 0.0
    %v3725 = vand.u32 %v470, 4294901760
    %3726 = vmatpush2.msra.mxu0 %v3725
    %3727 = vmatprep.subr.mxu0 0.0
    %v3728 = vand.u32 %v467, 4294901760
    %3729 = vmatpush2.msra.mxu0 %v3728
    %3730 = vmatprep.subr.mxu0 0.0
    %v3731 = vand.u32 %v464, 4294901760
    %3732 = vmatpush2.msra.mxu0 %v3731
    %3733 = vmatprep.subr.mxu0 0.0
    %v3734 = vand.u32 %v461, 4294901760
    %3735 = vmatpush2.msra.mxu0 %v3734
    %3736 = vmatprep.subr.mxu0 0.0
    %v3737 = vand.u32 %v458, 4294901760
    %3738 = vmatpush2.msra.mxu0 %v3737
    %3739 = vmatprep.subr.mxu0 0.0
    %v3740 = vand.u32 %v455, 4294901760
    %3741 = vmatpush2.msra.mxu0 %v3740
    %3742 = vmatprep.subr.mxu0 0.0
    %v3743 = vand.u32 %v452, 4294901760
    %3744 = vmatpush2.msra.mxu0 %v3743
    %3745 = vmatprep.subr.mxu0 0.0
    %v3746 = vand.u32 %v449, 4294901760
    %3747 = vmatpush2.msra.mxu0 %v3746
    %3748 = vmatprep.subr.mxu0 0.0
    %v3749 = vand.u32 %v446, 4294901760
    %3750 = vmatpush2.msra.mxu0 %v3749
    %v3751 = vand.u32 %v393, 4294901760
    %v3752 = vsub.f32 %v393, %v3751
    %v3753 = vand.u32 %v3752, 4294901760
    %3754 = vmatprep.mubr.f32.mxu0 %v3753
    %v3755 = vand.u32 %v392, 4294901760
    %v3756 = vsub.f32 %v392, %v3755
    %v3757 = vand.u32 %v3756, 4294901760
    %3758 = vmatmul.mubr.f32.gmra.mxu0 %v3757
    %v3759 = vpop.f32.mrf.mxu0
    %v3760 = vadd.f32 %v3652, %v3759
    %v3761 = vpop.f32.mrf.mxu0
    %3762 = vdwg.mxu0
    %3763 = vmatprep.subr.mxu0 0.0
    %v3764 = vand.u32 %v443, 4294901760
    %v3765 = vsub.f32 %v443, %v3764
    %v3766 = vand.u32 %v3765, 4294901760
    %3767 = vmatpush1.msra.mxu0 %v3766
    %3768 = vmatprep.subr.mxu0 0.0
    %v3769 = vand.u32 %v440, 4294901760
    %v3770 = vsub.f32 %v440, %v3769
    %v3771 = vand.u32 %v3770, 4294901760
    %3772 = vmatpush1.msra.mxu0 %v3771
    %3773 = vmatprep.subr.mxu0 0.0
    %v3774 = vand.u32 %v437, 4294901760
    %v3775 = vsub.f32 %v437, %v3774
    %v3776 = vand.u32 %v3775, 4294901760
    %3777 = vmatpush1.msra.mxu0 %v3776
    %3778 = vmatprep.subr.mxu0 0.0
    %v3779 = vand.u32 %v434, 4294901760
    %v3780 = vsub.f32 %v434, %v3779
    %v3781 = vand.u32 %v3780, 4294901760
    %3782 = vmatpush1.msra.mxu0 %v3781
    %3783 = vmatprep.subr.mxu0 0.0
    %v3784 = vand.u32 %v431, 4294901760
    %v3785 = vsub.f32 %v431, %v3784
    %v3786 = vand.u32 %v3785, 4294901760
    %3787 = vmatpush1.msra.mxu0 %v3786
    %3788 = vmatprep.subr.mxu0 0.0
    %v3789 = vand.u32 %v428, 4294901760
    %v3790 = vsub.f32 %v428, %v3789
    %v3791 = vand.u32 %v3790, 4294901760
    %3792 = vmatpush1.msra.mxu0 %v3791
    %3793 = vmatprep.subr.mxu0 0.0
    %v3794 = vand.u32 %v425, 4294901760
    %v3795 = vsub.f32 %v425, %v3794
    %v3796 = vand.u32 %v3795, 4294901760
    %3797 = vmatpush1.msra.mxu0 %v3796
    %3798 = vmatprep.subr.mxu0 0.0
    %v3799 = vand.u32 %v422, 4294901760
    %v3800 = vsub.f32 %v422, %v3799
    %v3801 = vand.u32 %v3800, 4294901760
    %3802 = vmatpush1.msra.mxu0 %v3801
    %3803 = vmatprep.subr.mxu0 0.0
    %v3804 = vand.u32 %v419, 4294901760
    %v3805 = vsub.f32 %v419, %v3804
    %v3806 = vand.u32 %v3805, 4294901760
    %3807 = vmatpush1.msra.mxu0 %v3806
    %3808 = vmatprep.subr.mxu0 0.0
    %v3809 = vand.u32 %v416, 4294901760
    %v3810 = vsub.f32 %v416, %v3809
    %v3811 = vand.u32 %v3810, 4294901760
    %3812 = vmatpush1.msra.mxu0 %v3811
    %3813 = vmatprep.subr.mxu0 0.0
    %v3814 = vand.u32 %v413, 4294901760
    %v3815 = vsub.f32 %v413, %v3814
    %v3816 = vand.u32 %v3815, 4294901760
    %3817 = vmatpush1.msra.mxu0 %v3816
    %3818 = vmatprep.subr.mxu0 0.0
    %v3819 = vand.u32 %v410, 4294901760
    %v3820 = vsub.f32 %v410, %v3819
    %v3821 = vand.u32 %v3820, 4294901760
    %3822 = vmatpush1.msra.mxu0 %v3821
    %3823 = vmatprep.subr.mxu0 0.0
    %v3824 = vand.u32 %v407, 4294901760
    %v3825 = vsub.f32 %v407, %v3824
    %v3826 = vand.u32 %v3825, 4294901760
    %3827 = vmatpush1.msra.mxu0 %v3826
    %3828 = vmatprep.subr.mxu0 0.0
    %v3829 = vand.u32 %v404, 4294901760
    %v3830 = vsub.f32 %v404, %v3829
    %v3831 = vand.u32 %v3830, 4294901760
    %3832 = vmatpush1.msra.mxu0 %v3831
    %3833 = vmatprep.subr.mxu0 0.0
    %v3834 = vand.u32 %v401, 4294901760
    %v3835 = vsub.f32 %v401, %v3834
    %v3836 = vand.u32 %v3835, 4294901760
    %3837 = vmatpush1.msra.mxu0 %v3836
    %3838 = vmatprep.subr.mxu0 0.0
    %v3839 = vand.u32 %v398, 4294901760
    %v3840 = vsub.f32 %v398, %v3839
    %v3841 = vand.u32 %v3840, 4294901760
    %3842 = vmatpush1.msra.mxu0 %v3841
    %3843 = vmatprep.subr.mxu0 0.0
    %v3844 = vand.u32 %v491, 4294901760
    %v3845 = vsub.f32 %v491, %v3844
    %v3846 = vand.u32 %v3845, 4294901760
    %3847 = vmatpush2.msra.mxu0 %v3846
    %3848 = vmatprep.subr.mxu0 0.0
    %v3849 = vand.u32 %v488, 4294901760
    %v3850 = vsub.f32 %v488, %v3849
    %v3851 = vand.u32 %v3850, 4294901760
    %3852 = vmatpush2.msra.mxu0 %v3851
    %3853 = vmatprep.subr.mxu0 0.0
    %v3854 = vand.u32 %v485, 4294901760
    %v3855 = vsub.f32 %v485, %v3854
    %v3856 = vand.u32 %v3855, 4294901760
    %3857 = vmatpush2.msra.mxu0 %v3856
    %3858 = vmatprep.subr.mxu0 0.0
    %v3859 = vand.u32 %v482, 4294901760
    %v3860 = vsub.f32 %v482, %v3859
    %v3861 = vand.u32 %v3860, 4294901760
    %3862 = vmatpush2.msra.mxu0 %v3861
    %3863 = vmatprep.subr.mxu0 0.0
    %v3864 = vand.u32 %v479, 4294901760
    %v3865 = vsub.f32 %v479, %v3864
    %v3866 = vand.u32 %v3865, 4294901760
    %3867 = vmatpush2.msra.mxu0 %v3866
    %3868 = vmatprep.subr.mxu0 0.0
    %v3869 = vand.u32 %v476, 4294901760
    %v3870 = vsub.f32 %v476, %v3869
    %v3871 = vand.u32 %v3870, 4294901760
    %3872 = vmatpush2.msra.mxu0 %v3871
    %3873 = vmatprep.subr.mxu0 0.0
    %v3874 = vand.u32 %v473, 4294901760
    %v3875 = vsub.f32 %v473, %v3874
    %v3876 = vand.u32 %v3875, 4294901760
    %3877 = vmatpush2.msra.mxu0 %v3876
    %3878 = vmatprep.subr.mxu0 0.0
    %v3879 = vand.u32 %v470, 4294901760
    %v3880 = vsub.f32 %v470, %v3879
    %v3881 = vand.u32 %v3880, 4294901760
    %3882 = vmatpush2.msra.mxu0 %v3881
    %3883 = vmatprep.subr.mxu0 0.0
    %v3884 = vand.u32 %v467, 4294901760
    %v3885 = vsub.f32 %v467, %v3884
    %v3886 = vand.u32 %v3885, 4294901760
    %3887 = vmatpush2.msra.mxu0 %v3886
    %3888 = vmatprep.subr.mxu0 0.0
    %v3889 = vand.u32 %v464, 4294901760
    %v3890 = vsub.f32 %v464, %v3889
    %v3891 = vand.u32 %v3890, 4294901760
    %3892 = vmatpush2.msra.mxu0 %v3891
    %3893 = vmatprep.subr.mxu0 0.0
    %v3894 = vand.u32 %v461, 4294901760
    %v3895 = vsub.f32 %v461, %v3894
    %v3896 = vand.u32 %v3895, 4294901760
    %3897 = vmatpush2.msra.mxu0 %v3896
    %3898 = vmatprep.subr.mxu0 0.0
    %v3899 = vand.u32 %v458, 4294901760
    %v3900 = vsub.f32 %v458, %v3899
    %v3901 = vand.u32 %v3900, 4294901760
    %3902 = vmatpush2.msra.mxu0 %v3901
    %3903 = vmatprep.subr.mxu0 0.0
    %v3904 = vand.u32 %v455, 4294901760
    %v3905 = vsub.f32 %v455, %v3904
    %v3906 = vand.u32 %v3905, 4294901760
    %3907 = vmatpush2.msra.mxu0 %v3906
    %3908 = vmatprep.subr.mxu0 0.0
    %v3909 = vand.u32 %v452, 4294901760
    %v3910 = vsub.f32 %v452, %v3909
    %v3911 = vand.u32 %v3910, 4294901760
    %3912 = vmatpush2.msra.mxu0 %v3911
    %3913 = vmatprep.subr.mxu0 0.0
    %v3914 = vand.u32 %v449, 4294901760
    %v3915 = vsub.f32 %v449, %v3914
    %v3916 = vand.u32 %v3915, 4294901760
    %3917 = vmatpush2.msra.mxu0 %v3916
    %3918 = vmatprep.subr.mxu0 0.0
    %v3919 = vand.u32 %v446, 4294901760
    %v3920 = vsub.f32 %v446, %v3919
    %v3921 = vand.u32 %v3920, 4294901760
    %3922 = vmatpush2.msra.mxu0 %v3921
    %v3923 = vand.u32 %v393, 4294901760
    %3924 = vmatprep.mubr.f32.mxu0 %v3923
    %v3925 = vand.u32 %v392, 4294901760
    %3926 = vmatmul.mubr.f32.gmra.mxu0 %v3925
    %v3927 = vpop.f32.mrf.mxu0
    %v3928 = vadd.f32 %v3760, %v3927
    %v3929 = vpop.f32.mrf.mxu0
    %3930 = vdwg.mxu0
    %3931 = vmatprep.subr.mxu0 0.0
    %v3932 = vand.u32 %v443, 4294901760
    %3933 = vmatpush1.msra.mxu0 %v3932
    %3934 = vmatprep.subr.mxu0 0.0
    %v3935 = vand.u32 %v440, 4294901760
    %3936 = vmatpush1.msra.mxu0 %v3935
    %3937 = vmatprep.subr.mxu0 0.0
    %v3938 = vand.u32 %v437, 4294901760
    %3939 = vmatpush1.msra.mxu0 %v3938
    %3940 = vmatprep.subr.mxu0 0.0
    %v3941 = vand.u32 %v434, 4294901760
    %3942 = vmatpush1.msra.mxu0 %v3941
    %3943 = vmatprep.subr.mxu0 0.0
    %v3944 = vand.u32 %v431, 4294901760
    %3945 = vmatpush1.msra.mxu0 %v3944
    %3946 = vmatprep.subr.mxu0 0.0
    %v3947 = vand.u32 %v428, 4294901760
    %3948 = vmatpush1.msra.mxu0 %v3947
    %3949 = vmatprep.subr.mxu0 0.0
    %v3950 = vand.u32 %v425, 4294901760
    %3951 = vmatpush1.msra.mxu0 %v3950
    %3952 = vmatprep.subr.mxu0 0.0
    %v3953 = vand.u32 %v422, 4294901760
    %3954 = vmatpush1.msra.mxu0 %v3953
    %3955 = vmatprep.subr.mxu0 0.0
    %v3956 = vand.u32 %v419, 4294901760
    %3957 = vmatpush1.msra.mxu0 %v3956
    %3958 = vmatprep.subr.mxu0 0.0
    %v3959 = vand.u32 %v416, 4294901760
    %3960 = vmatpush1.msra.mxu0 %v3959
    %3961 = vmatprep.subr.mxu0 0.0
    %v3962 = vand.u32 %v413, 4294901760
    %3963 = vmatpush1.msra.mxu0 %v3962
    %3964 = vmatprep.subr.mxu0 0.0
    %v3965 = vand.u32 %v410, 4294901760
    %3966 = vmatpush1.msra.mxu0 %v3965
    %3967 = vmatprep.subr.mxu0 0.0
    %v3968 = vand.u32 %v407, 4294901760
    %3969 = vmatpush1.msra.mxu0 %v3968
    %3970 = vmatprep.subr.mxu0 0.0
    %v3971 = vand.u32 %v404, 4294901760
    %3972 = vmatpush1.msra.mxu0 %v3971
    %3973 = vmatprep.subr.mxu0 0.0
    %v3974 = vand.u32 %v401, 4294901760
    %3975 = vmatpush1.msra.mxu0 %v3974
    %3976 = vmatprep.subr.mxu0 0.0
    %v3977 = vand.u32 %v398, 4294901760
    %3978 = vmatpush1.msra.mxu0 %v3977
    %3979 = vmatprep.subr.mxu0 0.0
    %v3980 = vand.u32 %v491, 4294901760
    %3981 = vmatpush2.msra.mxu0 %v3980
    %3982 = vmatprep.subr.mxu0 0.0
    %v3983 = vand.u32 %v488, 4294901760
    %3984 = vmatpush2.msra.mxu0 %v3983
    %3985 = vmatprep.subr.mxu0 0.0
    %v3986 = vand.u32 %v485, 4294901760
    %3987 = vmatpush2.msra.mxu0 %v3986
    %3988 = vmatprep.subr.mxu0 0.0
    %v3989 = vand.u32 %v482, 4294901760
    %3990 = vmatpush2.msra.mxu0 %v3989
    %3991 = vmatprep.subr.mxu0 0.0
    %v3992 = vand.u32 %v479, 4294901760
    %3993 = vmatpush2.msra.mxu0 %v3992
    %3994 = vmatprep.subr.mxu0 0.0
    %v3995 = vand.u32 %v476, 4294901760
    %3996 = vmatpush2.msra.mxu0 %v3995
    %3997 = vmatprep.subr.mxu0 0.0
    %v3998 = vand.u32 %v473, 4294901760
    %3999 = vmatpush2.msra.mxu0 %v3998
    %4000 = vmatprep.subr.mxu0 0.0
    %v4001 = vand.u32 %v470, 4294901760
    %4002 = vmatpush2.msra.mxu0 %v4001
    %4003 = vmatprep.subr.mxu0 0.0
    %v4004 = vand.u32 %v467, 4294901760
    %4005 = vmatpush2.msra.mxu0 %v4004
    %4006 = vmatprep.subr.mxu0 0.0
    %v4007 = vand.u32 %v464, 4294901760
    %4008 = vmatpush2.msra.mxu0 %v4007
    %4009 = vmatprep.subr.mxu0 0.0
    %v4010 = vand.u32 %v461, 4294901760
    %4011 = vmatpush2.msra.mxu0 %v4010
    %4012 = vmatprep.subr.mxu0 0.0
    %v4013 = vand.u32 %v458, 4294901760
    %4014 = vmatpush2.msra.mxu0 %v4013
    %4015 = vmatprep.subr.mxu0 0.0
    %v4016 = vand.u32 %v455, 4294901760
    %4017 = vmatpush2.msra.mxu0 %v4016
    %4018 = vmatprep.subr.mxu0 0.0
    %v4019 = vand.u32 %v452, 4294901760
    %4020 = vmatpush2.msra.mxu0 %v4019
    %4021 = vmatprep.subr.mxu0 0.0
    %v4022 = vand.u32 %v449, 4294901760
    %4023 = vmatpush2.msra.mxu0 %v4022
    %4024 = vmatprep.subr.mxu0 0.0
    %v4025 = vand.u32 %v446, 4294901760
    %4026 = vmatpush2.msra.mxu0 %v4025
    %v4027 = vand.u32 %v393, 4294901760
    %4028 = vmatprep.mubr.f32.mxu0 %v4027
    %v4029 = vand.u32 %v392, 4294901760
    %4030 = vmatmul.mubr.f32.gmra.mxu0 %v4029
    %v4031 = vpop.f32.mrf.mxu0
    %v4032 = vadd.f32 %v3928, %v4031
    %v4033 = vpop.f32.mrf.mxu0
    %4034 = vdwg.mxu0
    %4035 = vmatprep.subr.mxu0 0.0
    %v4036 = vand.u32 %v539, 4294901760
    %4037 = vmatpush1.msra.mxu0 %v4036
    %4038 = vmatprep.subr.mxu0 0.0
    %v4039 = vand.u32 %v536, 4294901760
    %4040 = vmatpush1.msra.mxu0 %v4039
    %4041 = vmatprep.subr.mxu0 0.0
    %v4042 = vand.u32 %v533, 4294901760
    %4043 = vmatpush1.msra.mxu0 %v4042
    %4044 = vmatprep.subr.mxu0 0.0
    %v4045 = vand.u32 %v530, 4294901760
    %4046 = vmatpush1.msra.mxu0 %v4045
    %4047 = vmatprep.subr.mxu0 0.0
    %v4048 = vand.u32 %v527, 4294901760
    %4049 = vmatpush1.msra.mxu0 %v4048
    %4050 = vmatprep.subr.mxu0 0.0
    %v4051 = vand.u32 %v524, 4294901760
    %4052 = vmatpush1.msra.mxu0 %v4051
    %4053 = vmatprep.subr.mxu0 0.0
    %v4054 = vand.u32 %v521, 4294901760
    %4055 = vmatpush1.msra.mxu0 %v4054
    %4056 = vmatprep.subr.mxu0 0.0
    %v4057 = vand.u32 %v518, 4294901760
    %4058 = vmatpush1.msra.mxu0 %v4057
    %4059 = vmatprep.subr.mxu0 0.0
    %v4060 = vand.u32 %v515, 4294901760
    %4061 = vmatpush1.msra.mxu0 %v4060
    %4062 = vmatprep.subr.mxu0 0.0
    %v4063 = vand.u32 %v512, 4294901760
    %4064 = vmatpush1.msra.mxu0 %v4063
    %4065 = vmatprep.subr.mxu0 0.0
    %v4066 = vand.u32 %v509, 4294901760
    %4067 = vmatpush1.msra.mxu0 %v4066
    %4068 = vmatprep.subr.mxu0 0.0
    %v4069 = vand.u32 %v506, 4294901760
    %4070 = vmatpush1.msra.mxu0 %v4069
    %4071 = vmatprep.subr.mxu0 0.0
    %v4072 = vand.u32 %v503, 4294901760
    %4073 = vmatpush1.msra.mxu0 %v4072
    %4074 = vmatprep.subr.mxu0 0.0
    %v4075 = vand.u32 %v500, 4294901760
    %4076 = vmatpush1.msra.mxu0 %v4075
    %4077 = vmatprep.subr.mxu0 0.0
    %v4078 = vand.u32 %v497, 4294901760
    %4079 = vmatpush1.msra.mxu0 %v4078
    %4080 = vmatprep.subr.mxu0 0.0
    %v4081 = vand.u32 %v494, 4294901760
    %4082 = vmatpush1.msra.mxu0 %v4081
    %4083 = vmatprep.subr.mxu0 0.0
    %v4084 = vand.u32 %v587, 4294901760
    %4085 = vmatpush2.msra.mxu0 %v4084
    %4086 = vmatprep.subr.mxu0 0.0
    %v4087 = vand.u32 %v584, 4294901760
    %4088 = vmatpush2.msra.mxu0 %v4087
    %4089 = vmatprep.subr.mxu0 0.0
    %v4090 = vand.u32 %v581, 4294901760
    %4091 = vmatpush2.msra.mxu0 %v4090
    %4092 = vmatprep.subr.mxu0 0.0
    %v4093 = vand.u32 %v578, 4294901760
    %4094 = vmatpush2.msra.mxu0 %v4093
    %4095 = vmatprep.subr.mxu0 0.0
    %v4096 = vand.u32 %v575, 4294901760
    %4097 = vmatpush2.msra.mxu0 %v4096
    %4098 = vmatprep.subr.mxu0 0.0
    %v4099 = vand.u32 %v572, 4294901760
    %4100 = vmatpush2.msra.mxu0 %v4099
    %4101 = vmatprep.subr.mxu0 0.0
    %v4102 = vand.u32 %v569, 4294901760
    %4103 = vmatpush2.msra.mxu0 %v4102
    %4104 = vmatprep.subr.mxu0 0.0
    %v4105 = vand.u32 %v566, 4294901760
    %4106 = vmatpush2.msra.mxu0 %v4105
    %4107 = vmatprep.subr.mxu0 0.0
    %v4108 = vand.u32 %v563, 4294901760
    %4109 = vmatpush2.msra.mxu0 %v4108
    %4110 = vmatprep.subr.mxu0 0.0
    %v4111 = vand.u32 %v560, 4294901760
    %4112 = vmatpush2.msra.mxu0 %v4111
    %4113 = vmatprep.subr.mxu0 0.0
    %v4114 = vand.u32 %v557, 4294901760
    %4115 = vmatpush2.msra.mxu0 %v4114
    %4116 = vmatprep.subr.mxu0 0.0
    %v4117 = vand.u32 %v554, 4294901760
    %4118 = vmatpush2.msra.mxu0 %v4117
    %4119 = vmatprep.subr.mxu0 0.0
    %v4120 = vand.u32 %v551, 4294901760
    %4121 = vmatpush2.msra.mxu0 %v4120
    %4122 = vmatprep.subr.mxu0 0.0
    %v4123 = vand.u32 %v548, 4294901760
    %4124 = vmatpush2.msra.mxu0 %v4123
    %4125 = vmatprep.subr.mxu0 0.0
    %v4126 = vand.u32 %v545, 4294901760
    %4127 = vmatpush2.msra.mxu0 %v4126
    %4128 = vmatprep.subr.mxu0 0.0
    %v4129 = vand.u32 %v542, 4294901760
    %4130 = vmatpush2.msra.mxu0 %v4129
    %v4131 = vand.u32 %v395, 4294901760
    %v4132 = vsub.f32 %v395, %v4131
    %v4133 = vand.u32 %v4132, 4294901760
    %v4134 = vsub.f32 %v4132, %v4133
    %v4135 = vand.u32 %v4134, 4294901760
    %4136 = vmatprep.mubr.f32.mxu0 %v4135
    %v4137 = vand.u32 %v394, 4294901760
    %v4138 = vsub.f32 %v394, %v4137
    %v4139 = vand.u32 %v4138, 4294901760
    %v4140 = vsub.f32 %v4138, %v4139
    %v4141 = vand.u32 %v4140, 4294901760
    %4142 = vmatmul.mubr.f32.gmra.mxu0 %v4141
    %v4143 = vpop.f32.mrf.mxu0
    %v4144 = vadd.f32 %v4032, %v4143
    %v4145 = vpop.f32.mrf.mxu0
    %4146 = vdwg.mxu0
    %4147 = vmatprep.subr.mxu0 0.0
    %v4148 = vand.u32 %v539, 4294901760
    %v4149 = vsub.f32 %v539, %v4148
    %v4150 = vand.u32 %v4149, 4294901760
    %v4151 = vsub.f32 %v4149, %v4150
    %v4152 = vand.u32 %v4151, 4294901760
    %4153 = vmatpush1.msra.mxu0 %v4152
    %4154 = vmatprep.subr.mxu0 0.0
    %v4155 = vand.u32 %v536, 4294901760
    %v4156 = vsub.f32 %v536, %v4155
    %v4157 = vand.u32 %v4156, 4294901760
    %v4158 = vsub.f32 %v4156, %v4157
    %v4159 = vand.u32 %v4158, 4294901760
    %4160 = vmatpush1.msra.mxu0 %v4159
    %4161 = vmatprep.subr.mxu0 0.0
    %v4162 = vand.u32 %v533, 4294901760
    %v4163 = vsub.f32 %v533, %v4162
    %v4164 = vand.u32 %v4163, 4294901760
    %v4165 = vsub.f32 %v4163, %v4164
    %v4166 = vand.u32 %v4165, 4294901760
    %4167 = vmatpush1.msra.mxu0 %v4166
    %4168 = vmatprep.subr.mxu0 0.0
    %v4169 = vand.u32 %v530, 4294901760
    %v4170 = vsub.f32 %v530, %v4169
    %v4171 = vand.u32 %v4170, 4294901760
    %v4172 = vsub.f32 %v4170, %v4171
    %v4173 = vand.u32 %v4172, 4294901760
    %4174 = vmatpush1.msra.mxu0 %v4173
    %4175 = vmatprep.subr.mxu0 0.0
    %v4176 = vand.u32 %v527, 4294901760
    %v4177 = vsub.f32 %v527, %v4176
    %v4178 = vand.u32 %v4177, 4294901760
    %v4179 = vsub.f32 %v4177, %v4178
    %v4180 = vand.u32 %v4179, 4294901760
    %4181 = vmatpush1.msra.mxu0 %v4180
    %4182 = vmatprep.subr.mxu0 0.0
    %v4183 = vand.u32 %v524, 4294901760
    %v4184 = vsub.f32 %v524, %v4183
    %v4185 = vand.u32 %v4184, 4294901760
    %v4186 = vsub.f32 %v4184, %v4185
    %v4187 = vand.u32 %v4186, 4294901760
    %4188 = vmatpush1.msra.mxu0 %v4187
    %4189 = vmatprep.subr.mxu0 0.0
    %v4190 = vand.u32 %v521, 4294901760
    %v4191 = vsub.f32 %v521, %v4190
    %v4192 = vand.u32 %v4191, 4294901760
    %v4193 = vsub.f32 %v4191, %v4192
    %v4194 = vand.u32 %v4193, 4294901760
    %4195 = vmatpush1.msra.mxu0 %v4194
    %4196 = vmatprep.subr.mxu0 0.0
    %v4197 = vand.u32 %v518, 4294901760
    %v4198 = vsub.f32 %v518, %v4197
    %v4199 = vand.u32 %v4198, 4294901760
    %v4200 = vsub.f32 %v4198, %v4199
    %v4201 = vand.u32 %v4200, 4294901760
    %4202 = vmatpush1.msra.mxu0 %v4201
    %4203 = vmatprep.subr.mxu0 0.0
    %v4204 = vand.u32 %v515, 4294901760
    %v4205 = vsub.f32 %v515, %v4204
    %v4206 = vand.u32 %v4205, 4294901760
    %v4207 = vsub.f32 %v4205, %v4206
    %v4208 = vand.u32 %v4207, 4294901760
    %4209 = vmatpush1.msra.mxu0 %v4208
    %4210 = vmatprep.subr.mxu0 0.0
    %v4211 = vand.u32 %v512, 4294901760
    %v4212 = vsub.f32 %v512, %v4211
    %v4213 = vand.u32 %v4212, 4294901760
    %v4214 = vsub.f32 %v4212, %v4213
    %v4215 = vand.u32 %v4214, 4294901760
    %4216 = vmatpush1.msra.mxu0 %v4215
    %4217 = vmatprep.subr.mxu0 0.0
    %v4218 = vand.u32 %v509, 4294901760
    %v4219 = vsub.f32 %v509, %v4218
    %v4220 = vand.u32 %v4219, 4294901760
    %v4221 = vsub.f32 %v4219, %v4220
    %v4222 = vand.u32 %v4221, 4294901760
    %4223 = vmatpush1.msra.mxu0 %v4222
    %4224 = vmatprep.subr.mxu0 0.0
    %v4225 = vand.u32 %v506, 4294901760
    %v4226 = vsub.f32 %v506, %v4225
    %v4227 = vand.u32 %v4226, 4294901760
    %v4228 = vsub.f32 %v4226, %v4227
    %v4229 = vand.u32 %v4228, 4294901760
    %4230 = vmatpush1.msra.mxu0 %v4229
    %4231 = vmatprep.subr.mxu0 0.0
    %v4232 = vand.u32 %v503, 4294901760
    %v4233 = vsub.f32 %v503, %v4232
    %v4234 = vand.u32 %v4233, 4294901760
    %v4235 = vsub.f32 %v4233, %v4234
    %v4236 = vand.u32 %v4235, 4294901760
    %4237 = vmatpush1.msra.mxu0 %v4236
    %4238 = vmatprep.subr.mxu0 0.0
    %v4239 = vand.u32 %v500, 4294901760
    %v4240 = vsub.f32 %v500, %v4239
    %v4241 = vand.u32 %v4240, 4294901760
    %v4242 = vsub.f32 %v4240, %v4241
    %v4243 = vand.u32 %v4242, 4294901760
    %4244 = vmatpush1.msra.mxu0 %v4243
    %4245 = vmatprep.subr.mxu0 0.0
    %v4246 = vand.u32 %v497, 4294901760
    %v4247 = vsub.f32 %v497, %v4246
    %v4248 = vand.u32 %v4247, 4294901760
    %v4249 = vsub.f32 %v4247, %v4248
    %v4250 = vand.u32 %v4249, 4294901760
    %4251 = vmatpush1.msra.mxu0 %v4250
    %4252 = vmatprep.subr.mxu0 0.0
    %v4253 = vand.u32 %v494, 4294901760
    %v4254 = vsub.f32 %v494, %v4253
    %v4255 = vand.u32 %v4254, 4294901760
    %v4256 = vsub.f32 %v4254, %v4255
    %v4257 = vand.u32 %v4256, 4294901760
    %4258 = vmatpush1.msra.mxu0 %v4257
    %4259 = vmatprep.subr.mxu0 0.0
    %v4260 = vand.u32 %v587, 4294901760
    %v4261 = vsub.f32 %v587, %v4260
    %v4262 = vand.u32 %v4261, 4294901760
    %v4263 = vsub.f32 %v4261, %v4262
    %v4264 = vand.u32 %v4263, 4294901760
    %4265 = vmatpush2.msra.mxu0 %v4264
    %4266 = vmatprep.subr.mxu0 0.0
    %v4267 = vand.u32 %v584, 4294901760
    %v4268 = vsub.f32 %v584, %v4267
    %v4269 = vand.u32 %v4268, 4294901760
    %v4270 = vsub.f32 %v4268, %v4269
    %v4271 = vand.u32 %v4270, 4294901760
    %4272 = vmatpush2.msra.mxu0 %v4271
    %4273 = vmatprep.subr.mxu0 0.0
    %v4274 = vand.u32 %v581, 4294901760
    %v4275 = vsub.f32 %v581, %v4274
    %v4276 = vand.u32 %v4275, 4294901760
    %v4277 = vsub.f32 %v4275, %v4276
    %v4278 = vand.u32 %v4277, 4294901760
    %4279 = vmatpush2.msra.mxu0 %v4278
    %4280 = vmatprep.subr.mxu0 0.0
    %v4281 = vand.u32 %v578, 4294901760
    %v4282 = vsub.f32 %v578, %v4281
    %v4283 = vand.u32 %v4282, 4294901760
    %v4284 = vsub.f32 %v4282, %v4283
    %v4285 = vand.u32 %v4284, 4294901760
    %4286 = vmatpush2.msra.mxu0 %v4285
    %4287 = vmatprep.subr.mxu0 0.0
    %v4288 = vand.u32 %v575, 4294901760
    %v4289 = vsub.f32 %v575, %v4288
    %v4290 = vand.u32 %v4289, 4294901760
    %v4291 = vsub.f32 %v4289, %v4290
    %v4292 = vand.u32 %v4291, 4294901760
    %4293 = vmatpush2.msra.mxu0 %v4292
    %4294 = vmatprep.subr.mxu0 0.0
    %v4295 = vand.u32 %v572, 4294901760
    %v4296 = vsub.f32 %v572, %v4295
    %v4297 = vand.u32 %v4296, 4294901760
    %v4298 = vsub.f32 %v4296, %v4297
    %v4299 = vand.u32 %v4298, 4294901760
    %4300 = vmatpush2.msra.mxu0 %v4299
    %4301 = vmatprep.subr.mxu0 0.0
    %v4302 = vand.u32 %v569, 4294901760
    %v4303 = vsub.f32 %v569, %v4302
    %v4304 = vand.u32 %v4303, 4294901760
    %v4305 = vsub.f32 %v4303, %v4304
    %v4306 = vand.u32 %v4305, 4294901760
    %4307 = vmatpush2.msra.mxu0 %v4306
    %4308 = vmatprep.subr.mxu0 0.0
    %v4309 = vand.u32 %v566, 4294901760
    %v4310 = vsub.f32 %v566, %v4309
    %v4311 = vand.u32 %v4310, 4294901760
    %v4312 = vsub.f32 %v4310, %v4311
    %v4313 = vand.u32 %v4312, 4294901760
    %4314 = vmatpush2.msra.mxu0 %v4313
    %4315 = vmatprep.subr.mxu0 0.0
    %v4316 = vand.u32 %v563, 4294901760
    %v4317 = vsub.f32 %v563, %v4316
    %v4318 = vand.u32 %v4317, 4294901760
    %v4319 = vsub.f32 %v4317, %v4318
    %v4320 = vand.u32 %v4319, 4294901760
    %4321 = vmatpush2.msra.mxu0 %v4320
    %4322 = vmatprep.subr.mxu0 0.0
    %v4323 = vand.u32 %v560, 4294901760
    %v4324 = vsub.f32 %v560, %v4323
    %v4325 = vand.u32 %v4324, 4294901760
    %v4326 = vsub.f32 %v4324, %v4325
    %v4327 = vand.u32 %v4326, 4294901760
    %4328 = vmatpush2.msra.mxu0 %v4327
    %4329 = vmatprep.subr.mxu0 0.0
    %v4330 = vand.u32 %v557, 4294901760
    %v4331 = vsub.f32 %v557, %v4330
    %v4332 = vand.u32 %v4331, 4294901760
    %v4333 = vsub.f32 %v4331, %v4332
    %v4334 = vand.u32 %v4333, 4294901760
    %4335 = vmatpush2.msra.mxu0 %v4334
    %4336 = vmatprep.subr.mxu0 0.0
    %v4337 = vand.u32 %v554, 4294901760
    %v4338 = vsub.f32 %v554, %v4337
    %v4339 = vand.u32 %v4338, 4294901760
    %v4340 = vsub.f32 %v4338, %v4339
    %v4341 = vand.u32 %v4340, 4294901760
    %4342 = vmatpush2.msra.mxu0 %v4341
    %4343 = vmatprep.subr.mxu0 0.0
    %v4344 = vand.u32 %v551, 4294901760
    %v4345 = vsub.f32 %v551, %v4344
    %v4346 = vand.u32 %v4345, 4294901760
    %v4347 = vsub.f32 %v4345, %v4346
    %v4348 = vand.u32 %v4347, 4294901760
    %4349 = vmatpush2.msra.mxu0 %v4348
    %4350 = vmatprep.subr.mxu0 0.0
    %v4351 = vand.u32 %v548, 4294901760
    %v4352 = vsub.f32 %v548, %v4351
    %v4353 = vand.u32 %v4352, 4294901760
    %v4354 = vsub.f32 %v4352, %v4353
    %v4355 = vand.u32 %v4354, 4294901760
    %4356 = vmatpush2.msra.mxu0 %v4355
    %4357 = vmatprep.subr.mxu0 0.0
    %v4358 = vand.u32 %v545, 4294901760
    %v4359 = vsub.f32 %v545, %v4358
    %v4360 = vand.u32 %v4359, 4294901760
    %v4361 = vsub.f32 %v4359, %v4360
    %v4362 = vand.u32 %v4361, 4294901760
    %4363 = vmatpush2.msra.mxu0 %v4362
    %4364 = vmatprep.subr.mxu0 0.0
    %v4365 = vand.u32 %v542, 4294901760
    %v4366 = vsub.f32 %v542, %v4365
    %v4367 = vand.u32 %v4366, 4294901760
    %v4368 = vsub.f32 %v4366, %v4367
    %v4369 = vand.u32 %v4368, 4294901760
    %4370 = vmatpush2.msra.mxu0 %v4369
    %v4371 = vand.u32 %v395, 4294901760
    %4372 = vmatprep.mubr.f32.mxu0 %v4371
    %v4373 = vand.u32 %v394, 4294901760
    %4374 = vmatmul.mubr.f32.gmra.mxu0 %v4373
    %v4375 = vpop.f32.mrf.mxu0
    %v4376 = vadd.f32 %v4144, %v4375
    %v4377 = vpop.f32.mrf.mxu0
    %4378 = vdwg.mxu0
    %4379 = vmatprep.subr.mxu0 0.0
    %v4380 = vand.u32 %v539, 4294901760
    %v4381 = vsub.f32 %v539, %v4380
    %4382 = vmatpush1.msra.mxu0 %v4381
    %4383 = vmatprep.subr.mxu0 0.0
    %v4384 = vand.u32 %v536, 4294901760
    %v4385 = vsub.f32 %v536, %v4384
    %4386 = vmatpush1.msra.mxu0 %v4385
    %4387 = vmatprep.subr.mxu0 0.0
    %v4388 = vand.u32 %v533, 4294901760
    %v4389 = vsub.f32 %v533, %v4388
    %4390 = vmatpush1.msra.mxu0 %v4389
    %4391 = vmatprep.subr.mxu0 0.0
    %v4392 = vand.u32 %v530, 4294901760
    %v4393 = vsub.f32 %v530, %v4392
    %4394 = vmatpush1.msra.mxu0 %v4393
    %4395 = vmatprep.subr.mxu0 0.0
    %v4396 = vand.u32 %v527, 4294901760
    %v4397 = vsub.f32 %v527, %v4396
    %4398 = vmatpush1.msra.mxu0 %v4397
    %4399 = vmatprep.subr.mxu0 0.0
    %v4400 = vand.u32 %v524, 4294901760
    %v4401 = vsub.f32 %v524, %v4400
    %4402 = vmatpush1.msra.mxu0 %v4401
    %4403 = vmatprep.subr.mxu0 0.0
    %v4404 = vand.u32 %v521, 4294901760
    %v4405 = vsub.f32 %v521, %v4404
    %4406 = vmatpush1.msra.mxu0 %v4405
    %4407 = vmatprep.subr.mxu0 0.0
    %v4408 = vand.u32 %v518, 4294901760
    %v4409 = vsub.f32 %v518, %v4408
    %4410 = vmatpush1.msra.mxu0 %v4409
    %4411 = vmatprep.subr.mxu0 0.0
    %v4412 = vand.u32 %v515, 4294901760
    %v4413 = vsub.f32 %v515, %v4412
    %4414 = vmatpush1.msra.mxu0 %v4413
    %4415 = vmatprep.subr.mxu0 0.0
    %v4416 = vand.u32 %v512, 4294901760
    %v4417 = vsub.f32 %v512, %v4416
    %4418 = vmatpush1.msra.mxu0 %v4417
    %4419 = vmatprep.subr.mxu0 0.0
    %v4420 = vand.u32 %v509, 4294901760
    %v4421 = vsub.f32 %v509, %v4420
    %4422 = vmatpush1.msra.mxu0 %v4421
    %4423 = vmatprep.subr.mxu0 0.0
    %v4424 = vand.u32 %v506, 4294901760
    %v4425 = vsub.f32 %v506, %v4424
    %4426 = vmatpush1.msra.mxu0 %v4425
    %4427 = vmatprep.subr.mxu0 0.0
    %v4428 = vand.u32 %v503, 4294901760
    %v4429 = vsub.f32 %v503, %v4428
    %4430 = vmatpush1.msra.mxu0 %v4429
    %4431 = vmatprep.subr.mxu0 0.0
    %v4432 = vand.u32 %v500, 4294901760
    %v4433 = vsub.f32 %v500, %v4432
    %4434 = vmatpush1.msra.mxu0 %v4433
    %4435 = vmatprep.subr.mxu0 0.0
    %v4436 = vand.u32 %v497, 4294901760
    %v4437 = vsub.f32 %v497, %v4436
    %4438 = vmatpush1.msra.mxu0 %v4437
    %4439 = vmatprep.subr.mxu0 0.0
    %v4440 = vand.u32 %v494, 4294901760
    %v4441 = vsub.f32 %v494, %v4440
    %4442 = vmatpush1.msra.mxu0 %v4441
    %4443 = vmatprep.subr.mxu0 0.0
    %v4444 = vand.u32 %v587, 4294901760
    %v4445 = vsub.f32 %v587, %v4444
    %4446 = vmatpush2.msra.mxu0 %v4445
    %4447 = vmatprep.subr.mxu0 0.0
    %v4448 = vand.u32 %v584, 4294901760
    %v4449 = vsub.f32 %v584, %v4448
    %4450 = vmatpush2.msra.mxu0 %v4449
    %4451 = vmatprep.subr.mxu0 0.0
    %v4452 = vand.u32 %v581, 4294901760
    %v4453 = vsub.f32 %v581, %v4452
    %4454 = vmatpush2.msra.mxu0 %v4453
    %4455 = vmatprep.subr.mxu0 0.0
    %v4456 = vand.u32 %v578, 4294901760
    %v4457 = vsub.f32 %v578, %v4456
    %4458 = vmatpush2.msra.mxu0 %v4457
    %4459 = vmatprep.subr.mxu0 0.0
    %v4460 = vand.u32 %v575, 4294901760
    %v4461 = vsub.f32 %v575, %v4460
    %4462 = vmatpush2.msra.mxu0 %v4461
    %4463 = vmatprep.subr.mxu0 0.0
    %v4464 = vand.u32 %v572, 4294901760
    %v4465 = vsub.f32 %v572, %v4464
    %4466 = vmatpush2.msra.mxu0 %v4465
    %4467 = vmatprep.subr.mxu0 0.0
    %v4468 = vand.u32 %v569, 4294901760
    %v4469 = vsub.f32 %v569, %v4468
    %4470 = vmatpush2.msra.mxu0 %v4469
    %4471 = vmatprep.subr.mxu0 0.0
    %v4472 = vand.u32 %v566, 4294901760
    %v4473 = vsub.f32 %v566, %v4472
    %4474 = vmatpush2.msra.mxu0 %v4473
    %4475 = vmatprep.subr.mxu0 0.0
    %v4476 = vand.u32 %v563, 4294901760
    %v4477 = vsub.f32 %v563, %v4476
    %4478 = vmatpush2.msra.mxu0 %v4477
    %4479 = vmatprep.subr.mxu0 0.0
    %v4480 = vand.u32 %v560, 4294901760
    %v4481 = vsub.f32 %v560, %v4480
    %4482 = vmatpush2.msra.mxu0 %v4481
    %4483 = vmatprep.subr.mxu0 0.0
    %v4484 = vand.u32 %v557, 4294901760
    %v4485 = vsub.f32 %v557, %v4484
    %4486 = vmatpush2.msra.mxu0 %v4485
    %4487 = vmatprep.subr.mxu0 0.0
    %v4488 = vand.u32 %v554, 4294901760
    %v4489 = vsub.f32 %v554, %v4488
    %4490 = vmatpush2.msra.mxu0 %v4489
    %4491 = vmatprep.subr.mxu0 0.0
    %v4492 = vand.u32 %v551, 4294901760
    %v4493 = vsub.f32 %v551, %v4492
    %4494 = vmatpush2.msra.mxu0 %v4493
    %4495 = vmatprep.subr.mxu0 0.0
    %v4496 = vand.u32 %v548, 4294901760
    %v4497 = vsub.f32 %v548, %v4496
    %4498 = vmatpush2.msra.mxu0 %v4497
    %4499 = vmatprep.subr.mxu0 0.0
    %v4500 = vand.u32 %v545, 4294901760
    %v4501 = vsub.f32 %v545, %v4500
    %4502 = vmatpush2.msra.mxu0 %v4501
    %4503 = vmatprep.subr.mxu0 0.0
    %v4504 = vand.u32 %v542, 4294901760
    %v4505 = vsub.f32 %v542, %v4504
    %4506 = vmatpush2.msra.mxu0 %v4505
    %v4507 = vand.u32 %v395, 4294901760
    %v4508 = vsub.f32 %v395, %v4507
    %4509 = vmatprep.mubr.f32.mxu0 %v4508
    %v4510 = vand.u32 %v394, 4294901760
    %v4511 = vsub.f32 %v394, %v4510
    %4512 = vmatmul.mubr.f32.gmra.mxu0 %v4511
    %v4513 = vpop.f32.mrf.mxu0
    %v4514 = vadd.f32 %v4376, %v4513
    %v4515 = vpop.f32.mrf.mxu0
    %4516 = vdwg.mxu0
    %4517 = vmatprep.subr.mxu0 0.0
    %v4518 = vand.u32 %v539, 4294901760
    %4519 = vmatpush1.msra.mxu0 %v4518
    %4520 = vmatprep.subr.mxu0 0.0
    %v4521 = vand.u32 %v536, 4294901760
    %4522 = vmatpush1.msra.mxu0 %v4521
    %4523 = vmatprep.subr.mxu0 0.0
    %v4524 = vand.u32 %v533, 4294901760
    %4525 = vmatpush1.msra.mxu0 %v4524
    %4526 = vmatprep.subr.mxu0 0.0
    %v4527 = vand.u32 %v530, 4294901760
    %4528 = vmatpush1.msra.mxu0 %v4527
    %4529 = vmatprep.subr.mxu0 0.0
    %v4530 = vand.u32 %v527, 4294901760
    %4531 = vmatpush1.msra.mxu0 %v4530
    %4532 = vmatprep.subr.mxu0 0.0
    %v4533 = vand.u32 %v524, 4294901760
    %4534 = vmatpush1.msra.mxu0 %v4533
    %4535 = vmatprep.subr.mxu0 0.0
    %v4536 = vand.u32 %v521, 4294901760
    %4537 = vmatpush1.msra.mxu0 %v4536
    %4538 = vmatprep.subr.mxu0 0.0
    %v4539 = vand.u32 %v518, 4294901760
    %4540 = vmatpush1.msra.mxu0 %v4539
    %4541 = vmatprep.subr.mxu0 0.0
    %v4542 = vand.u32 %v515, 4294901760
    %4543 = vmatpush1.msra.mxu0 %v4542
    %4544 = vmatprep.subr.mxu0 0.0
    %v4545 = vand.u32 %v512, 4294901760
    %4546 = vmatpush1.msra.mxu0 %v4545
    %4547 = vmatprep.subr.mxu0 0.0
    %v4548 = vand.u32 %v509, 4294901760
    %4549 = vmatpush1.msra.mxu0 %v4548
    %4550 = vmatprep.subr.mxu0 0.0
    %v4551 = vand.u32 %v506, 4294901760
    %4552 = vmatpush1.msra.mxu0 %v4551
    %4553 = vmatprep.subr.mxu0 0.0
    %v4554 = vand.u32 %v503, 4294901760
    %4555 = vmatpush1.msra.mxu0 %v4554
    %4556 = vmatprep.subr.mxu0 0.0
    %v4557 = vand.u32 %v500, 4294901760
    %4558 = vmatpush1.msra.mxu0 %v4557
    %4559 = vmatprep.subr.mxu0 0.0
    %v4560 = vand.u32 %v497, 4294901760
    %4561 = vmatpush1.msra.mxu0 %v4560
    %4562 = vmatprep.subr.mxu0 0.0
    %v4563 = vand.u32 %v494, 4294901760
    %4564 = vmatpush1.msra.mxu0 %v4563
    %4565 = vmatprep.subr.mxu0 0.0
    %v4566 = vand.u32 %v587, 4294901760
    %4567 = vmatpush2.msra.mxu0 %v4566
    %4568 = vmatprep.subr.mxu0 0.0
    %v4569 = vand.u32 %v584, 4294901760
    %4570 = vmatpush2.msra.mxu0 %v4569
    %4571 = vmatprep.subr.mxu0 0.0
    %v4572 = vand.u32 %v581, 4294901760
    %4573 = vmatpush2.msra.mxu0 %v4572
    %4574 = vmatprep.subr.mxu0 0.0
    %v4575 = vand.u32 %v578, 4294901760
    %4576 = vmatpush2.msra.mxu0 %v4575
    %4577 = vmatprep.subr.mxu0 0.0
    %v4578 = vand.u32 %v575, 4294901760
    %4579 = vmatpush2.msra.mxu0 %v4578
    %4580 = vmatprep.subr.mxu0 0.0
    %v4581 = vand.u32 %v572, 4294901760
    %4582 = vmatpush2.msra.mxu0 %v4581
    %4583 = vmatprep.subr.mxu0 0.0
    %v4584 = vand.u32 %v569, 4294901760
    %4585 = vmatpush2.msra.mxu0 %v4584
    %4586 = vmatprep.subr.mxu0 0.0
    %v4587 = vand.u32 %v566, 4294901760
    %4588 = vmatpush2.msra.mxu0 %v4587
    %4589 = vmatprep.subr.mxu0 0.0
    %v4590 = vand.u32 %v563, 4294901760
    %4591 = vmatpush2.msra.mxu0 %v4590
    %4592 = vmatprep.subr.mxu0 0.0
    %v4593 = vand.u32 %v560, 4294901760
    %4594 = vmatpush2.msra.mxu0 %v4593
    %4595 = vmatprep.subr.mxu0 0.0
    %v4596 = vand.u32 %v557, 4294901760
    %4597 = vmatpush2.msra.mxu0 %v4596
    %4598 = vmatprep.subr.mxu0 0.0
    %v4599 = vand.u32 %v554, 4294901760
    %4600 = vmatpush2.msra.mxu0 %v4599
    %4601 = vmatprep.subr.mxu0 0.0
    %v4602 = vand.u32 %v551, 4294901760
    %4603 = vmatpush2.msra.mxu0 %v4602
    %4604 = vmatprep.subr.mxu0 0.0
    %v4605 = vand.u32 %v548, 4294901760
    %4606 = vmatpush2.msra.mxu0 %v4605
    %4607 = vmatprep.subr.mxu0 0.0
    %v4608 = vand.u32 %v545, 4294901760
    %4609 = vmatpush2.msra.mxu0 %v4608
    %4610 = vmatprep.subr.mxu0 0.0
    %v4611 = vand.u32 %v542, 4294901760
    %4612 = vmatpush2.msra.mxu0 %v4611
    %v4613 = vand.u32 %v395, 4294901760
    %v4614 = vsub.f32 %v395, %v4613
    %v4615 = vand.u32 %v4614, 4294901760
    %4616 = vmatprep.mubr.f32.mxu0 %v4615
    %v4617 = vand.u32 %v394, 4294901760
    %v4618 = vsub.f32 %v394, %v4617
    %v4619 = vand.u32 %v4618, 4294901760
    %4620 = vmatmul.mubr.f32.gmra.mxu0 %v4619
    %v4621 = vpop.f32.mrf.mxu0
    %v4622 = vadd.f32 %v4514, %v4621
    %v4623 = vpop.f32.mrf.mxu0
    %4624 = vdwg.mxu0
    %4625 = vmatprep.subr.mxu0 0.0
    %v4626 = vand.u32 %v539, 4294901760
    %v4627 = vsub.f32 %v539, %v4626
    %v4628 = vand.u32 %v4627, 4294901760
    %4629 = vmatpush1.msra.mxu0 %v4628
    %4630 = vmatprep.subr.mxu0 0.0
    %v4631 = vand.u32 %v536, 4294901760
    %v4632 = vsub.f32 %v536, %v4631
    %v4633 = vand.u32 %v4632, 4294901760
    %4634 = vmatpush1.msra.mxu0 %v4633
    %4635 = vmatprep.subr.mxu0 0.0
    %v4636 = vand.u32 %v533, 4294901760
    %v4637 = vsub.f32 %v533, %v4636
    %v4638 = vand.u32 %v4637, 4294901760
    %4639 = vmatpush1.msra.mxu0 %v4638
    %4640 = vmatprep.subr.mxu0 0.0
    %v4641 = vand.u32 %v530, 4294901760
    %v4642 = vsub.f32 %v530, %v4641
    %v4643 = vand.u32 %v4642, 4294901760
    %4644 = vmatpush1.msra.mxu0 %v4643
    %4645 = vmatprep.subr.mxu0 0.0
    %v4646 = vand.u32 %v527, 4294901760
    %v4647 = vsub.f32 %v527, %v4646
    %v4648 = vand.u32 %v4647, 4294901760
    %4649 = vmatpush1.msra.mxu0 %v4648
    %4650 = vmatprep.subr.mxu0 0.0
    %v4651 = vand.u32 %v524, 4294901760
    %v4652 = vsub.f32 %v524, %v4651
    %v4653 = vand.u32 %v4652, 4294901760
    %4654 = vmatpush1.msra.mxu0 %v4653
    %4655 = vmatprep.subr.mxu0 0.0
    %v4656 = vand.u32 %v521, 4294901760
    %v4657 = vsub.f32 %v521, %v4656
    %v4658 = vand.u32 %v4657, 4294901760
    %4659 = vmatpush1.msra.mxu0 %v4658
    %4660 = vmatprep.subr.mxu0 0.0
    %v4661 = vand.u32 %v518, 4294901760
    %v4662 = vsub.f32 %v518, %v4661
    %v4663 = vand.u32 %v4662, 4294901760
    %4664 = vmatpush1.msra.mxu0 %v4663
    %4665 = vmatprep.subr.mxu0 0.0
    %v4666 = vand.u32 %v515, 4294901760
    %v4667 = vsub.f32 %v515, %v4666
    %v4668 = vand.u32 %v4667, 4294901760
    %4669 = vmatpush1.msra.mxu0 %v4668
    %4670 = vmatprep.subr.mxu0 0.0
    %v4671 = vand.u32 %v512, 4294901760
    %v4672 = vsub.f32 %v512, %v4671
    %v4673 = vand.u32 %v4672, 4294901760
    %4674 = vmatpush1.msra.mxu0 %v4673
    %4675 = vmatprep.subr.mxu0 0.0
    %v4676 = vand.u32 %v509, 4294901760
    %v4677 = vsub.f32 %v509, %v4676
    %v4678 = vand.u32 %v4677, 4294901760
    %4679 = vmatpush1.msra.mxu0 %v4678
    %4680 = vmatprep.subr.mxu0 0.0
    %v4681 = vand.u32 %v506, 4294901760
    %v4682 = vsub.f32 %v506, %v4681
    %v4683 = vand.u32 %v4682, 4294901760
    %4684 = vmatpush1.msra.mxu0 %v4683
    %4685 = vmatprep.subr.mxu0 0.0
    %v4686 = vand.u32 %v503, 4294901760
    %v4687 = vsub.f32 %v503, %v4686
    %v4688 = vand.u32 %v4687, 4294901760
    %4689 = vmatpush1.msra.mxu0 %v4688
    %4690 = vmatprep.subr.mxu0 0.0
    %v4691 = vand.u32 %v500, 4294901760
    %v4692 = vsub.f32 %v500, %v4691
    %v4693 = vand.u32 %v4692, 4294901760
    %4694 = vmatpush1.msra.mxu0 %v4693
    %4695 = vmatprep.subr.mxu0 0.0
    %v4696 = vand.u32 %v497, 4294901760
    %v4697 = vsub.f32 %v497, %v4696
    %v4698 = vand.u32 %v4697, 4294901760
    %4699 = vmatpush1.msra.mxu0 %v4698
    %4700 = vmatprep.subr.mxu0 0.0
    %v4701 = vand.u32 %v494, 4294901760
    %v4702 = vsub.f32 %v494, %v4701
    %v4703 = vand.u32 %v4702, 4294901760
    %4704 = vmatpush1.msra.mxu0 %v4703
    %4705 = vmatprep.subr.mxu0 0.0
    %v4706 = vand.u32 %v587, 4294901760
    %v4707 = vsub.f32 %v587, %v4706
    %v4708 = vand.u32 %v4707, 4294901760
    %4709 = vmatpush2.msra.mxu0 %v4708
    %4710 = vmatprep.subr.mxu0 0.0
    %v4711 = vand.u32 %v584, 4294901760
    %v4712 = vsub.f32 %v584, %v4711
    %v4713 = vand.u32 %v4712, 4294901760
    %4714 = vmatpush2.msra.mxu0 %v4713
    %4715 = vmatprep.subr.mxu0 0.0
    %v4716 = vand.u32 %v581, 4294901760
    %v4717 = vsub.f32 %v581, %v4716
    %v4718 = vand.u32 %v4717, 4294901760
    %4719 = vmatpush2.msra.mxu0 %v4718
    %4720 = vmatprep.subr.mxu0 0.0
    %v4721 = vand.u32 %v578, 4294901760
    %v4722 = vsub.f32 %v578, %v4721
    %v4723 = vand.u32 %v4722, 4294901760
    %4724 = vmatpush2.msra.mxu0 %v4723
    %4725 = vmatprep.subr.mxu0 0.0
    %v4726 = vand.u32 %v575, 4294901760
    %v4727 = vsub.f32 %v575, %v4726
    %v4728 = vand.u32 %v4727, 4294901760
    %4729 = vmatpush2.msra.mxu0 %v4728
    %4730 = vmatprep.subr.mxu0 0.0
    %v4731 = vand.u32 %v572, 4294901760
    %v4732 = vsub.f32 %v572, %v4731
    %v4733 = vand.u32 %v4732, 4294901760
    %4734 = vmatpush2.msra.mxu0 %v4733
    %4735 = vmatprep.subr.mxu0 0.0
    %v4736 = vand.u32 %v569, 4294901760
    %v4737 = vsub.f32 %v569, %v4736
    %v4738 = vand.u32 %v4737, 4294901760
    %4739 = vmatpush2.msra.mxu0 %v4738
    %4740 = vmatprep.subr.mxu0 0.0
    %v4741 = vand.u32 %v566, 4294901760
    %v4742 = vsub.f32 %v566, %v4741
    %v4743 = vand.u32 %v4742, 4294901760
    %4744 = vmatpush2.msra.mxu0 %v4743
    %4745 = vmatprep.subr.mxu0 0.0
    %v4746 = vand.u32 %v563, 4294901760
    %v4747 = vsub.f32 %v563, %v4746
    %v4748 = vand.u32 %v4747, 4294901760
    %4749 = vmatpush2.msra.mxu0 %v4748
    %4750 = vmatprep.subr.mxu0 0.0
    %v4751 = vand.u32 %v560, 4294901760
    %v4752 = vsub.f32 %v560, %v4751
    %v4753 = vand.u32 %v4752, 4294901760
    %4754 = vmatpush2.msra.mxu0 %v4753
    %4755 = vmatprep.subr.mxu0 0.0
    %v4756 = vand.u32 %v557, 4294901760
    %v4757 = vsub.f32 %v557, %v4756
    %v4758 = vand.u32 %v4757, 4294901760
    %4759 = vmatpush2.msra.mxu0 %v4758
    %4760 = vmatprep.subr.mxu0 0.0
    %v4761 = vand.u32 %v554, 4294901760
    %v4762 = vsub.f32 %v554, %v4761
    %v4763 = vand.u32 %v4762, 4294901760
    %4764 = vmatpush2.msra.mxu0 %v4763
    %4765 = vmatprep.subr.mxu0 0.0
    %v4766 = vand.u32 %v551, 4294901760
    %v4767 = vsub.f32 %v551, %v4766
    %v4768 = vand.u32 %v4767, 4294901760
    %4769 = vmatpush2.msra.mxu0 %v4768
    %4770 = vmatprep.subr.mxu0 0.0
    %v4771 = vand.u32 %v548, 4294901760
    %v4772 = vsub.f32 %v548, %v4771
    %v4773 = vand.u32 %v4772, 4294901760
    %4774 = vmatpush2.msra.mxu0 %v4773
    %4775 = vmatprep.subr.mxu0 0.0
    %v4776 = vand.u32 %v545, 4294901760
    %v4777 = vsub.f32 %v545, %v4776
    %v4778 = vand.u32 %v4777, 4294901760
    %4779 = vmatpush2.msra.mxu0 %v4778
    %4780 = vmatprep.subr.mxu0 0.0
    %v4781 = vand.u32 %v542, 4294901760
    %v4782 = vsub.f32 %v542, %v4781
    %v4783 = vand.u32 %v4782, 4294901760
    %4784 = vmatpush2.msra.mxu0 %v4783
    %v4785 = vand.u32 %v395, 4294901760
    %4786 = vmatprep.mubr.f32.mxu0 %v4785
    %v4787 = vand.u32 %v394, 4294901760
    %4788 = vmatmul.mubr.f32.gmra.mxu0 %v4787
    %v4789 = vpop.f32.mrf.mxu0
    %v4790 = vadd.f32 %v4622, %v4789
    %v4791 = vpop.f32.mrf.mxu0
    %4792 = vdwg.mxu0
    %4793 = vmatprep.subr.mxu0 0.0
    %v4794 = vand.u32 %v539, 4294901760
    %4795 = vmatpush1.msra.mxu0 %v4794
    %4796 = vmatprep.subr.mxu0 0.0
    %v4797 = vand.u32 %v536, 4294901760
    %4798 = vmatpush1.msra.mxu0 %v4797
    %4799 = vmatprep.subr.mxu0 0.0
    %v4800 = vand.u32 %v533, 4294901760
    %4801 = vmatpush1.msra.mxu0 %v4800
    %4802 = vmatprep.subr.mxu0 0.0
    %v4803 = vand.u32 %v530, 4294901760
    %4804 = vmatpush1.msra.mxu0 %v4803
    %4805 = vmatprep.subr.mxu0 0.0
    %v4806 = vand.u32 %v527, 4294901760
    %4807 = vmatpush1.msra.mxu0 %v4806
    %4808 = vmatprep.subr.mxu0 0.0
    %v4809 = vand.u32 %v524, 4294901760
    %4810 = vmatpush1.msra.mxu0 %v4809
    %4811 = vmatprep.subr.mxu0 0.0
    %v4812 = vand.u32 %v521, 4294901760
    %4813 = vmatpush1.msra.mxu0 %v4812
    %4814 = vmatprep.subr.mxu0 0.0
    %v4815 = vand.u32 %v518, 4294901760
    %4816 = vmatpush1.msra.mxu0 %v4815
    %4817 = vmatprep.subr.mxu0 0.0
    %v4818 = vand.u32 %v515, 4294901760
    %4819 = vmatpush1.msra.mxu0 %v4818
    %4820 = vmatprep.subr.mxu0 0.0
    %v4821 = vand.u32 %v512, 4294901760
    %4822 = vmatpush1.msra.mxu0 %v4821
    %4823 = vmatprep.subr.mxu0 0.0
    %v4824 = vand.u32 %v509, 4294901760
    %4825 = vmatpush1.msra.mxu0 %v4824
    %4826 = vmatprep.subr.mxu0 0.0
    %v4827 = vand.u32 %v506, 4294901760
    %4828 = vmatpush1.msra.mxu0 %v4827
    %4829 = vmatprep.subr.mxu0 0.0
    %v4830 = vand.u32 %v503, 4294901760
    %4831 = vmatpush1.msra.mxu0 %v4830
    %4832 = vmatprep.subr.mxu0 0.0
    %v4833 = vand.u32 %v500, 4294901760
    %4834 = vmatpush1.msra.mxu0 %v4833
    %4835 = vmatprep.subr.mxu0 0.0
    %v4836 = vand.u32 %v497, 4294901760
    %4837 = vmatpush1.msra.mxu0 %v4836
    %4838 = vmatprep.subr.mxu0 0.0
    %v4839 = vand.u32 %v494, 4294901760
    %4840 = vmatpush1.msra.mxu0 %v4839
    %4841 = vmatprep.subr.mxu0 0.0
    %v4842 = vand.u32 %v587, 4294901760
    %4843 = vmatpush2.msra.mxu0 %v4842
    %4844 = vmatprep.subr.mxu0 0.0
    %v4845 = vand.u32 %v584, 4294901760
    %4846 = vmatpush2.msra.mxu0 %v4845
    %4847 = vmatprep.subr.mxu0 0.0
    %v4848 = vand.u32 %v581, 4294901760
    %4849 = vmatpush2.msra.mxu0 %v4848
    %4850 = vmatprep.subr.mxu0 0.0
    %v4851 = vand.u32 %v578, 4294901760
    %4852 = vmatpush2.msra.mxu0 %v4851
    %4853 = vmatprep.subr.mxu0 0.0
    %v4854 = vand.u32 %v575, 4294901760
    %4855 = vmatpush2.msra.mxu0 %v4854
    %4856 = vmatprep.subr.mxu0 0.0
    %v4857 = vand.u32 %v572, 4294901760
    %4858 = vmatpush2.msra.mxu0 %v4857
    %4859 = vmatprep.subr.mxu0 0.0
    %v4860 = vand.u32 %v569, 4294901760
    %4861 = vmatpush2.msra.mxu0 %v4860
    %4862 = vmatprep.subr.mxu0 0.0
    %v4863 = vand.u32 %v566, 4294901760
    %4864 = vmatpush2.msra.mxu0 %v4863
    %4865 = vmatprep.subr.mxu0 0.0
    %v4866 = vand.u32 %v563, 4294901760
    %4867 = vmatpush2.msra.mxu0 %v4866
    %4868 = vmatprep.subr.mxu0 0.0
    %v4869 = vand.u32 %v560, 4294901760
    %4870 = vmatpush2.msra.mxu0 %v4869
    %4871 = vmatprep.subr.mxu0 0.0
    %v4872 = vand.u32 %v557, 4294901760
    %4873 = vmatpush2.msra.mxu0 %v4872
    %4874 = vmatprep.subr.mxu0 0.0
    %v4875 = vand.u32 %v554, 4294901760
    %4876 = vmatpush2.msra.mxu0 %v4875
    %4877 = vmatprep.subr.mxu0 0.0
    %v4878 = vand.u32 %v551, 4294901760
    %4879 = vmatpush2.msra.mxu0 %v4878
    %4880 = vmatprep.subr.mxu0 0.0
    %v4881 = vand.u32 %v548, 4294901760
    %4882 = vmatpush2.msra.mxu0 %v4881
    %4883 = vmatprep.subr.mxu0 0.0
    %v4884 = vand.u32 %v545, 4294901760
    %4885 = vmatpush2.msra.mxu0 %v4884
    %4886 = vmatprep.subr.mxu0 0.0
    %v4887 = vand.u32 %v542, 4294901760
    %4888 = vmatpush2.msra.mxu0 %v4887
    %v4889 = vand.u32 %v395, 4294901760
    %4890 = vmatprep.mubr.f32.mxu0 %v4889
    %v4891 = vand.u32 %v394, 4294901760
    %4892 = vmatmul.mubr.f32.gmra.mxu0 %v4891
    %v4893 = vpop.f32.mrf.mxu0
    %v4894 = vadd.f32 %v4790, %v4893
    %v4895 = vpop.f32.mrf.mxu0
    %4896 = vdwg.mxu0
    %v4897 = vmax.f32 %v3169, 0.0
    %v4898 = vmax.f32 %v3171, 0.0
    %v4899 = vmax.f32 %v4894, 0.0
    %v4900 = vld [vmem:[#allocation10] sm:$0xff]
    %v4901 = vld [vmem:[#allocation10 + $0x8] sm:$0xff]
    %v4902 = vld [vmem:[#allocation10 + $0x10] sm:$0xff]
    %v4903 = vld [vmem:[#allocation10 + $0x18] sm:$0xff]
    %v4904 = vld [vmem:[#allocation10 + $0x20] sm:$0xff]
    %v4905 = vld [vmem:[#allocation10 + $0x28] sm:$0xff]
    %v4906 = vld [vmem:[#allocation10 + $0x30] sm:$0xff]
    %v4907 = vld [vmem:[#allocation10 + $0x38] sm:$0xff]
    %v4908 = vld [vmem:[#allocation10 + $0x40] sm:$0xff]
    %v4909 = vld [vmem:[#allocation10 + $0x48] sm:$0xff]
    %v4910 = vld [vmem:[#allocation10 + $0x50] sm:$0xff]
    %v4911 = vld [vmem:[#allocation10 + $0x58] sm:$0xff]
    %v4912 = vld [vmem:[#allocation10 + $0x60] sm:$0xff]
    %v4913 = vld [vmem:[#allocation10 + $0x68] sm:$0xff]
    %v4914 = vld [vmem:[#allocation10 + $0x70] sm:$0xff]
    %v4915 = vld [vmem:[#allocation10 + $0x78] sm:$0xff]
    %v4916 = vld [vmem:[#allocation10 + $0x80] sm:$0xff]
    %v4917 = vld [vmem:[#allocation10 + $0x88] sm:$0xff]
    %v4918 = vld [vmem:[#allocation10 + $0x90] sm:$0xff]
    %v4919 = vld [vmem:[#allocation10 + $0x98] sm:$0xff]
    %v4920 = vld [vmem:[#allocation10 + $0xa0] sm:$0xff]
    %v4921 = vld [vmem:[#allocation10 + $0xa8] sm:$0xff]
    %v4922 = vld [vmem:[#allocation10 + $0xb0] sm:$0xff]
    %v4923 = vld [vmem:[#allocation10 + $0xb8] sm:$0xff]
    %v4924 = vld [vmem:[#allocation10 + $0xc0] sm:$0xff]
    %v4925 = vld [vmem:[#allocation10 + $0xc8] sm:$0xff]
    %v4926 = vld [vmem:[#allocation10 + $0xd0] sm:$0xff]
    %v4927 = vld [vmem:[#allocation10 + $0xd8] sm:$0xff]
    %v4928 = vld [vmem:[#allocation10 + $0xe0] sm:$0xff]
    %v4929 = vld [vmem:[#allocation10 + $0xe8] sm:$0xff]
    %v4930 = vld [vmem:[#allocation10 + $0xf0] sm:$0xff]
    %v4931 = vld [vmem:[#allocation10 + $0xf8] sm:$0xff]
    %v4932 = vld [vmem:[#allocation10 + $0x100] sm:$0xff]
    %v4933 = vld [vmem:[#allocation10 + $0x108] sm:$0xff]
    %v4934 = vld [vmem:[#allocation10 + $0x110] sm:$0xff]
    %v4935 = vld [vmem:[#allocation10 + $0x118] sm:$0xff]
    %v4936 = vld [vmem:[#allocation10 + $0x120] sm:$0xff]
    %v4937 = vld [vmem:[#allocation10 + $0x128] sm:$0xff]
    %v4938 = vld [vmem:[#allocation10 + $0x130] sm:$0xff]
    %v4939 = vld [vmem:[#allocation10 + $0x138] sm:$0xff]
    %v4940 = vld [vmem:[#allocation10 + $0x140] sm:$0xff]
    %v4941 = vld [vmem:[#allocation10 + $0x148] sm:$0xff]
    %v4942 = vld [vmem:[#allocation10 + $0x150] sm:$0xff]
    %v4943 = vld [vmem:[#allocation10 + $0x158] sm:$0xff]
    %v4944 = vld [vmem:[#allocation10 + $0x160] sm:$0xff]
    %v4945 = vld [vmem:[#allocation10 + $0x168] sm:$0xff]
    %v4946 = vld [vmem:[#allocation10 + $0x170] sm:$0xff]
    %v4947 = vld [vmem:[#allocation10 + $0x178] sm:$0xff]
    %v4948 = vld [vmem:[%s6] sm:$0x1]
    %v4950 = vlaneseq
    %v4951 = vshrl.u32 %v4950, 7
    %v4952 = vsub.s32 0, %v4951
    %v4953 = vrot.slane %v4948, %v4952
    %4955 = vmatprep.subr.mxu0 0.0
    %v4956 = vand.u32 %v4915, 4294901760
    %4957 = vmatpush1.msra.mxu0 %v4956
    %4958 = vmatprep.subr.mxu0 0.0
    %v4959 = vand.u32 %v4914, 4294901760
    %4960 = vmatpush1.msra.mxu0 %v4959
    %4961 = vmatprep.subr.mxu0 0.0
    %v4962 = vand.u32 %v4913, 4294901760
    %4963 = vmatpush1.msra.mxu0 %v4962
    %4964 = vmatprep.subr.mxu0 0.0
    %v4965 = vand.u32 %v4912, 4294901760
    %4966 = vmatpush1.msra.mxu0 %v4965
    %4967 = vmatprep.subr.mxu0 0.0
    %v4968 = vand.u32 %v4911, 4294901760
    %4969 = vmatpush1.msra.mxu0 %v4968
    %4970 = vmatprep.subr.mxu0 0.0
    %v4971 = vand.u32 %v4910, 4294901760
    %4972 = vmatpush1.msra.mxu0 %v4971
    %4973 = vmatprep.subr.mxu0 0.0
    %v4974 = vand.u32 %v4909, 4294901760
    %4975 = vmatpush1.msra.mxu0 %v4974
    %4976 = vmatprep.subr.mxu0 0.0
    %v4977 = vand.u32 %v4908, 4294901760
    %4978 = vmatpush1.msra.mxu0 %v4977
    %4979 = vmatprep.subr.mxu0 0.0
    %v4980 = vand.u32 %v4907, 4294901760
    %4981 = vmatpush1.msra.mxu0 %v4980
    %4982 = vmatprep.subr.mxu0 0.0
    %v4983 = vand.u32 %v4906, 4294901760
    %4984 = vmatpush1.msra.mxu0 %v4983
    %4985 = vmatprep.subr.mxu0 0.0
    %v4986 = vand.u32 %v4905, 4294901760
    %4987 = vmatpush1.msra.mxu0 %v4986
    %4988 = vmatprep.subr.mxu0 0.0
    %v4989 = vand.u32 %v4904, 4294901760
    %4990 = vmatpush1.msra.mxu0 %v4989
    %4991 = vmatprep.subr.mxu0 0.0
    %v4992 = vand.u32 %v4903, 4294901760
    %4993 = vmatpush1.msra.mxu0 %v4992
    %4994 = vmatprep.subr.mxu0 0.0
    %v4995 = vand.u32 %v4902, 4294901760
    %4996 = vmatpush1.msra.mxu0 %v4995
    %4997 = vmatprep.subr.mxu0 0.0
    %v4998 = vand.u32 %v4901, 4294901760
    %4999 = vmatpush1.msra.mxu0 %v4998
    %5000 = vmatprep.subr.mxu0 0.0
    %v5001 = vand.u32 %v4900, 4294901760
    %5002 = vmatpush1.msra.mxu0 %v5001
    %5003 = vmatprep.subr.mxu0 0.0
    %v5004 = vand.u32 %v4931, 4294901760
    %5005 = vmatpush2.msra.mxu0 %v5004
    %5006 = vmatprep.subr.mxu0 0.0
    %v5007 = vand.u32 %v4930, 4294901760
    %5008 = vmatpush2.msra.mxu0 %v5007
    %5009 = vmatprep.subr.mxu0 0.0
    %v5010 = vand.u32 %v4929, 4294901760
    %5011 = vmatpush2.msra.mxu0 %v5010
    %5012 = vmatprep.subr.mxu0 0.0
    %v5013 = vand.u32 %v4928, 4294901760
    %5014 = vmatpush2.msra.mxu0 %v5013
    %5015 = vmatprep.subr.mxu0 0.0
    %v5016 = vand.u32 %v4927, 4294901760
    %5017 = vmatpush2.msra.mxu0 %v5016
    %5018 = vmatprep.subr.mxu0 0.0
    %v5019 = vand.u32 %v4926, 4294901760
    %5020 = vmatpush2.msra.mxu0 %v5019
    %5021 = vmatprep.subr.mxu0 0.0
    %v5022 = vand.u32 %v4925, 4294901760
    %5023 = vmatpush2.msra.mxu0 %v5022
    %5024 = vmatprep.subr.mxu0 0.0
    %v5025 = vand.u32 %v4924, 4294901760
    %5026 = vmatpush2.msra.mxu0 %v5025
    %5027 = vmatprep.subr.mxu0 0.0
    %v5028 = vand.u32 %v4923, 4294901760
    %5029 = vmatpush2.msra.mxu0 %v5028
    %5030 = vmatprep.subr.mxu0 0.0
    %v5031 = vand.u32 %v4922, 4294901760
    %5032 = vmatpush2.msra.mxu0 %v5031
    %5033 = vmatprep.subr.mxu0 0.0
    %v5034 = vand.u32 %v4921, 4294901760
    %5035 = vmatpush2.msra.mxu0 %v5034
    %5036 = vmatprep.subr.mxu0 0.0
    %v5037 = vand.u32 %v4920, 4294901760
    %5038 = vmatpush2.msra.mxu0 %v5037
    %5039 = vmatprep.subr.mxu0 0.0
    %v5040 = vand.u32 %v4919, 4294901760
    %5041 = vmatpush2.msra.mxu0 %v5040
    %5042 = vmatprep.subr.mxu0 0.0
    %v5043 = vand.u32 %v4918, 4294901760
    %5044 = vmatpush2.msra.mxu0 %v5043
    %5045 = vmatprep.subr.mxu0 0.0
    %v5046 = vand.u32 %v4917, 4294901760
    %5047 = vmatpush2.msra.mxu0 %v5046
    %5048 = vmatprep.subr.mxu0 0.0
    %v5049 = vand.u32 %v4916, 4294901760
    %5050 = vmatpush2.msra.mxu0 %v5049
    %v5051 = vand.u32 %v4898, 4294901760
    %v5052 = vsub.f32 %v4898, %v5051
    %v5053 = vand.u32 %v5052, 4294901760
    %v5054 = vsub.f32 %v5052, %v5053
    %v5055 = vand.u32 %v5054, 4294901760
    %5056 = vmatprep.mubr.f32.mxu0 %v5055
    %v5057 = vand.u32 %v4897, 4294901760
    %v5058 = vsub.f32 %v4897, %v5057
    %v5059 = vand.u32 %v5058, 4294901760
    %v5060 = vsub.f32 %v5058, %v5059
    %v5061 = vand.u32 %v5060, 4294901760
    %5062 = vmatmul.mubr.f32.gmra.mxu0 %v5061
    %v5063 = vpop.f32.mrf.mxu0
    %v5064 = vadd.f32 %v4953, %v5063
    %v5065 = vpop.f32.mrf.mxu0
    %5066 = vdwg.mxu0
    %5067 = vmatprep.subr.mxu0 0.0
    %v5068 = vand.u32 %v4915, 4294901760
    %v5069 = vsub.f32 %v4915, %v5068
    %v5070 = vand.u32 %v5069, 4294901760
    %v5071 = vsub.f32 %v5069, %v5070
    %v5072 = vand.u32 %v5071, 4294901760
    %5073 = vmatpush1.msra.mxu0 %v5072
    %5074 = vmatprep.subr.mxu0 0.0
    %v5075 = vand.u32 %v4914, 4294901760
    %v5076 = vsub.f32 %v4914, %v5075
    %v5077 = vand.u32 %v5076, 4294901760
    %v5078 = vsub.f32 %v5076, %v5077
    %v5079 = vand.u32 %v5078, 4294901760
    %5080 = vmatpush1.msra.mxu0 %v5079
    %5081 = vmatprep.subr.mxu0 0.0
    %v5082 = vand.u32 %v4913, 4294901760
    %v5083 = vsub.f32 %v4913, %v5082
    %v5084 = vand.u32 %v5083, 4294901760
    %v5085 = vsub.f32 %v5083, %v5084
    %v5086 = vand.u32 %v5085, 4294901760
    %5087 = vmatpush1.msra.mxu0 %v5086
    %5088 = vmatprep.subr.mxu0 0.0
    %v5089 = vand.u32 %v4912, 4294901760
    %v5090 = vsub.f32 %v4912, %v5089
    %v5091 = vand.u32 %v5090, 4294901760
    %v5092 = vsub.f32 %v5090, %v5091
    %v5093 = vand.u32 %v5092, 4294901760
    %5094 = vmatpush1.msra.mxu0 %v5093
    %5095 = vmatprep.subr.mxu0 0.0
    %v5096 = vand.u32 %v4911, 4294901760
    %v5097 = vsub.f32 %v4911, %v5096
    %v5098 = vand.u32 %v5097, 4294901760
    %v5099 = vsub.f32 %v5097, %v5098
    %v5100 = vand.u32 %v5099, 4294901760
    %5101 = vmatpush1.msra.mxu0 %v5100
    %5102 = vmatprep.subr.mxu0 0.0
    %v5103 = vand.u32 %v4910, 4294901760
    %v5104 = vsub.f32 %v4910, %v5103
    %v5105 = vand.u32 %v5104, 4294901760
    %v5106 = vsub.f32 %v5104, %v5105
    %v5107 = vand.u32 %v5106, 4294901760
    %5108 = vmatpush1.msra.mxu0 %v5107
    %5109 = vmatprep.subr.mxu0 0.0
    %v5110 = vand.u32 %v4909, 4294901760
    %v5111 = vsub.f32 %v4909, %v5110
    %v5112 = vand.u32 %v5111, 4294901760
    %v5113 = vsub.f32 %v5111, %v5112
    %v5114 = vand.u32 %v5113, 4294901760
    %5115 = vmatpush1.msra.mxu0 %v5114
    %5116 = vmatprep.subr.mxu0 0.0
    %v5117 = vand.u32 %v4908, 4294901760
    %v5118 = vsub.f32 %v4908, %v5117
    %v5119 = vand.u32 %v5118, 4294901760
    %v5120 = vsub.f32 %v5118, %v5119
    %v5121 = vand.u32 %v5120, 4294901760
    %5122 = vmatpush1.msra.mxu0 %v5121
    %5123 = vmatprep.subr.mxu0 0.0
    %v5124 = vand.u32 %v4907, 4294901760
    %v5125 = vsub.f32 %v4907, %v5124
    %v5126 = vand.u32 %v5125, 4294901760
    %v5127 = vsub.f32 %v5125, %v5126
    %v5128 = vand.u32 %v5127, 4294901760
    %5129 = vmatpush1.msra.mxu0 %v5128
    %5130 = vmatprep.subr.mxu0 0.0
    %v5131 = vand.u32 %v4906, 4294901760
    %v5132 = vsub.f32 %v4906, %v5131
    %v5133 = vand.u32 %v5132, 4294901760
    %v5134 = vsub.f32 %v5132, %v5133
    %v5135 = vand.u32 %v5134, 4294901760
    %5136 = vmatpush1.msra.mxu0 %v5135
    %5137 = vmatprep.subr.mxu0 0.0
    %v5138 = vand.u32 %v4905, 4294901760
    %v5139 = vsub.f32 %v4905, %v5138
    %v5140 = vand.u32 %v5139, 4294901760
    %v5141 = vsub.f32 %v5139, %v5140
    %v5142 = vand.u32 %v5141, 4294901760
    %5143 = vmatpush1.msra.mxu0 %v5142
    %5144 = vmatprep.subr.mxu0 0.0
    %v5145 = vand.u32 %v4904, 4294901760
    %v5146 = vsub.f32 %v4904, %v5145
    %v5147 = vand.u32 %v5146, 4294901760
    %v5148 = vsub.f32 %v5146, %v5147
    %v5149 = vand.u32 %v5148, 4294901760
    %5150 = vmatpush1.msra.mxu0 %v5149
    %5151 = vmatprep.subr.mxu0 0.0
    %v5152 = vand.u32 %v4903, 4294901760
    %v5153 = vsub.f32 %v4903, %v5152
    %v5154 = vand.u32 %v5153, 4294901760
    %v5155 = vsub.f32 %v5153, %v5154
    %v5156 = vand.u32 %v5155, 4294901760
    %5157 = vmatpush1.msra.mxu0 %v5156
    %5158 = vmatprep.subr.mxu0 0.0
    %v5159 = vand.u32 %v4902, 4294901760
    %v5160 = vsub.f32 %v4902, %v5159
    %v5161 = vand.u32 %v5160, 4294901760
    %v5162 = vsub.f32 %v5160, %v5161
    %v5163 = vand.u32 %v5162, 4294901760
    %5164 = vmatpush1.msra.mxu0 %v5163
    %5165 = vmatprep.subr.mxu0 0.0
    %v5166 = vand.u32 %v4901, 4294901760
    %v5167 = vsub.f32 %v4901, %v5166
    %v5168 = vand.u32 %v5167, 4294901760
    %v5169 = vsub.f32 %v5167, %v5168
    %v5170 = vand.u32 %v5169, 4294901760
    %5171 = vmatpush1.msra.mxu0 %v5170
    %5172 = vmatprep.subr.mxu0 0.0
    %v5173 = vand.u32 %v4900, 4294901760
    %v5174 = vsub.f32 %v4900, %v5173
    %v5175 = vand.u32 %v5174, 4294901760
    %v5176 = vsub.f32 %v5174, %v5175
    %v5177 = vand.u32 %v5176, 4294901760
    %5178 = vmatpush1.msra.mxu0 %v5177
    %5179 = vmatprep.subr.mxu0 0.0
    %v5180 = vand.u32 %v4931, 4294901760
    %v5181 = vsub.f32 %v4931, %v5180
    %v5182 = vand.u32 %v5181, 4294901760
    %v5183 = vsub.f32 %v5181, %v5182
    %v5184 = vand.u32 %v5183, 4294901760
    %5185 = vmatpush2.msra.mxu0 %v5184
    %5186 = vmatprep.subr.mxu0 0.0
    %v5187 = vand.u32 %v4930, 4294901760
    %v5188 = vsub.f32 %v4930, %v5187
    %v5189 = vand.u32 %v5188, 4294901760
    %v5190 = vsub.f32 %v5188, %v5189
    %v5191 = vand.u32 %v5190, 4294901760
    %5192 = vmatpush2.msra.mxu0 %v5191
    %5193 = vmatprep.subr.mxu0 0.0
    %v5194 = vand.u32 %v4929, 4294901760
    %v5195 = vsub.f32 %v4929, %v5194
    %v5196 = vand.u32 %v5195, 4294901760
    %v5197 = vsub.f32 %v5195, %v5196
    %v5198 = vand.u32 %v5197, 4294901760
    %5199 = vmatpush2.msra.mxu0 %v5198
    %5200 = vmatprep.subr.mxu0 0.0
    %v5201 = vand.u32 %v4928, 4294901760
    %v5202 = vsub.f32 %v4928, %v5201
    %v5203 = vand.u32 %v5202, 4294901760
    %v5204 = vsub.f32 %v5202, %v5203
    %v5205 = vand.u32 %v5204, 4294901760
    %5206 = vmatpush2.msra.mxu0 %v5205
    %5207 = vmatprep.subr.mxu0 0.0
    %v5208 = vand.u32 %v4927, 4294901760
    %v5209 = vsub.f32 %v4927, %v5208
    %v5210 = vand.u32 %v5209, 4294901760
    %v5211 = vsub.f32 %v5209, %v5210
    %v5212 = vand.u32 %v5211, 4294901760
    %5213 = vmatpush2.msra.mxu0 %v5212
    %5214 = vmatprep.subr.mxu0 0.0
    %v5215 = vand.u32 %v4926, 4294901760
    %v5216 = vsub.f32 %v4926, %v5215
    %v5217 = vand.u32 %v5216, 4294901760
    %v5218 = vsub.f32 %v5216, %v5217
    %v5219 = vand.u32 %v5218, 4294901760
    %5220 = vmatpush2.msra.mxu0 %v5219
    %5221 = vmatprep.subr.mxu0 0.0
    %v5222 = vand.u32 %v4925, 4294901760
    %v5223 = vsub.f32 %v4925, %v5222
    %v5224 = vand.u32 %v5223, 4294901760
    %v5225 = vsub.f32 %v5223, %v5224
    %v5226 = vand.u32 %v5225, 4294901760
    %5227 = vmatpush2.msra.mxu0 %v5226
    %5228 = vmatprep.subr.mxu0 0.0
    %v5229 = vand.u32 %v4924, 4294901760
    %v5230 = vsub.f32 %v4924, %v5229
    %v5231 = vand.u32 %v5230, 4294901760
    %v5232 = vsub.f32 %v5230, %v5231
    %v5233 = vand.u32 %v5232, 4294901760
    %5234 = vmatpush2.msra.mxu0 %v5233
    %5235 = vmatprep.subr.mxu0 0.0
    %v5236 = vand.u32 %v4923, 4294901760
    %v5237 = vsub.f32 %v4923, %v5236
    %v5238 = vand.u32 %v5237, 4294901760
    %v5239 = vsub.f32 %v5237, %v5238
    %v5240 = vand.u32 %v5239, 4294901760
    %5241 = vmatpush2.msra.mxu0 %v5240
    %5242 = vmatprep.subr.mxu0 0.0
    %v5243 = vand.u32 %v4922, 4294901760
    %v5244 = vsub.f32 %v4922, %v5243
    %v5245 = vand.u32 %v5244, 4294901760
    %v5246 = vsub.f32 %v5244, %v5245
    %v5247 = vand.u32 %v5246, 4294901760
    %5248 = vmatpush2.msra.mxu0 %v5247
    %5249 = vmatprep.subr.mxu0 0.0
    %v5250 = vand.u32 %v4921, 4294901760
    %v5251 = vsub.f32 %v4921, %v5250
    %v5252 = vand.u32 %v5251, 4294901760
    %v5253 = vsub.f32 %v5251, %v5252
    %v5254 = vand.u32 %v5253, 4294901760
    %5255 = vmatpush2.msra.mxu0 %v5254
    %5256 = vmatprep.subr.mxu0 0.0
    %v5257 = vand.u32 %v4920, 4294901760
    %v5258 = vsub.f32 %v4920, %v5257
    %v5259 = vand.u32 %v5258, 4294901760
    %v5260 = vsub.f32 %v5258, %v5259
    %v5261 = vand.u32 %v5260, 4294901760
    %5262 = vmatpush2.msra.mxu0 %v5261
    %5263 = vmatprep.subr.mxu0 0.0
    %v5264 = vand.u32 %v4919, 4294901760
    %v5265 = vsub.f32 %v4919, %v5264
    %v5266 = vand.u32 %v5265, 4294901760
    %v5267 = vsub.f32 %v5265, %v5266
    %v5268 = vand.u32 %v5267, 4294901760
    %5269 = vmatpush2.msra.mxu0 %v5268
    %5270 = vmatprep.subr.mxu0 0.0
    %v5271 = vand.u32 %v4918, 4294901760
    %v5272 = vsub.f32 %v4918, %v5271
    %v5273 = vand.u32 %v5272, 4294901760
    %v5274 = vsub.f32 %v5272, %v5273
    %v5275 = vand.u32 %v5274, 4294901760
    %5276 = vmatpush2.msra.mxu0 %v5275
    %5277 = vmatprep.subr.mxu0 0.0
    %v5278 = vand.u32 %v4917, 4294901760
    %v5279 = vsub.f32 %v4917, %v5278
    %v5280 = vand.u32 %v5279, 4294901760
    %v5281 = vsub.f32 %v5279, %v5280
    %v5282 = vand.u32 %v5281, 4294901760
    %5283 = vmatpush2.msra.mxu0 %v5282
    %5284 = vmatprep.subr.mxu0 0.0
    %v5285 = vand.u32 %v4916, 4294901760
    %v5286 = vsub.f32 %v4916, %v5285
    %v5287 = vand.u32 %v5286, 4294901760
    %v5288 = vsub.f32 %v5286, %v5287
    %v5289 = vand.u32 %v5288, 4294901760
    %5290 = vmatpush2.msra.mxu0 %v5289
    %v5291 = vand.u32 %v4898, 4294901760
    %5292 = vmatprep.mubr.f32.mxu0 %v5291
    %v5293 = vand.u32 %v4897, 4294901760
    %5294 = vmatmul.mubr.f32.gmra.mxu0 %v5293
    %v5295 = vpop.f32.mrf.mxu0
    %v5296 = vadd.f32 %v5064, %v5295
    %v5297 = vpop.f32.mrf.mxu0
    %5298 = vdwg.mxu0
    %5299 = vmatprep.subr.mxu0 0.0
    %v5300 = vand.u32 %v4915, 4294901760
    %v5301 = vsub.f32 %v4915, %v5300
    %5302 = vmatpush1.msra.mxu0 %v5301
    %5303 = vmatprep.subr.mxu0 0.0
    %v5304 = vand.u32 %v4914, 4294901760
    %v5305 = vsub.f32 %v4914, %v5304
    %5306 = vmatpush1.msra.mxu0 %v5305
    %5307 = vmatprep.subr.mxu0 0.0
    %v5308 = vand.u32 %v4913, 4294901760
    %v5309 = vsub.f32 %v4913, %v5308
    %5310 = vmatpush1.msra.mxu0 %v5309
    %5311 = vmatprep.subr.mxu0 0.0
    %v5312 = vand.u32 %v4912, 4294901760
    %v5313 = vsub.f32 %v4912, %v5312
    %5314 = vmatpush1.msra.mxu0 %v5313
    %5315 = vmatprep.subr.mxu0 0.0
    %v5316 = vand.u32 %v4911, 4294901760
    %v5317 = vsub.f32 %v4911, %v5316
    %5318 = vmatpush1.msra.mxu0 %v5317
    %5319 = vmatprep.subr.mxu0 0.0
    %v5320 = vand.u32 %v4910, 4294901760
    %v5321 = vsub.f32 %v4910, %v5320
    %5322 = vmatpush1.msra.mxu0 %v5321
    %5323 = vmatprep.subr.mxu0 0.0
    %v5324 = vand.u32 %v4909, 4294901760
    %v5325 = vsub.f32 %v4909, %v5324
    %5326 = vmatpush1.msra.mxu0 %v5325
    %5327 = vmatprep.subr.mxu0 0.0
    %v5328 = vand.u32 %v4908, 4294901760
    %v5329 = vsub.f32 %v4908, %v5328
    %5330 = vmatpush1.msra.mxu0 %v5329
    %5331 = vmatprep.subr.mxu0 0.0
    %v5332 = vand.u32 %v4907, 4294901760
    %v5333 = vsub.f32 %v4907, %v5332
    %5334 = vmatpush1.msra.mxu0 %v5333
    %5335 = vmatprep.subr.mxu0 0.0
    %v5336 = vand.u32 %v4906, 4294901760
    %v5337 = vsub.f32 %v4906, %v5336
    %5338 = vmatpush1.msra.mxu0 %v5337
    %5339 = vmatprep.subr.mxu0 0.0
    %v5340 = vand.u32 %v4905, 4294901760
    %v5341 = vsub.f32 %v4905, %v5340
    %5342 = vmatpush1.msra.mxu0 %v5341
    %5343 = vmatprep.subr.mxu0 0.0
    %v5344 = vand.u32 %v4904, 4294901760
    %v5345 = vsub.f32 %v4904, %v5344
    %5346 = vmatpush1.msra.mxu0 %v5345
    %5347 = vmatprep.subr.mxu0 0.0
    %v5348 = vand.u32 %v4903, 4294901760
    %v5349 = vsub.f32 %v4903, %v5348
    %5350 = vmatpush1.msra.mxu0 %v5349
    %5351 = vmatprep.subr.mxu0 0.0
    %v5352 = vand.u32 %v4902, 4294901760
    %v5353 = vsub.f32 %v4902, %v5352
    %5354 = vmatpush1.msra.mxu0 %v5353
    %5355 = vmatprep.subr.mxu0 0.0
    %v5356 = vand.u32 %v4901, 4294901760
    %v5357 = vsub.f32 %v4901, %v5356
    %5358 = vmatpush1.msra.mxu0 %v5357
    %5359 = vmatprep.subr.mxu0 0.0
    %v5360 = vand.u32 %v4900, 4294901760
    %v5361 = vsub.f32 %v4900, %v5360
    %5362 = vmatpush1.msra.mxu0 %v5361
    %5363 = vmatprep.subr.mxu0 0.0
    %v5364 = vand.u32 %v4931, 4294901760
    %v5365 = vsub.f32 %v4931, %v5364
    %5366 = vmatpush2.msra.mxu0 %v5365
    %5367 = vmatprep.subr.mxu0 0.0
    %v5368 = vand.u32 %v4930, 4294901760
    %v5369 = vsub.f32 %v4930, %v5368
    %5370 = vmatpush2.msra.mxu0 %v5369
    %5371 = vmatprep.subr.mxu0 0.0
    %v5372 = vand.u32 %v4929, 4294901760
    %v5373 = vsub.f32 %v4929, %v5372
    %5374 = vmatpush2.msra.mxu0 %v5373
    %5375 = vmatprep.subr.mxu0 0.0
    %v5376 = vand.u32 %v4928, 4294901760
    %v5377 = vsub.f32 %v4928, %v5376
    %5378 = vmatpush2.msra.mxu0 %v5377
    %5379 = vmatprep.subr.mxu0 0.0
    %v5380 = vand.u32 %v4927, 4294901760
    %v5381 = vsub.f32 %v4927, %v5380
    %5382 = vmatpush2.msra.mxu0 %v5381
    %5383 = vmatprep.subr.mxu0 0.0
    %v5384 = vand.u32 %v4926, 4294901760
    %v5385 = vsub.f32 %v4926, %v5384
    %5386 = vmatpush2.msra.mxu0 %v5385
    %5387 = vmatprep.subr.mxu0 0.0
    %v5388 = vand.u32 %v4925, 4294901760
    %v5389 = vsub.f32 %v4925, %v5388
    %5390 = vmatpush2.msra.mxu0 %v5389
    %5391 = vmatprep.subr.mxu0 0.0
    %v5392 = vand.u32 %v4924, 4294901760
    %v5393 = vsub.f32 %v4924, %v5392
    %5394 = vmatpush2.msra.mxu0 %v5393
    %5395 = vmatprep.subr.mxu0 0.0
    %v5396 = vand.u32 %v4923, 4294901760
    %v5397 = vsub.f32 %v4923, %v5396
    %5398 = vmatpush2.msra.mxu0 %v5397
    %5399 = vmatprep.subr.mxu0 0.0
    %v5400 = vand.u32 %v4922, 4294901760
    %v5401 = vsub.f32 %v4922, %v5400
    %5402 = vmatpush2.msra.mxu0 %v5401
    %5403 = vmatprep.subr.mxu0 0.0
    %v5404 = vand.u32 %v4921, 4294901760
    %v5405 = vsub.f32 %v4921, %v5404
    %5406 = vmatpush2.msra.mxu0 %v5405
    %5407 = vmatprep.subr.mxu0 0.0
    %v5408 = vand.u32 %v4920, 4294901760
    %v5409 = vsub.f32 %v4920, %v5408
    %5410 = vmatpush2.msra.mxu0 %v5409
    %5411 = vmatprep.subr.mxu0 0.0
    %v5412 = vand.u32 %v4919, 4294901760
    %v5413 = vsub.f32 %v4919, %v5412
    %5414 = vmatpush2.msra.mxu0 %v5413
    %5415 = vmatprep.subr.mxu0 0.0
    %v5416 = vand.u32 %v4918, 4294901760
    %v5417 = vsub.f32 %v4918, %v5416
    %5418 = vmatpush2.msra.mxu0 %v5417
    %5419 = vmatprep.subr.mxu0 0.0
    %v5420 = vand.u32 %v4917, 4294901760
    %v5421 = vsub.f32 %v4917, %v5420
    %5422 = vmatpush2.msra.mxu0 %v5421
    %5423 = vmatprep.subr.mxu0 0.0
    %v5424 = vand.u32 %v4916, 4294901760
    %v5425 = vsub.f32 %v4916, %v5424
    %5426 = vmatpush2.msra.mxu0 %v5425
    %v5427 = vand.u32 %v4898, 4294901760
    %v5428 = vsub.f32 %v4898, %v5427
    %5429 = vmatprep.mubr.f32.mxu0 %v5428
    %v5430 = vand.u32 %v4897, 4294901760
    %v5431 = vsub.f32 %v4897, %v5430
    %5432 = vmatmul.mubr.f32.gmra.mxu0 %v5431
    %v5433 = vpop.f32.mrf.mxu0
    %v5434 = vadd.f32 %v5296, %v5433
    %v5435 = vpop.f32.mrf.mxu0
    %5436 = vdwg.mxu0
    %5437 = vmatprep.subr.mxu0 0.0
    %v5438 = vand.u32 %v4915, 4294901760
    %5439 = vmatpush1.msra.mxu0 %v5438
    %5440 = vmatprep.subr.mxu0 0.0
    %v5441 = vand.u32 %v4914, 4294901760
    %5442 = vmatpush1.msra.mxu0 %v5441
    %5443 = vmatprep.subr.mxu0 0.0
    %v5444 = vand.u32 %v4913, 4294901760
    %5445 = vmatpush1.msra.mxu0 %v5444
    %5446 = vmatprep.subr.mxu0 0.0
    %v5447 = vand.u32 %v4912, 4294901760
    %5448 = vmatpush1.msra.mxu0 %v5447
    %5449 = vmatprep.subr.mxu0 0.0
    %v5450 = vand.u32 %v4911, 4294901760
    %5451 = vmatpush1.msra.mxu0 %v5450
    %5452 = vmatprep.subr.mxu0 0.0
    %v5453 = vand.u32 %v4910, 4294901760
    %5454 = vmatpush1.msra.mxu0 %v5453
    %5455 = vmatprep.subr.mxu0 0.0
    %v5456 = vand.u32 %v4909, 4294901760
    %5457 = vmatpush1.msra.mxu0 %v5456
    %5458 = vmatprep.subr.mxu0 0.0
    %v5459 = vand.u32 %v4908, 4294901760
    %5460 = vmatpush1.msra.mxu0 %v5459
    %5461 = vmatprep.subr.mxu0 0.0
    %v5462 = vand.u32 %v4907, 4294901760
    %5463 = vmatpush1.msra.mxu0 %v5462
    %5464 = vmatprep.subr.mxu0 0.0
    %v5465 = vand.u32 %v4906, 4294901760
    %5466 = vmatpush1.msra.mxu0 %v5465
    %5467 = vmatprep.subr.mxu0 0.0
    %v5468 = vand.u32 %v4905, 4294901760
    %5469 = vmatpush1.msra.mxu0 %v5468
    %5470 = vmatprep.subr.mxu0 0.0
    %v5471 = vand.u32 %v4904, 4294901760
    %5472 = vmatpush1.msra.mxu0 %v5471
    %5473 = vmatprep.subr.mxu0 0.0
    %v5474 = vand.u32 %v4903, 4294901760
    %5475 = vmatpush1.msra.mxu0 %v5474
    %5476 = vmatprep.subr.mxu0 0.0
    %v5477 = vand.u32 %v4902, 4294901760
    %5478 = vmatpush1.msra.mxu0 %v5477
    %5479 = vmatprep.subr.mxu0 0.0
    %v5480 = vand.u32 %v4901, 4294901760
    %5481 = vmatpush1.msra.mxu0 %v5480
    %5482 = vmatprep.subr.mxu0 0.0
    %v5483 = vand.u32 %v4900, 4294901760
    %5484 = vmatpush1.msra.mxu0 %v5483
    %5485 = vmatprep.subr.mxu0 0.0
    %v5486 = vand.u32 %v4931, 4294901760
    %5487 = vmatpush2.msra.mxu0 %v5486
    %5488 = vmatprep.subr.mxu0 0.0
    %v5489 = vand.u32 %v4930, 4294901760
    %5490 = vmatpush2.msra.mxu0 %v5489
    %5491 = vmatprep.subr.mxu0 0.0
    %v5492 = vand.u32 %v4929, 4294901760
    %5493 = vmatpush2.msra.mxu0 %v5492
    %5494 = vmatprep.subr.mxu0 0.0
    %v5495 = vand.u32 %v4928, 4294901760
    %5496 = vmatpush2.msra.mxu0 %v5495
    %5497 = vmatprep.subr.mxu0 0.0
    %v5498 = vand.u32 %v4927, 4294901760
    %5499 = vmatpush2.msra.mxu0 %v5498
    %5500 = vmatprep.subr.mxu0 0.0
    %v5501 = vand.u32 %v4926, 4294901760
    %5502 = vmatpush2.msra.mxu0 %v5501
    %5503 = vmatprep.subr.mxu0 0.0
    %v5504 = vand.u32 %v4925, 4294901760
    %5505 = vmatpush2.msra.mxu0 %v5504
    %5506 = vmatprep.subr.mxu0 0.0
    %v5507 = vand.u32 %v4924, 4294901760
    %5508 = vmatpush2.msra.mxu0 %v5507
    %5509 = vmatprep.subr.mxu0 0.0
    %v5510 = vand.u32 %v4923, 4294901760
    %5511 = vmatpush2.msra.mxu0 %v5510
    %5512 = vmatprep.subr.mxu0 0.0
    %v5513 = vand.u32 %v4922, 4294901760
    %5514 = vmatpush2.msra.mxu0 %v5513
    %5515 = vmatprep.subr.mxu0 0.0
    %v5516 = vand.u32 %v4921, 4294901760
    %5517 = vmatpush2.msra.mxu0 %v5516
    %5518 = vmatprep.subr.mxu0 0.0
    %v5519 = vand.u32 %v4920, 4294901760
    %5520 = vmatpush2.msra.mxu0 %v5519
    %5521 = vmatprep.subr.mxu0 0.0
    %v5522 = vand.u32 %v4919, 4294901760
    %5523 = vmatpush2.msra.mxu0 %v5522
    %5524 = vmatprep.subr.mxu0 0.0
    %v5525 = vand.u32 %v4918, 4294901760
    %5526 = vmatpush2.msra.mxu0 %v5525
    %5527 = vmatprep.subr.mxu0 0.0
    %v5528 = vand.u32 %v4917, 4294901760
    %5529 = vmatpush2.msra.mxu0 %v5528
    %5530 = vmatprep.subr.mxu0 0.0
    %v5531 = vand.u32 %v4916, 4294901760
    %5532 = vmatpush2.msra.mxu0 %v5531
    %v5533 = vand.u32 %v4898, 4294901760
    %v5534 = vsub.f32 %v4898, %v5533
    %v5535 = vand.u32 %v5534, 4294901760
    %5536 = vmatprep.mubr.f32.mxu0 %v5535
    %v5537 = vand.u32 %v4897, 4294901760
    %v5538 = vsub.f32 %v4897, %v5537
    %v5539 = vand.u32 %v5538, 4294901760
    %5540 = vmatmul.mubr.f32.gmra.mxu0 %v5539
    %v5541 = vpop.f32.mrf.mxu0
    %v5542 = vadd.f32 %v5434, %v5541
    %v5543 = vpop.f32.mrf.mxu0
    %5544 = vdwg.mxu0
    %5545 = vmatprep.subr.mxu0 0.0
    %v5546 = vand.u32 %v4915, 4294901760
    %v5547 = vsub.f32 %v4915, %v5546
    %v5548 = vand.u32 %v5547, 4294901760
    %5549 = vmatpush1.msra.mxu0 %v5548
    %5550 = vmatprep.subr.mxu0 0.0
    %v5551 = vand.u32 %v4914, 4294901760
    %v5552 = vsub.f32 %v4914, %v5551
    %v5553 = vand.u32 %v5552, 4294901760
    %5554 = vmatpush1.msra.mxu0 %v5553
    %5555 = vmatprep.subr.mxu0 0.0
    %v5556 = vand.u32 %v4913, 4294901760
    %v5557 = vsub.f32 %v4913, %v5556
    %v5558 = vand.u32 %v5557, 4294901760
    %5559 = vmatpush1.msra.mxu0 %v5558
    %5560 = vmatprep.subr.mxu0 0.0
    %v5561 = vand.u32 %v4912, 4294901760
    %v5562 = vsub.f32 %v4912, %v5561
    %v5563 = vand.u32 %v5562, 4294901760
    %5564 = vmatpush1.msra.mxu0 %v5563
    %5565 = vmatprep.subr.mxu0 0.0
    %v5566 = vand.u32 %v4911, 4294901760
    %v5567 = vsub.f32 %v4911, %v5566
    %v5568 = vand.u32 %v5567, 4294901760
    %5569 = vmatpush1.msra.mxu0 %v5568
    %5570 = vmatprep.subr.mxu0 0.0
    %v5571 = vand.u32 %v4910, 4294901760
    %v5572 = vsub.f32 %v4910, %v5571
    %v5573 = vand.u32 %v5572, 4294901760
    %5574 = vmatpush1.msra.mxu0 %v5573
    %5575 = vmatprep.subr.mxu0 0.0
    %v5576 = vand.u32 %v4909, 4294901760
    %v5577 = vsub.f32 %v4909, %v5576
    %v5578 = vand.u32 %v5577, 4294901760
    %5579 = vmatpush1.msra.mxu0 %v5578
    %5580 = vmatprep.subr.mxu0 0.0
    %v5581 = vand.u32 %v4908, 4294901760
    %v5582 = vsub.f32 %v4908, %v5581
    %v5583 = vand.u32 %v5582, 4294901760
    %5584 = vmatpush1.msra.mxu0 %v5583
    %5585 = vmatprep.subr.mxu0 0.0
    %v5586 = vand.u32 %v4907, 4294901760
    %v5587 = vsub.f32 %v4907, %v5586
    %v5588 = vand.u32 %v5587, 4294901760
    %5589 = vmatpush1.msra.mxu0 %v5588
    %5590 = vmatprep.subr.mxu0 0.0
    %v5591 = vand.u32 %v4906, 4294901760
    %v5592 = vsub.f32 %v4906, %v5591
    %v5593 = vand.u32 %v5592, 4294901760
    %5594 = vmatpush1.msra.mxu0 %v5593
    %5595 = vmatprep.subr.mxu0 0.0
    %v5596 = vand.u32 %v4905, 4294901760
    %v5597 = vsub.f32 %v4905, %v5596
    %v5598 = vand.u32 %v5597, 4294901760
    %5599 = vmatpush1.msra.mxu0 %v5598
    %5600 = vmatprep.subr.mxu0 0.0
    %v5601 = vand.u32 %v4904, 4294901760
    %v5602 = vsub.f32 %v4904, %v5601
    %v5603 = vand.u32 %v5602, 4294901760
    %5604 = vmatpush1.msra.mxu0 %v5603
    %5605 = vmatprep.subr.mxu0 0.0
    %v5606 = vand.u32 %v4903, 4294901760
    %v5607 = vsub.f32 %v4903, %v5606
    %v5608 = vand.u32 %v5607, 4294901760
    %5609 = vmatpush1.msra.mxu0 %v5608
    %5610 = vmatprep.subr.mxu0 0.0
    %v5611 = vand.u32 %v4902, 4294901760
    %v5612 = vsub.f32 %v4902, %v5611
    %v5613 = vand.u32 %v5612, 4294901760
    %5614 = vmatpush1.msra.mxu0 %v5613
    %5615 = vmatprep.subr.mxu0 0.0
    %v5616 = vand.u32 %v4901, 4294901760
    %v5617 = vsub.f32 %v4901, %v5616
    %v5618 = vand.u32 %v5617, 4294901760
    %5619 = vmatpush1.msra.mxu0 %v5618
    %5620 = vmatprep.subr.mxu0 0.0
    %v5621 = vand.u32 %v4900, 4294901760
    %v5622 = vsub.f32 %v4900, %v5621
    %v5623 = vand.u32 %v5622, 4294901760
    %5624 = vmatpush1.msra.mxu0 %v5623
    %5625 = vmatprep.subr.mxu0 0.0
    %v5626 = vand.u32 %v4931, 4294901760
    %v5627 = vsub.f32 %v4931, %v5626
    %v5628 = vand.u32 %v5627, 4294901760
    %5629 = vmatpush2.msra.mxu0 %v5628
    %5630 = vmatprep.subr.mxu0 0.0
    %v5631 = vand.u32 %v4930, 4294901760
    %v5632 = vsub.f32 %v4930, %v5631
    %v5633 = vand.u32 %v5632, 4294901760
    %5634 = vmatpush2.msra.mxu0 %v5633
    %5635 = vmatprep.subr.mxu0 0.0
    %v5636 = vand.u32 %v4929, 4294901760
    %v5637 = vsub.f32 %v4929, %v5636
    %v5638 = vand.u32 %v5637, 4294901760
    %5639 = vmatpush2.msra.mxu0 %v5638
    %5640 = vmatprep.subr.mxu0 0.0
    %v5641 = vand.u32 %v4928, 4294901760
    %v5642 = vsub.f32 %v4928, %v5641
    %v5643 = vand.u32 %v5642, 4294901760
    %5644 = vmatpush2.msra.mxu0 %v5643
    %5645 = vmatprep.subr.mxu0 0.0
    %v5646 = vand.u32 %v4927, 4294901760
    %v5647 = vsub.f32 %v4927, %v5646
    %v5648 = vand.u32 %v5647, 4294901760
    %5649 = vmatpush2.msra.mxu0 %v5648
    %5650 = vmatprep.subr.mxu0 0.0
    %v5651 = vand.u32 %v4926, 4294901760
    %v5652 = vsub.f32 %v4926, %v5651
    %v5653 = vand.u32 %v5652, 4294901760
    %5654 = vmatpush2.msra.mxu0 %v5653
    %5655 = vmatprep.subr.mxu0 0.0
    %v5656 = vand.u32 %v4925, 4294901760
    %v5657 = vsub.f32 %v4925, %v5656
    %v5658 = vand.u32 %v5657, 4294901760
    %5659 = vmatpush2.msra.mxu0 %v5658
    %5660 = vmatprep.subr.mxu0 0.0
    %v5661 = vand.u32 %v4924, 4294901760
    %v5662 = vsub.f32 %v4924, %v5661
    %v5663 = vand.u32 %v5662, 4294901760
    %5664 = vmatpush2.msra.mxu0 %v5663
    %5665 = vmatprep.subr.mxu0 0.0
    %v5666 = vand.u32 %v4923, 4294901760
    %v5667 = vsub.f32 %v4923, %v5666
    %v5668 = vand.u32 %v5667, 4294901760
    %5669 = vmatpush2.msra.mxu0 %v5668
    %5670 = vmatprep.subr.mxu0 0.0
    %v5671 = vand.u32 %v4922, 4294901760
    %v5672 = vsub.f32 %v4922, %v5671
    %v5673 = vand.u32 %v5672, 4294901760
    %5674 = vmatpush2.msra.mxu0 %v5673
    %5675 = vmatprep.subr.mxu0 0.0
    %v5676 = vand.u32 %v4921, 4294901760
    %v5677 = vsub.f32 %v4921, %v5676
    %v5678 = vand.u32 %v5677, 4294901760
    %5679 = vmatpush2.msra.mxu0 %v5678
    %5680 = vmatprep.subr.mxu0 0.0
    %v5681 = vand.u32 %v4920, 4294901760
    %v5682 = vsub.f32 %v4920, %v5681
    %v5683 = vand.u32 %v5682, 4294901760
    %5684 = vmatpush2.msra.mxu0 %v5683
    %5685 = vmatprep.subr.mxu0 0.0
    %v5686 = vand.u32 %v4919, 4294901760
    %v5687 = vsub.f32 %v4919, %v5686
    %v5688 = vand.u32 %v5687, 4294901760
    %5689 = vmatpush2.msra.mxu0 %v5688
    %5690 = vmatprep.subr.mxu0 0.0
    %v5691 = vand.u32 %v4918, 4294901760
    %v5692 = vsub.f32 %v4918, %v5691
    %v5693 = vand.u32 %v5692, 4294901760
    %5694 = vmatpush2.msra.mxu0 %v5693
    %5695 = vmatprep.subr.mxu0 0.0
    %v5696 = vand.u32 %v4917, 4294901760
    %v5697 = vsub.f32 %v4917, %v5696
    %v5698 = vand.u32 %v5697, 4294901760
    %5699 = vmatpush2.msra.mxu0 %v5698
    %5700 = vmatprep.subr.mxu0 0.0
    %v5701 = vand.u32 %v4916, 4294901760
    %v5702 = vsub.f32 %v4916, %v5701
    %v5703 = vand.u32 %v5702, 4294901760
    %5704 = vmatpush2.msra.mxu0 %v5703
    %v5705 = vand.u32 %v4898, 4294901760
    %5706 = vmatprep.mubr.f32.mxu0 %v5705
    %v5707 = vand.u32 %v4897, 4294901760
    %5708 = vmatmul.mubr.f32.gmra.mxu0 %v5707
    %v5709 = vpop.f32.mrf.mxu0
    %v5710 = vadd.f32 %v5542, %v5709
    %v5711 = vpop.f32.mrf.mxu0
    %5712 = vdwg.mxu0
    %5713 = vmatprep.subr.mxu0 0.0
    %v5714 = vand.u32 %v4915, 4294901760
    %5715 = vmatpush1.msra.mxu0 %v5714
    %5716 = vmatprep.subr.mxu0 0.0
    %v5717 = vand.u32 %v4914, 4294901760
    %5718 = vmatpush1.msra.mxu0 %v5717
    %5719 = vmatprep.subr.mxu0 0.0
    %v5720 = vand.u32 %v4913, 4294901760
    %5721 = vmatpush1.msra.mxu0 %v5720
    %5722 = vmatprep.subr.mxu0 0.0
    %v5723 = vand.u32 %v4912, 4294901760
    %5724 = vmatpush1.msra.mxu0 %v5723
    %5725 = vmatprep.subr.mxu0 0.0
    %v5726 = vand.u32 %v4911, 4294901760
    %5727 = vmatpush1.msra.mxu0 %v5726
    %5728 = vmatprep.subr.mxu0 0.0
    %v5729 = vand.u32 %v4910, 4294901760
    %5730 = vmatpush1.msra.mxu0 %v5729
    %5731 = vmatprep.subr.mxu0 0.0
    %v5732 = vand.u32 %v4909, 4294901760
    %5733 = vmatpush1.msra.mxu0 %v5732
    %5734 = vmatprep.subr.mxu0 0.0
    %v5735 = vand.u32 %v4908, 4294901760
    %5736 = vmatpush1.msra.mxu0 %v5735
    %5737 = vmatprep.subr.mxu0 0.0
    %v5738 = vand.u32 %v4907, 4294901760
    %5739 = vmatpush1.msra.mxu0 %v5738
    %5740 = vmatprep.subr.mxu0 0.0
    %v5741 = vand.u32 %v4906, 4294901760
    %5742 = vmatpush1.msra.mxu0 %v5741
    %5743 = vmatprep.subr.mxu0 0.0
    %v5744 = vand.u32 %v4905, 4294901760
    %5745 = vmatpush1.msra.mxu0 %v5744
    %5746 = vmatprep.subr.mxu0 0.0
    %v5747 = vand.u32 %v4904, 4294901760
    %5748 = vmatpush1.msra.mxu0 %v5747
    %5749 = vmatprep.subr.mxu0 0.0
    %v5750 = vand.u32 %v4903, 4294901760
    %5751 = vmatpush1.msra.mxu0 %v5750
    %5752 = vmatprep.subr.mxu0 0.0
    %v5753 = vand.u32 %v4902, 4294901760
    %5754 = vmatpush1.msra.mxu0 %v5753
    %5755 = vmatprep.subr.mxu0 0.0
    %v5756 = vand.u32 %v4901, 4294901760
    %5757 = vmatpush1.msra.mxu0 %v5756
    %5758 = vmatprep.subr.mxu0 0.0
    %v5759 = vand.u32 %v4900, 4294901760
    %5760 = vmatpush1.msra.mxu0 %v5759
    %5761 = vmatprep.subr.mxu0 0.0
    %v5762 = vand.u32 %v4931, 4294901760
    %5763 = vmatpush2.msra.mxu0 %v5762
    %5764 = vmatprep.subr.mxu0 0.0
    %v5765 = vand.u32 %v4930, 4294901760
    %5766 = vmatpush2.msra.mxu0 %v5765
    %5767 = vmatprep.subr.mxu0 0.0
    %v5768 = vand.u32 %v4929, 4294901760
    %5769 = vmatpush2.msra.mxu0 %v5768
    %5770 = vmatprep.subr.mxu0 0.0
    %v5771 = vand.u32 %v4928, 4294901760
    %5772 = vmatpush2.msra.mxu0 %v5771
    %5773 = vmatprep.subr.mxu0 0.0
    %v5774 = vand.u32 %v4927, 4294901760
    %5775 = vmatpush2.msra.mxu0 %v5774
    %5776 = vmatprep.subr.mxu0 0.0
    %v5777 = vand.u32 %v4926, 4294901760
    %5778 = vmatpush2.msra.mxu0 %v5777
    %5779 = vmatprep.subr.mxu0 0.0
    %v5780 = vand.u32 %v4925, 4294901760
    %5781 = vmatpush2.msra.mxu0 %v5780
    %5782 = vmatprep.subr.mxu0 0.0
    %v5783 = vand.u32 %v4924, 4294901760
    %5784 = vmatpush2.msra.mxu0 %v5783
    %5785 = vmatprep.subr.mxu0 0.0
    %v5786 = vand.u32 %v4923, 4294901760
    %5787 = vmatpush2.msra.mxu0 %v5786
    %5788 = vmatprep.subr.mxu0 0.0
    %v5789 = vand.u32 %v4922, 4294901760
    %5790 = vmatpush2.msra.mxu0 %v5789
    %5791 = vmatprep.subr.mxu0 0.0
    %v5792 = vand.u32 %v4921, 4294901760
    %5793 = vmatpush2.msra.mxu0 %v5792
    %5794 = vmatprep.subr.mxu0 0.0
    %v5795 = vand.u32 %v4920, 4294901760
    %5796 = vmatpush2.msra.mxu0 %v5795
    %5797 = vmatprep.subr.mxu0 0.0
    %v5798 = vand.u32 %v4919, 4294901760
    %5799 = vmatpush2.msra.mxu0 %v5798
    %5800 = vmatprep.subr.mxu0 0.0
    %v5801 = vand.u32 %v4918, 4294901760
    %5802 = vmatpush2.msra.mxu0 %v5801
    %5803 = vmatprep.subr.mxu0 0.0
    %v5804 = vand.u32 %v4917, 4294901760
    %5805 = vmatpush2.msra.mxu0 %v5804
    %5806 = vmatprep.subr.mxu0 0.0
    %v5807 = vand.u32 %v4916, 4294901760
    %5808 = vmatpush2.msra.mxu0 %v5807
    %v5809 = vand.u32 %v4898, 4294901760
    %5810 = vmatprep.mubr.f32.mxu0 %v5809
    %v5811 = vand.u32 %v4897, 4294901760
    %5812 = vmatmul.mubr.f32.gmra.mxu0 %v5811
    %v5813 = vpop.f32.mrf.mxu0
    %v5814 = vadd.f32 %v5710, %v5813
    %v5815 = vpop.f32.mrf.mxu0
    %5816 = vdwg.mxu0
    %5817 = vmatprep.subr.mxu0 0.0
    %v5818 = vand.u32 %v4947, 4294901760
    %5819 = vmatpush1.msra.mxu0 %v5818
    %5820 = vmatprep.subr.mxu0 0.0
    %v5821 = vand.u32 %v4946, 4294901760
    %5822 = vmatpush1.msra.mxu0 %v5821
    %5823 = vmatprep.subr.mxu0 0.0
    %v5824 = vand.u32 %v4945, 4294901760
    %5825 = vmatpush1.msra.mxu0 %v5824
    %5826 = vmatprep.subr.mxu0 0.0
    %v5827 = vand.u32 %v4944, 4294901760
    %5828 = vmatpush1.msra.mxu0 %v5827
    %5829 = vmatprep.subr.mxu0 0.0
    %v5830 = vand.u32 %v4943, 4294901760
    %5831 = vmatpush1.msra.mxu0 %v5830
    %5832 = vmatprep.subr.mxu0 0.0
    %v5833 = vand.u32 %v4942, 4294901760
    %5834 = vmatpush1.msra.mxu0 %v5833
    %5835 = vmatprep.subr.mxu0 0.0
    %v5836 = vand.u32 %v4941, 4294901760
    %5837 = vmatpush1.msra.mxu0 %v5836
    %5838 = vmatprep.subr.mxu0 0.0
    %v5839 = vand.u32 %v4940, 4294901760
    %5840 = vmatpush1.msra.mxu0 %v5839
    %5841 = vmatprep.subr.mxu0 0.0
    %v5842 = vand.u32 %v4939, 4294901760
    %5843 = vmatpush1.msra.mxu0 %v5842
    %5844 = vmatprep.subr.mxu0 0.0
    %v5845 = vand.u32 %v4938, 4294901760
    %5846 = vmatpush1.msra.mxu0 %v5845
    %5847 = vmatprep.subr.mxu0 0.0
    %v5848 = vand.u32 %v4937, 4294901760
    %5849 = vmatpush1.msra.mxu0 %v5848
    %5850 = vmatprep.subr.mxu0 0.0
    %v5851 = vand.u32 %v4936, 4294901760
    %5852 = vmatpush1.msra.mxu0 %v5851
    %5853 = vmatprep.subr.mxu0 0.0
    %v5854 = vand.u32 %v4935, 4294901760
    %5855 = vmatpush1.msra.mxu0 %v5854
    %5856 = vmatprep.subr.mxu0 0.0
    %v5857 = vand.u32 %v4934, 4294901760
    %5858 = vmatpush1.msra.mxu0 %v5857
    %5859 = vmatprep.subr.mxu0 0.0
    %v5860 = vand.u32 %v4933, 4294901760
    %5861 = vmatpush1.msra.mxu0 %v5860
    %5862 = vmatprep.subr.mxu0 0.0
    %v5863 = vand.u32 %v4932, 4294901760
    %5864 = vmatpush1.msra.mxu0 %v5863
    %5865 = vmatprep.subr.mxu0 0.0
    %5866 = vmatpush2.msra.mxu0 0.0
    %5867 = vmatprep.subr.mxu0 0.0
    %5868 = vmatpush2.msra.mxu0 0.0
    %5869 = vmatprep.subr.mxu0 0.0
    %5870 = vmatpush2.msra.mxu0 0.0
    %5871 = vmatprep.subr.mxu0 0.0
    %5872 = vmatpush2.msra.mxu0 0.0
    %5873 = vmatprep.subr.mxu0 0.0
    %5874 = vmatpush2.msra.mxu0 0.0
    %5875 = vmatprep.subr.mxu0 0.0
    %5876 = vmatpush2.msra.mxu0 0.0
    %5877 = vmatprep.subr.mxu0 0.0
    %5878 = vmatpush2.msra.mxu0 0.0
    %5879 = vmatprep.subr.mxu0 0.0
    %5880 = vmatpush2.msra.mxu0 0.0
    %5881 = vmatprep.subr.mxu0 0.0
    %5882 = vmatpush2.msra.mxu0 0.0
    %5883 = vmatprep.subr.mxu0 0.0
    %5884 = vmatpush2.msra.mxu0 0.0
    %5885 = vmatprep.subr.mxu0 0.0
    %5886 = vmatpush2.msra.mxu0 0.0
    %5887 = vmatprep.subr.mxu0 0.0
    %5888 = vmatpush2.msra.mxu0 0.0
    %5889 = vmatprep.subr.mxu0 0.0
    %5890 = vmatpush2.msra.mxu0 0.0
    %5891 = vmatprep.subr.mxu0 0.0
    %5892 = vmatpush2.msra.mxu0 0.0
    %5893 = vmatprep.subr.mxu0 0.0
    %5894 = vmatpush2.msra.mxu0 0.0
    %5895 = vmatprep.subr.mxu0 0.0
    %5896 = vmatpush2.msra.mxu0 0.0
    %5897 = vmatprep.mubr.f32.mxu0 0.0
    %v5898 = vand.u32 %v4899, 4294901760
    %v5899 = vsub.f32 %v4899, %v5898
    %v5900 = vand.u32 %v5899, 4294901760
    %v5901 = vsub.f32 %v5899, %v5900
    %v5902 = vand.u32 %v5901, 4294901760
    %5903 = vmatmul.mubr.f32.gmra.mxu0 %v5902
    %v5904 = vpop.f32.mrf.mxu0
    %v5905 = vadd.f32 %v5814, %v5904
    %v5906 = vpop.f32.mrf.mxu0
    %5907 = vdwg.mxu0
    %5908 = vmatprep.subr.mxu0 0.0
    %v5909 = vand.u32 %v4947, 4294901760
    %v5910 = vsub.f32 %v4947, %v5909
    %v5911 = vand.u32 %v5910, 4294901760
    %v5912 = vsub.f32 %v5910, %v5911
    %v5913 = vand.u32 %v5912, 4294901760
    %5914 = vmatpush1.msra.mxu0 %v5913
    %5915 = vmatprep.subr.mxu0 0.0
    %v5916 = vand.u32 %v4946, 4294901760
    %v5917 = vsub.f32 %v4946, %v5916
    %v5918 = vand.u32 %v5917, 4294901760
    %v5919 = vsub.f32 %v5917, %v5918
    %v5920 = vand.u32 %v5919, 4294901760
    %5921 = vmatpush1.msra.mxu0 %v5920
    %5922 = vmatprep.subr.mxu0 0.0
    %v5923 = vand.u32 %v4945, 4294901760
    %v5924 = vsub.f32 %v4945, %v5923
    %v5925 = vand.u32 %v5924, 4294901760
    %v5926 = vsub.f32 %v5924, %v5925
    %v5927 = vand.u32 %v5926, 4294901760
    %5928 = vmatpush1.msra.mxu0 %v5927
    %5929 = vmatprep.subr.mxu0 0.0
    %v5930 = vand.u32 %v4944, 4294901760
    %v5931 = vsub.f32 %v4944, %v5930
    %v5932 = vand.u32 %v5931, 4294901760
    %v5933 = vsub.f32 %v5931, %v5932
    %v5934 = vand.u32 %v5933, 4294901760
    %5935 = vmatpush1.msra.mxu0 %v5934
    %5936 = vmatprep.subr.mxu0 0.0
    %v5937 = vand.u32 %v4943, 4294901760
    %v5938 = vsub.f32 %v4943, %v5937
    %v5939 = vand.u32 %v5938, 4294901760
    %v5940 = vsub.f32 %v5938, %v5939
    %v5941 = vand.u32 %v5940, 4294901760
    %5942 = vmatpush1.msra.mxu0 %v5941
    %5943 = vmatprep.subr.mxu0 0.0
    %v5944 = vand.u32 %v4942, 4294901760
    %v5945 = vsub.f32 %v4942, %v5944
    %v5946 = vand.u32 %v5945, 4294901760
    %v5947 = vsub.f32 %v5945, %v5946
    %v5948 = vand.u32 %v5947, 4294901760
    %5949 = vmatpush1.msra.mxu0 %v5948
    %5950 = vmatprep.subr.mxu0 0.0
    %v5951 = vand.u32 %v4941, 4294901760
    %v5952 = vsub.f32 %v4941, %v5951
    %v5953 = vand.u32 %v5952, 4294901760
    %v5954 = vsub.f32 %v5952, %v5953
    %v5955 = vand.u32 %v5954, 4294901760
    %5956 = vmatpush1.msra.mxu0 %v5955
    %5957 = vmatprep.subr.mxu0 0.0
    %v5958 = vand.u32 %v4940, 4294901760
    %v5959 = vsub.f32 %v4940, %v5958
    %v5960 = vand.u32 %v5959, 4294901760
    %v5961 = vsub.f32 %v5959, %v5960
    %v5962 = vand.u32 %v5961, 4294901760
    %5963 = vmatpush1.msra.mxu0 %v5962
    %5964 = vmatprep.subr.mxu0 0.0
    %v5965 = vand.u32 %v4939, 4294901760
    %v5966 = vsub.f32 %v4939, %v5965
    %v5967 = vand.u32 %v5966, 4294901760
    %v5968 = vsub.f32 %v5966, %v5967
    %v5969 = vand.u32 %v5968, 4294901760
    %5970 = vmatpush1.msra.mxu0 %v5969
    %5971 = vmatprep.subr.mxu0 0.0
    %v5972 = vand.u32 %v4938, 4294901760
    %v5973 = vsub.f32 %v4938, %v5972
    %v5974 = vand.u32 %v5973, 4294901760
    %v5975 = vsub.f32 %v5973, %v5974
    %v5976 = vand.u32 %v5975, 4294901760
    %5977 = vmatpush1.msra.mxu0 %v5976
    %5978 = vmatprep.subr.mxu0 0.0
    %v5979 = vand.u32 %v4937, 4294901760
    %v5980 = vsub.f32 %v4937, %v5979
    %v5981 = vand.u32 %v5980, 4294901760
    %v5982 = vsub.f32 %v5980, %v5981
    %v5983 = vand.u32 %v5982, 4294901760
    %5984 = vmatpush1.msra.mxu0 %v5983
    %5985 = vmatprep.subr.mxu0 0.0
    %v5986 = vand.u32 %v4936, 4294901760
    %v5987 = vsub.f32 %v4936, %v5986
    %v5988 = vand.u32 %v5987, 4294901760
    %v5989 = vsub.f32 %v5987, %v5988
    %v5990 = vand.u32 %v5989, 4294901760
    %5991 = vmatpush1.msra.mxu0 %v5990
    %5992 = vmatprep.subr.mxu0 0.0
    %v5993 = vand.u32 %v4935, 4294901760
    %v5994 = vsub.f32 %v4935, %v5993
    %v5995 = vand.u32 %v5994, 4294901760
    %v5996 = vsub.f32 %v5994, %v5995
    %v5997 = vand.u32 %v5996, 4294901760
    %5998 = vmatpush1.msra.mxu0 %v5997
    %5999 = vmatprep.subr.mxu0 0.0
    %v6000 = vand.u32 %v4934, 4294901760
    %v6001 = vsub.f32 %v4934, %v6000
    %v6002 = vand.u32 %v6001, 4294901760
    %v6003 = vsub.f32 %v6001, %v6002
    %v6004 = vand.u32 %v6003, 4294901760
    %6005 = vmatpush1.msra.mxu0 %v6004
    %6006 = vmatprep.subr.mxu0 0.0
    %v6007 = vand.u32 %v4933, 4294901760
    %v6008 = vsub.f32 %v4933, %v6007
    %v6009 = vand.u32 %v6008, 4294901760
    %v6010 = vsub.f32 %v6008, %v6009
    %v6011 = vand.u32 %v6010, 4294901760
    %6012 = vmatpush1.msra.mxu0 %v6011
    %6013 = vmatprep.subr.mxu0 0.0
    %v6014 = vand.u32 %v4932, 4294901760
    %v6015 = vsub.f32 %v4932, %v6014
    %v6016 = vand.u32 %v6015, 4294901760
    %v6017 = vsub.f32 %v6015, %v6016
    %v6018 = vand.u32 %v6017, 4294901760
    %6019 = vmatpush1.msra.mxu0 %v6018
    %6020 = vmatprep.subr.mxu0 0.0
    %6021 = vmatpush2.msra.mxu0 0.0
    %6022 = vmatprep.subr.mxu0 0.0
    %6023 = vmatpush2.msra.mxu0 0.0
    %6024 = vmatprep.subr.mxu0 0.0
    %6025 = vmatpush2.msra.mxu0 0.0
    %6026 = vmatprep.subr.mxu0 0.0
    %6027 = vmatpush2.msra.mxu0 0.0
    %6028 = vmatprep.subr.mxu0 0.0
    %6029 = vmatpush2.msra.mxu0 0.0
    %6030 = vmatprep.subr.mxu0 0.0
    %6031 = vmatpush2.msra.mxu0 0.0
    %6032 = vmatprep.subr.mxu0 0.0
    %6033 = vmatpush2.msra.mxu0 0.0
    %6034 = vmatprep.subr.mxu0 0.0
    %6035 = vmatpush2.msra.mxu0 0.0
    %6036 = vmatprep.subr.mxu0 0.0
    %6037 = vmatpush2.msra.mxu0 0.0
    %6038 = vmatprep.subr.mxu0 0.0
    %6039 = vmatpush2.msra.mxu0 0.0
    %6040 = vmatprep.subr.mxu0 0.0
    %6041 = vmatpush2.msra.mxu0 0.0
    %6042 = vmatprep.subr.mxu0 0.0
    %6043 = vmatpush2.msra.mxu0 0.0
    %6044 = vmatprep.subr.mxu0 0.0
    %6045 = vmatpush2.msra.mxu0 0.0
    %6046 = vmatprep.subr.mxu0 0.0
    %6047 = vmatpush2.msra.mxu0 0.0
    %6048 = vmatprep.subr.mxu0 0.0
    %6049 = vmatpush2.msra.mxu0 0.0
    %6050 = vmatprep.subr.mxu0 0.0
    %6051 = vmatpush2.msra.mxu0 0.0
    %6052 = vmatprep.mubr.f32.mxu0 0.0
    %v6053 = vand.u32 %v4899, 4294901760
    %6054 = vmatmul.mubr.f32.gmra.mxu0 %v6053
    %v6055 = vpop.f32.mrf.mxu0
    %v6056 = vadd.f32 %v5905, %v6055
    %v6057 = vpop.f32.mrf.mxu0
    %6058 = vdwg.mxu0
    %6059 = vmatprep.subr.mxu0 0.0
    %v6060 = vand.u32 %v4947, 4294901760
    %v6061 = vsub.f32 %v4947, %v6060
    %6062 = vmatpush1.msra.mxu0 %v6061
    %6063 = vmatprep.subr.mxu0 0.0
    %v6064 = vand.u32 %v4946, 4294901760
    %v6065 = vsub.f32 %v4946, %v6064
    %6066 = vmatpush1.msra.mxu0 %v6065
    %6067 = vmatprep.subr.mxu0 0.0
    %v6068 = vand.u32 %v4945, 4294901760
    %v6069 = vsub.f32 %v4945, %v6068
    %6070 = vmatpush1.msra.mxu0 %v6069
    %6071 = vmatprep.subr.mxu0 0.0
    %v6072 = vand.u32 %v4944, 4294901760
    %v6073 = vsub.f32 %v4944, %v6072
    %6074 = vmatpush1.msra.mxu0 %v6073
    %6075 = vmatprep.subr.mxu0 0.0
    %v6076 = vand.u32 %v4943, 4294901760
    %v6077 = vsub.f32 %v4943, %v6076
    %6078 = vmatpush1.msra.mxu0 %v6077
    %6079 = vmatprep.subr.mxu0 0.0
    %v6080 = vand.u32 %v4942, 4294901760
    %v6081 = vsub.f32 %v4942, %v6080
    %6082 = vmatpush1.msra.mxu0 %v6081
    %6083 = vmatprep.subr.mxu0 0.0
    %v6084 = vand.u32 %v4941, 4294901760
    %v6085 = vsub.f32 %v4941, %v6084
    %6086 = vmatpush1.msra.mxu0 %v6085
    %6087 = vmatprep.subr.mxu0 0.0
    %v6088 = vand.u32 %v4940, 4294901760
    %v6089 = vsub.f32 %v4940, %v6088
    %6090 = vmatpush1.msra.mxu0 %v6089
    %6091 = vmatprep.subr.mxu0 0.0
    %v6092 = vand.u32 %v4939, 4294901760
    %v6093 = vsub.f32 %v4939, %v6092
    %6094 = vmatpush1.msra.mxu0 %v6093
    %6095 = vmatprep.subr.mxu0 0.0
    %v6096 = vand.u32 %v4938, 4294901760
    %v6097 = vsub.f32 %v4938, %v6096
    %6098 = vmatpush1.msra.mxu0 %v6097
    %6099 = vmatprep.subr.mxu0 0.0
    %v6100 = vand.u32 %v4937, 4294901760
    %v6101 = vsub.f32 %v4937, %v6100
    %6102 = vmatpush1.msra.mxu0 %v6101
    %6103 = vmatprep.subr.mxu0 0.0
    %v6104 = vand.u32 %v4936, 4294901760
    %v6105 = vsub.f32 %v4936, %v6104
    %6106 = vmatpush1.msra.mxu0 %v6105
    %6107 = vmatprep.subr.mxu0 0.0
    %v6108 = vand.u32 %v4935, 4294901760
    %v6109 = vsub.f32 %v4935, %v6108
    %6110 = vmatpush1.msra.mxu0 %v6109
    %6111 = vmatprep.subr.mxu0 0.0
    %v6112 = vand.u32 %v4934, 4294901760
    %v6113 = vsub.f32 %v4934, %v6112
    %6114 = vmatpush1.msra.mxu0 %v6113
    %6115 = vmatprep.subr.mxu0 0.0
    %v6116 = vand.u32 %v4933, 4294901760
    %v6117 = vsub.f32 %v4933, %v6116
    %6118 = vmatpush1.msra.mxu0 %v6117
    %6119 = vmatprep.subr.mxu0 0.0
    %v6120 = vand.u32 %v4932, 4294901760
    %v6121 = vsub.f32 %v4932, %v6120
    %6122 = vmatpush1.msra.mxu0 %v6121
    %6123 = vmatprep.subr.mxu0 0.0
    %6124 = vmatpush2.msra.mxu0 0.0
    %6125 = vmatprep.subr.mxu0 0.0
    %6126 = vmatpush2.msra.mxu0 0.0
    %6127 = vmatprep.subr.mxu0 0.0
    %6128 = vmatpush2.msra.mxu0 0.0
    %6129 = vmatprep.subr.mxu0 0.0
    %6130 = vmatpush2.msra.mxu0 0.0
    %6131 = vmatprep.subr.mxu0 0.0
    %6132 = vmatpush2.msra.mxu0 0.0
    %6133 = vmatprep.subr.mxu0 0.0
    %6134 = vmatpush2.msra.mxu0 0.0
    %6135 = vmatprep.subr.mxu0 0.0
    %6136 = vmatpush2.msra.mxu0 0.0
    %6137 = vmatprep.subr.mxu0 0.0
    %6138 = vmatpush2.msra.mxu0 0.0
    %6139 = vmatprep.subr.mxu0 0.0
    %6140 = vmatpush2.msra.mxu0 0.0
    %6141 = vmatprep.subr.mxu0 0.0
    %6142 = vmatpush2.msra.mxu0 0.0
    %6143 = vmatprep.subr.mxu0 0.0
    %6144 = vmatpush2.msra.mxu0 0.0
    %6145 = vmatprep.subr.mxu0 0.0
    %6146 = vmatpush2.msra.mxu0 0.0
    %6147 = vmatprep.subr.mxu0 0.0
    %6148 = vmatpush2.msra.mxu0 0.0
    %6149 = vmatprep.subr.mxu0 0.0
    %6150 = vmatpush2.msra.mxu0 0.0
    %6151 = vmatprep.subr.mxu0 0.0
    %6152 = vmatpush2.msra.mxu0 0.0
    %6153 = vmatprep.subr.mxu0 0.0
    %6154 = vmatpush2.msra.mxu0 0.0
    %6155 = vmatprep.mubr.f32.mxu0 0.0
    %v6156 = vand.u32 %v4899, 4294901760
    %v6157 = vsub.f32 %v4899, %v6156
    %6158 = vmatmul.mubr.f32.gmra.mxu0 %v6157
    %v6159 = vpop.f32.mrf.mxu0
    %v6160 = vadd.f32 %v6056, %v6159
    %v6161 = vpop.f32.mrf.mxu0
    %6162 = vdwg.mxu0
    %6163 = vmatprep.subr.mxu0 0.0
    %v6164 = vand.u32 %v4947, 4294901760
    %6165 = vmatpush1.msra.mxu0 %v6164
    %6166 = vmatprep.subr.mxu0 0.0
    %v6167 = vand.u32 %v4946, 4294901760
    %6168 = vmatpush1.msra.mxu0 %v6167
    %6169 = vmatprep.subr.mxu0 0.0
    %v6170 = vand.u32 %v4945, 4294901760
    %6171 = vmatpush1.msra.mxu0 %v6170
    %6172 = vmatprep.subr.mxu0 0.0
    %v6173 = vand.u32 %v4944, 4294901760
    %6174 = vmatpush1.msra.mxu0 %v6173
    %6175 = vmatprep.subr.mxu0 0.0
    %v6176 = vand.u32 %v4943, 4294901760
    %6177 = vmatpush1.msra.mxu0 %v6176
    %6178 = vmatprep.subr.mxu0 0.0
    %v6179 = vand.u32 %v4942, 4294901760
    %6180 = vmatpush1.msra.mxu0 %v6179
    %6181 = vmatprep.subr.mxu0 0.0
    %v6182 = vand.u32 %v4941, 4294901760
    %6183 = vmatpush1.msra.mxu0 %v6182
    %6184 = vmatprep.subr.mxu0 0.0
    %v6185 = vand.u32 %v4940, 4294901760
    %6186 = vmatpush1.msra.mxu0 %v6185
    %6187 = vmatprep.subr.mxu0 0.0
    %v6188 = vand.u32 %v4939, 4294901760
    %6189 = vmatpush1.msra.mxu0 %v6188
    %6190 = vmatprep.subr.mxu0 0.0
    %v6191 = vand.u32 %v4938, 4294901760
    %6192 = vmatpush1.msra.mxu0 %v6191
    %6193 = vmatprep.subr.mxu0 0.0
    %v6194 = vand.u32 %v4937, 4294901760
    %6195 = vmatpush1.msra.mxu0 %v6194
    %6196 = vmatprep.subr.mxu0 0.0
    %v6197 = vand.u32 %v4936, 4294901760
    %6198 = vmatpush1.msra.mxu0 %v6197
    %6199 = vmatprep.subr.mxu0 0.0
    %v6200 = vand.u32 %v4935, 4294901760
    %6201 = vmatpush1.msra.mxu0 %v6200
    %6202 = vmatprep.subr.mxu0 0.0
    %v6203 = vand.u32 %v4934, 4294901760
    %6204 = vmatpush1.msra.mxu0 %v6203
    %6205 = vmatprep.subr.mxu0 0.0
    %v6206 = vand.u32 %v4933, 4294901760
    %6207 = vmatpush1.msra.mxu0 %v6206
    %6208 = vmatprep.subr.mxu0 0.0
    %v6209 = vand.u32 %v4932, 4294901760
    %6210 = vmatpush1.msra.mxu0 %v6209
    %6211 = vmatprep.subr.mxu0 0.0
    %6212 = vmatpush2.msra.mxu0 0.0
    %6213 = vmatprep.subr.mxu0 0.0
    %6214 = vmatpush2.msra.mxu0 0.0
    %6215 = vmatprep.subr.mxu0 0.0
    %6216 = vmatpush2.msra.mxu0 0.0
    %6217 = vmatprep.subr.mxu0 0.0
    %6218 = vmatpush2.msra.mxu0 0.0
    %6219 = vmatprep.subr.mxu0 0.0
    %6220 = vmatpush2.msra.mxu0 0.0
    %6221 = vmatprep.subr.mxu0 0.0
    %6222 = vmatpush2.msra.mxu0 0.0
    %6223 = vmatprep.subr.mxu0 0.0
    %6224 = vmatpush2.msra.mxu0 0.0
    %6225 = vmatprep.subr.mxu0 0.0
    %6226 = vmatpush2.msra.mxu0 0.0
    %6227 = vmatprep.subr.mxu0 0.0
    %6228 = vmatpush2.msra.mxu0 0.0
    %6229 = vmatprep.subr.mxu0 0.0
    %6230 = vmatpush2.msra.mxu0 0.0
    %6231 = vmatprep.subr.mxu0 0.0
    %6232 = vmatpush2.msra.mxu0 0.0
    %6233 = vmatprep.subr.mxu0 0.0
    %6234 = vmatpush2.msra.mxu0 0.0
    %6235 = vmatprep.subr.mxu0 0.0
    %6236 = vmatpush2.msra.mxu0 0.0
    %6237 = vmatprep.subr.mxu0 0.0
    %6238 = vmatpush2.msra.mxu0 0.0
    %6239 = vmatprep.subr.mxu0 0.0
    %6240 = vmatpush2.msra.mxu0 0.0
    %6241 = vmatprep.subr.mxu0 0.0
    %6242 = vmatpush2.msra.mxu0 0.0
    %6243 = vmatprep.mubr.f32.mxu0 0.0
    %v6244 = vand.u32 %v4899, 4294901760
    %v6245 = vsub.f32 %v4899, %v6244
    %v6246 = vand.u32 %v6245, 4294901760
    %6247 = vmatmul.mubr.f32.gmra.mxu0 %v6246
    %v6248 = vpop.f32.mrf.mxu0
    %v6249 = vadd.f32 %v6160, %v6248
    %v6250 = vpop.f32.mrf.mxu0
    %6251 = vdwg.mxu0
    %6252 = vmatprep.subr.mxu0 0.0
    %v6253 = vand.u32 %v4947, 4294901760
    %v6254 = vsub.f32 %v4947, %v6253
    %v6255 = vand.u32 %v6254, 4294901760
    %6256 = vmatpush1.msra.mxu0 %v6255
    %6257 = vmatprep.subr.mxu0 0.0
    %v6258 = vand.u32 %v4946, 4294901760
    %v6259 = vsub.f32 %v4946, %v6258
    %v6260 = vand.u32 %v6259, 4294901760
    %6261 = vmatpush1.msra.mxu0 %v6260
    %6262 = vmatprep.subr.mxu0 0.0
    %v6263 = vand.u32 %v4945, 4294901760
    %v6264 = vsub.f32 %v4945, %v6263
    %v6265 = vand.u32 %v6264, 4294901760
    %6266 = vmatpush1.msra.mxu0 %v6265
    %6267 = vmatprep.subr.mxu0 0.0
    %v6268 = vand.u32 %v4944, 4294901760
    %v6269 = vsub.f32 %v4944, %v6268
    %v6270 = vand.u32 %v6269, 4294901760
    %6271 = vmatpush1.msra.mxu0 %v6270
    %6272 = vmatprep.subr.mxu0 0.0
    %v6273 = vand.u32 %v4943, 4294901760
    %v6274 = vsub.f32 %v4943, %v6273
    %v6275 = vand.u32 %v6274, 4294901760
    %6276 = vmatpush1.msra.mxu0 %v6275
    %6277 = vmatprep.subr.mxu0 0.0
    %v6278 = vand.u32 %v4942, 4294901760
    %v6279 = vsub.f32 %v4942, %v6278
    %v6280 = vand.u32 %v6279, 4294901760
    %6281 = vmatpush1.msra.mxu0 %v6280
    %6282 = vmatprep.subr.mxu0 0.0
    %v6283 = vand.u32 %v4941, 4294901760
    %v6284 = vsub.f32 %v4941, %v6283
    %v6285 = vand.u32 %v6284, 4294901760
    %6286 = vmatpush1.msra.mxu0 %v6285
    %6287 = vmatprep.subr.mxu0 0.0
    %v6288 = vand.u32 %v4940, 4294901760
    %v6289 = vsub.f32 %v4940, %v6288
    %v6290 = vand.u32 %v6289, 4294901760
    %6291 = vmatpush1.msra.mxu0 %v6290
    %6292 = vmatprep.subr.mxu0 0.0
    %v6293 = vand.u32 %v4939, 4294901760
    %v6294 = vsub.f32 %v4939, %v6293
    %v6295 = vand.u32 %v6294, 4294901760
    %6296 = vmatpush1.msra.mxu0 %v6295
    %6297 = vmatprep.subr.mxu0 0.0
    %v6298 = vand.u32 %v4938, 4294901760
    %v6299 = vsub.f32 %v4938, %v6298
    %v6300 = vand.u32 %v6299, 4294901760
    %6301 = vmatpush1.msra.mxu0 %v6300
    %6302 = vmatprep.subr.mxu0 0.0
    %v6303 = vand.u32 %v4937, 4294901760
    %v6304 = vsub.f32 %v4937, %v6303
    %v6305 = vand.u32 %v6304, 4294901760
    %6306 = vmatpush1.msra.mxu0 %v6305
    %6307 = vmatprep.subr.mxu0 0.0
    %v6308 = vand.u32 %v4936, 4294901760
    %v6309 = vsub.f32 %v4936, %v6308
    %v6310 = vand.u32 %v6309, 4294901760
    %6311 = vmatpush1.msra.mxu0 %v6310
    %6312 = vmatprep.subr.mxu0 0.0
    %v6313 = vand.u32 %v4935, 4294901760
    %v6314 = vsub.f32 %v4935, %v6313
    %v6315 = vand.u32 %v6314, 4294901760
    %6316 = vmatpush1.msra.mxu0 %v6315
    %6317 = vmatprep.subr.mxu0 0.0
    %v6318 = vand.u32 %v4934, 4294901760
    %v6319 = vsub.f32 %v4934, %v6318
    %v6320 = vand.u32 %v6319, 4294901760
    %6321 = vmatpush1.msra.mxu0 %v6320
    %6322 = vmatprep.subr.mxu0 0.0
    %v6323 = vand.u32 %v4933, 4294901760
    %v6324 = vsub.f32 %v4933, %v6323
    %v6325 = vand.u32 %v6324, 4294901760
    %6326 = vmatpush1.msra.mxu0 %v6325
    %6327 = vmatprep.subr.mxu0 0.0
    %v6328 = vand.u32 %v4932, 4294901760
    %v6329 = vsub.f32 %v4932, %v6328
    %v6330 = vand.u32 %v6329, 4294901760
    %6331 = vmatpush1.msra.mxu0 %v6330
    %6332 = vmatprep.subr.mxu0 0.0
    %6333 = vmatpush2.msra.mxu0 0.0
    %6334 = vmatprep.subr.mxu0 0.0
    %6335 = vmatpush2.msra.mxu0 0.0
    %6336 = vmatprep.subr.mxu0 0.0
    %6337 = vmatpush2.msra.mxu0 0.0
    %6338 = vmatprep.subr.mxu0 0.0
    %6339 = vmatpush2.msra.mxu0 0.0
    %6340 = vmatprep.subr.mxu0 0.0
    %6341 = vmatpush2.msra.mxu0 0.0
    %6342 = vmatprep.subr.mxu0 0.0
    %6343 = vmatpush2.msra.mxu0 0.0
    %6344 = vmatprep.subr.mxu0 0.0
    %6345 = vmatpush2.msra.mxu0 0.0
    %6346 = vmatprep.subr.mxu0 0.0
    %6347 = vmatpush2.msra.mxu0 0.0
    %6348 = vmatprep.subr.mxu0 0.0
    %6349 = vmatpush2.msra.mxu0 0.0
    %6350 = vmatprep.subr.mxu0 0.0
    %6351 = vmatpush2.msra.mxu0 0.0
    %6352 = vmatprep.subr.mxu0 0.0
    %6353 = vmatpush2.msra.mxu0 0.0
    %6354 = vmatprep.subr.mxu0 0.0
    %6355 = vmatpush2.msra.mxu0 0.0
    %6356 = vmatprep.subr.mxu0 0.0
    %6357 = vmatpush2.msra.mxu0 0.0
    %6358 = vmatprep.subr.mxu0 0.0
    %6359 = vmatpush2.msra.mxu0 0.0
    %6360 = vmatprep.subr.mxu0 0.0
    %6361 = vmatpush2.msra.mxu0 0.0
    %6362 = vmatprep.subr.mxu0 0.0
    %6363 = vmatpush2.msra.mxu0 0.0
    %6364 = vmatprep.mubr.f32.mxu0 0.0
    %v6365 = vand.u32 %v4899, 4294901760
    %6366 = vmatmul.mubr.f32.gmra.mxu0 %v6365
    %v6367 = vpop.f32.mrf.mxu0
    %v6368 = vadd.f32 %v6249, %v6367
    %v6369 = vpop.f32.mrf.mxu0
    %6370 = vdwg.mxu0
    %6371 = vmatprep.subr.mxu0 0.0
    %v6372 = vand.u32 %v4947, 4294901760
    %6373 = vmatpush1.msra.mxu0 %v6372
    %6374 = vmatprep.subr.mxu0 0.0
    %v6375 = vand.u32 %v4946, 4294901760
    %6376 = vmatpush1.msra.mxu0 %v6375
    %6377 = vmatprep.subr.mxu0 0.0
    %v6378 = vand.u32 %v4945, 4294901760
    %6379 = vmatpush1.msra.mxu0 %v6378
    %6380 = vmatprep.subr.mxu0 0.0
    %v6381 = vand.u32 %v4944, 4294901760
    %6382 = vmatpush1.msra.mxu0 %v6381
    %6383 = vmatprep.subr.mxu0 0.0
    %v6384 = vand.u32 %v4943, 4294901760
    %6385 = vmatpush1.msra.mxu0 %v6384
    %6386 = vmatprep.subr.mxu0 0.0
    %v6387 = vand.u32 %v4942, 4294901760
    %6388 = vmatpush1.msra.mxu0 %v6387
    %6389 = vmatprep.subr.mxu0 0.0
    %v6390 = vand.u32 %v4941, 4294901760
    %6391 = vmatpush1.msra.mxu0 %v6390
    %6392 = vmatprep.subr.mxu0 0.0
    %v6393 = vand.u32 %v4940, 4294901760
    %6394 = vmatpush1.msra.mxu0 %v6393
    %6395 = vmatprep.subr.mxu0 0.0
    %v6396 = vand.u32 %v4939, 4294901760
    %6397 = vmatpush1.msra.mxu0 %v6396
    %6398 = vmatprep.subr.mxu0 0.0
    %v6399 = vand.u32 %v4938, 4294901760
    %6400 = vmatpush1.msra.mxu0 %v6399
    %6401 = vmatprep.subr.mxu0 0.0
    %v6402 = vand.u32 %v4937, 4294901760
    %6403 = vmatpush1.msra.mxu0 %v6402
    %6404 = vmatprep.subr.mxu0 0.0
    %v6405 = vand.u32 %v4936, 4294901760
    %6406 = vmatpush1.msra.mxu0 %v6405
    %6407 = vmatprep.subr.mxu0 0.0
    %v6408 = vand.u32 %v4935, 4294901760
    %6409 = vmatpush1.msra.mxu0 %v6408
    %6410 = vmatprep.subr.mxu0 0.0
    %v6411 = vand.u32 %v4934, 4294901760
    %6412 = vmatpush1.msra.mxu0 %v6411
    %6413 = vmatprep.subr.mxu0 0.0
    %v6414 = vand.u32 %v4933, 4294901760
    %6415 = vmatpush1.msra.mxu0 %v6414
    %6416 = vmatprep.subr.mxu0 0.0
    %v6417 = vand.u32 %v4932, 4294901760
    %6418 = vmatpush1.msra.mxu0 %v6417
    %6419 = vmatprep.subr.mxu0 0.0
    %6420 = vmatpush2.msra.mxu0 0.0
    %6421 = vmatprep.subr.mxu0 0.0
    %6422 = vmatpush2.msra.mxu0 0.0
    %6423 = vmatprep.subr.mxu0 0.0
    %6424 = vmatpush2.msra.mxu0 0.0
    %6425 = vmatprep.subr.mxu0 0.0
    %6426 = vmatpush2.msra.mxu0 0.0
    %6427 = vmatprep.subr.mxu0 0.0
    %6428 = vmatpush2.msra.mxu0 0.0
    %6429 = vmatprep.subr.mxu0 0.0
    %6430 = vmatpush2.msra.mxu0 0.0
    %6431 = vmatprep.subr.mxu0 0.0
    %6432 = vmatpush2.msra.mxu0 0.0
    %6433 = vmatprep.subr.mxu0 0.0
    %6434 = vmatpush2.msra.mxu0 0.0
    %6435 = vmatprep.subr.mxu0 0.0
    %6436 = vmatpush2.msra.mxu0 0.0
    %6437 = vmatprep.subr.mxu0 0.0
    %6438 = vmatpush2.msra.mxu0 0.0
    %6439 = vmatprep.subr.mxu0 0.0
    %6440 = vmatpush2.msra.mxu0 0.0
    %6441 = vmatprep.subr.mxu0 0.0
    %6442 = vmatpush2.msra.mxu0 0.0
    %6443 = vmatprep.subr.mxu0 0.0
    %6444 = vmatpush2.msra.mxu0 0.0
    %6445 = vmatprep.subr.mxu0 0.0
    %6446 = vmatpush2.msra.mxu0 0.0
    %6447 = vmatprep.subr.mxu0 0.0
    %6448 = vmatpush2.msra.mxu0 0.0
    %6449 = vmatprep.subr.mxu0 0.0
    %6450 = vmatpush2.msra.mxu0 0.0
    %6451 = vmatprep.mubr.f32.mxu0 0.0
    %v6452 = vand.u32 %v4899, 4294901760
    %6453 = vmatmul.mubr.f32.gmra.mxu0 %v6452
    %v6454 = vpop.f32.mrf.mxu0
    %v6455 = vadd.f32 %v6368, %v6454
    %v6456 = vpop.f32.mrf.mxu0
    %6457 = vdwg.mxu0
    %v6458 = vtanh.pop %v6455
    %v6459 = vmul.f32 %v6458, 2.0
    %6460 = vst [vmem:[#allocation11] sm:$0xff] %v6459
    // Predicated region
    $region50: #{tpu_custom_call.1} parent=1 // pred_check
      _
    $region51: #{tpu_custom_call.1} parent=1 // pred_check_branch
      %6462 = sbr.rel (0) target = $region53
    $region52: #{tpu_custom_call.1} parent=1 // pred_region
      %s6464 = ssub.s32 128, 128
      %6465 = vsyncadd [#allocation4], %s6464
      %s6467 = sshll.u32 [#allocation11], 4
      %s6468 = int_to_ptr.vmem [resolvable:$true] %s6467
      %6470 = dma.vmem_to_hbm [thread:$0]  %s6468, 128, %s7, [#allocation4]
    $region53: #{tpu_custom_call.1} parent=1 // pred_fallthru
      _
    // Predicated region
    $region54: #{tpu_custom_call.1} parent=1 // pred_check
      _
    $region55: #{tpu_custom_call.1} parent=1 // pred_check_branch
      %6472 = sbr.rel (0) target = $region57
    $region56: #{tpu_custom_call.1} parent=1 // pred_region
      %6473 = dma.done [#allocation4], 128
    $region57: #{tpu_custom_call.1} parent=1 // pred_fallthru
      _
    %6474 = vsyncpa [#allocation3], 1
    %6475 = vsyncpa [#allocation6], 1
    %6476 = vsyncpa [#allocation9], 1
    %6477 = vsyncpa [#allocation4], 1

</llo_original>
